<compile_context>
chip_gen: v7x
topology: tpu7x:2x2x1
jax: 0.10.0
libtpu: 0.0.40
codegen_flags: <defaults>
</compile_context>

<pallas_src>
import jax
import jax.numpy as jnp
from jax.experimental import pallas as pl
from jax.experimental.pallas import tpu as pltpu

OCP = 128  # every matmul output width is padded to one full 128-lane vreg


def _round_up(x, m):
    return (x + m - 1) // m * m


def _choose_tm(m, cap=256):
    """Rows of the matmul processed per grid step (multiple of 8, <= cap)."""
    return cap if m >= cap else _round_up(m, 8)


# ----------------------------- Pallas kernels ------------------------------

def _conv_relu_pool_kernel(p_ref, w_ref, b_ref, o_ref, acc_ref):
    """Fused conv tile: matmul -> 4-way max (2x2 pool) -> +bias -> ReLU.

    Grid = (M tiles, 4 pool positions). The pool axis (last, "arbitrary") is a
    max-reduction into a VMEM accumulator; bias + ReLU are applied once at the
    final pool position and the (TM, 128) lane-dense tile is stored.
    """
    q = pl.program_id(1)
    y = jnp.dot(p_ref[0], w_ref[...], preferred_element_type=jnp.float32)

    @pl.when(q == 0)
    def _():
        acc_ref[...] = y

    @pl.when(q > 0)
    def _():
        acc_ref[...] = jnp.maximum(acc_ref[...], y)

    @pl.when(q == pl.num_programs(1) - 1)
    def _():
        o_ref[...] = jnp.maximum(acc_ref[...] + b_ref[...], 0.0)


def _fc_stack_kernel(x_ref, w1_ref, b1_ref, w2_ref, b2_ref, w3_ref, b3_ref,
                     o_ref):
    """fc1+ReLU -> fc2+ReLU -> fc3 chained in one kernel (weights resident)."""
    h = jnp.dot(x_ref[...], w1_ref[...], preferred_element_type=jnp.float32)
    h = jnp.maximum(h + b1_ref[...], 0.0)
    h = jnp.dot(h.astype(w2_ref.dtype), w2_ref[...],
                preferred_element_type=jnp.float32)
    h = jnp.maximum(h + b2_ref[...], 0.0)
    h = jnp.dot(h.astype(w3_ref.dtype), w3_ref[...],
                preferred_element_type=jnp.float32)
    o_ref[...] = h + b3_ref[...]


# ----------------------------- wrappers -------------------------------------

def _extract_pool_patches_nhwc(x, kh, kw):
    """(B,H,W,C) -> (4, B*OH2*OW2, kh*kw*C) patches grouped by 2x2 pool pos.

    q = dy*2+dx, row m = (b*OH2 + h)*OW2 + w, col k = (i*kw + j)*C + c, so that
    patches[q, m] is the im2col row of the conv output pixel (2h+dy, 2w+dx).
    """
    B, H, W, C = x.shape
    OH, OW = H - kh + 1, W - kw + 1
    OH2, OW2 = OH // 2, OW // 2
    taps = [x[:, i:i + OH, j:j + OW, :] for i in range(kh) for j in range(kw)]
    p = jnp.stack(taps, axis=3)                          # (B, OH, OW, T, C)
    p = p.reshape(B, OH2, 2, OW2, 2, kh * kw, C)
    p = p.transpose(2, 4, 0, 1, 3, 5, 6)                 # (2, 2, B, OH2, OW2, T, C)
    return p.reshape(4, B * OH2 * OW2, kh * kw * C), OH2, OW2


def conv_relu_pool(x_nhwc, w_mat, b_row, *, kh=5, kw=5):
    """Fused valid conv (stride 1) + bias + ReLU + 2x2/2 max-pool.

    x_nhwc : (B, H, W, C) float32
    w_mat  : (kh*kw*C, 128) pre-reshaped/padded weights (f32 or bf16)
    b_row  : (1, 128) float32 bias
    returns (B, OH/2, OW/2, 128) float32 (channels >= real OC are exactly 0).
    """
    B, H, W, C = x_nhwc.shape
    K, ocp = w_mat.shape
    assert K == kh * kw * C
    patches, OH2, OW2 = _extract_pool_patches_nhwc(x_nhwc, kh, kw)
    M = B * OH2 * OW2
    TM = _choose_tm(M)
    Mpad = _round_up(M, TM)
    if Mpad != M:
        patches = jnp.pad(patches, ((0, 0), (0, Mpad - M), (0, 0)))
    patches = patches.astype(w_mat.dtype)

    out = pl.pallas_call(
        _conv_relu_pool_kernel,
        out_shape=jax.ShapeDtypeStruct((Mpad, ocp), jnp.float32),
        grid=(Mpad // TM, 4),
        in_specs=[
            pl.BlockSpec((1, TM, K), lambda m, q: (q, m, 0)),
            pl.BlockSpec((K, ocp), lambda m, q: (0, 0)),
            pl.BlockSpec((1, ocp), lambda m, q: (0, 0)),
        ],
        out_specs=pl.BlockSpec((TM, ocp), lambda m, q: (m, 0)),
        scratch_shapes=[pltpu.VMEM((TM, ocp), jnp.float32)],
        compiler_params=pltpu.CompilerParams(
            dimension_semantics=("parallel", "arbitrary")),
    )(patches, w_mat, b_row)
    return out[:M].reshape(B, OH2, OW2, ocp)


def fc_stack(x, w1, b1, w2, b2, w3, b3):
    """y = relu(relu(x@w1+b1)@w2+b2)@w3+b3, everything padded to 128 lanes."""
    M, K = x.shape
    N = w3.shape[1]
    TM = _choose_tm(M)
    Mpad = _round_up(M, TM)
    if Mpad != M:
        x = jnp.pad(x, ((0, Mpad - M), (0, 0)))
    x = x.astype(w1.dtype)

    out = pl.pallas_call(
        _fc_stack_kernel,
        out_shape=jax.ShapeDtypeStruct((Mpad, N), jnp.float32),
        grid=(Mpad // TM,),
        in_specs=[
            pl.BlockSpec((TM, K), lambda m: (m, 0)),
            pl.BlockSpec(w1.shape, lambda m: (0, 0)),
            pl.BlockSpec(b1.shape, lambda m: (0, 0)),
            pl.BlockSpec(w2.shape, lambda m: (0, 0)),
            pl.BlockSpec(b2.shape, lambda m: (0, 0)),
            pl.BlockSpec(w3.shape, lambda m: (0, 0)),
            pl.BlockSpec(b3.shape, lambda m: (0, 0)),
        ],
        out_specs=pl.BlockSpec((TM, N), lambda m: (m, 0)),
        compiler_params=pltpu.CompilerParams(
            dimension_semantics=("parallel",)),
    )(x, w1, b1, w2, b2, w3, b3)
    return out[:M]


# ----------------------------- parameters -----------------------------------

def init_params(key):
    """PyTorch-layout parameters with PyTorch-default uniform init."""
    ks = jax.random.split(key, 10)

    def rnd(k, shape, fan_in):
        bound = 1.0 / jnp.sqrt(fan_in)
        return jax.random.uniform(k, shape, jnp.float32, -bound, bound)

    return {
        "conv1_w": rnd(ks[0], (6, 3, 5, 5), 3 * 5 * 5),
        "conv1_b": rnd(ks[1], (6,), 3 * 5 * 5),
        "conv2_w": rnd(ks[2], (16, 6, 5, 5), 6 * 5 * 5),
        "conv2_b": rnd(ks[3], (16,), 6 * 5 * 5),
        "fc1_w": rnd(ks[4], (120, 16 * 5 * 5), 16 * 5 * 5),
        "fc1_b": rnd(ks[5], (120,), 16 * 5 * 5),
        "fc2_w": rnd(ks[6], (84, 120), 120),
        "fc2_b": rnd(ks[7], (84,), 120),
        "fc3_w": rnd(ks[8], (10, 84), 84),
        "fc3_b": rnd(ks[9], (10,), 84),
    }


def prepare_params(params, mxu_dtype=jnp.float32):
    """One-time weight prep (outside jit): transpose/reshape/zero-pad to 128.

    Use mxu_dtype=jnp.bfloat16 on v6e/v7x for 2x MXU throughput; accumulation
    and the bias/ReLU epilogues stay float32 inside the kernels either way.
    """
    def conv_wmat(w):
        oc, c, kh, kw = w.shape                      # torch OIHW
        wm = jnp.transpose(w, (2, 3, 1, 0)).reshape(kh * kw * c, oc)
        return jnp.pad(wm, ((0, 0), (0, OCP - oc))).astype(mxu_dtype)

    def pad_bias(b):
        return jnp.pad(b, (0, OCP - b.shape[0])).reshape(1, OCP).astype(jnp.float32)

    prep = {
        "c1_w": conv_wmat(params["conv1_w"]), "c1_b": pad_bias(params["conv1_b"]),
        "c2_w": conv_wmat(params["conv2_w"]), "c2_b": pad_bias(params["conv2_b"]),
    }

    # fc1: torch (120, 400) with input index c*25 + h*5 + w.  Re-index its rows
    # to the conv2 kernel's native (h, w, c_padded_to_128) feature layout so the
    # flatten is a free reshape (no runtime transpose / channel slice).
    w1 = params["fc1_w"].reshape(120, 16, 25)        # (n, c, hw)
    w1 = jnp.transpose(w1, (2, 1, 0))                # (hw, c, n)
    w1 = jnp.pad(w1, ((0, 0), (0, OCP - 16), (0, OCP - 120)))
    prep["fc1_w"] = w1.reshape(25 * OCP, OCP).astype(mxu_dtype)
    prep["fc1_b"] = pad_bias(params["fc1_b"])

    w2 = params["fc2_w"].T                           # (120, 84)
    prep["fc2_w"] = jnp.pad(w2, ((0, OCP - 120), (0, OCP - 84))).astype(mxu_dtype)
    prep["fc2_b"] = pad_bias(params["fc2_b"])

    w3 = params["fc3_w"].T                           # (84, 10)
    prep["fc3_w"] = jnp.pad(w3, ((0, OCP - 84), (0, OCP - 10))).astype(mxu_dtype)
    prep["fc3_b"] = pad_bias(params["fc3_b"])
    return prep


# ----------------------------- the model ------------------------------------

def net_forward(prep, x):
    """x: (B, 3, 32, 32) float32 NCHW (PyTorch layout) -> (B, 10) float32."""
    B = x.shape[0]
    x = jnp.transpose(x, (0, 2, 3, 1))                             # NHWC
    y = conv_relu_pool(x, prep["c1_w"], prep["c1_b"])              # (B,14,14,128)
    y = conv_relu_pool(y[..., :6], prep["c2_w"], prep["c2_b"])     # (B, 5, 5,128)
    feats = y.reshape(B, 5 * 5 * OCP)                              # padded flatten
    out = fc_stack(feats, prep["fc1_w"], prep["fc1_b"],
                   prep["fc2_w"], prep["fc2_b"],
                   prep["fc3_w"], prep["fc3_b"])                   # (B, 128)
    return out[:, :10]


def _ref_forward(params, x):
    """Pure-JAX reference (matches the PyTorch module) for a numeric check."""
    hp = jax.lax.Precision.HIGHEST

    def conv(x, w, b):
        y = jax.lax.conv_general_dilated(
            x, w, (1, 1), "VALID",
            dimension_numbers=("NCHW", "OIHW", "NCHW"), precision=hp)
        return jax.nn.relu(y + b[None, :, None, None])

    def pool(x):
        return jnp.maximum(
            jnp.maximum(x[:, :, 0::2, 0::2], x[:, :, 0::2, 1::2]),
            jnp.maximum(x[:, :, 1::2, 0::2], x[:, :, 1::2, 1::2]))

    x = pool(conv(x, params["conv1_w"], params["conv1_b"]))
    x = pool(conv(x, params["conv2_w"], params["conv2_b"]))
    x = x.reshape(x.shape[0], -1)
    x = jax.nn.relu(jnp.dot(x, params["fc1_w"].T, precision=hp) + params["fc1_b"])
    x = jax.nn.relu(jnp.dot(x, params["fc2_w"].T, precision=hp) + params["fc2_b"])
    return jnp.dot(x, params["fc3_w"].T, precision=hp) + params["fc3_b"]


if __name__ == "__main__":
    key = jax.random.PRNGKey(0)
    pkey, xkey = jax.random.split(key)
    params = init_params(pkey)
    prep = prepare_params(params)          # weight prep happens once, outside jit
    x = jax.random.normal(xkey, (2, 3, 32, 32), jnp.float32)

    fwd = jax.jit(net_forward)
    out = jax.block_until_ready(fwd(prep, x))
    assert out.shape == (2, 10) and out.dtype == jnp.float32

    ref = jax.block_until_ready(jax.jit(_ref_forward)(params, x))
    assert jnp.allclose(out, ref, atol=3e-2, rtol=3e-2), \
        float(jnp.max(jnp.abs(out - ref)))
    print("KERNEL_OK")
</pallas_src>

<mosaic_0001>
module attributes {stable_mosaic.version = 11 : i64} {
  func.func @_conv_relu_pool_kernel(%arg0: i32, %arg1: i32, %arg2: memref<1x256x75xf32, #tpu.memory_space<vmem>>, %arg3: memref<75x128xf32, #tpu.memory_space<vmem>>, %arg4: memref<1x128xf32, #tpu.memory_space<vmem>>, %arg5: memref<256x128xf32, #tpu.memory_space<vmem>>, %arg6: memref<256x128xf32, #tpu.memory_space<vmem>>) attributes {dimension_semantics = [#tpu.dimension_semantics<parallel>, #tpu.dimension_semantics<arbitrary>], iteration_bounds = array<i64: 2, 4>, scalar_prefetch = 0 : i64, scratch_operands = 1 : i64, tpu.core_type = #tpu.core_type<tc>, window_params = [{transform_indices = @transform_0, window_bounds = array<i64: 1, 256, 75>}, {pipeline_mode = #tpu.pipeline_mode<synchronous>, transform_indices = @transform_1, window_bounds = array<i64: 75, 128>}, {pipeline_mode = #tpu.pipeline_mode<synchronous>, transform_indices = @transform_2, window_bounds = array<i64: 1, 128>}, {transform_indices = @transform_3, window_bounds = array<i64: 256, 128>}]} {
    %c0 = arith.constant 0 : index
    %c0_0 = arith.constant 0 : index
    %c0_1 = arith.constant 0 : index
    %0 = vector.load %arg2[%c0, %c0_0, %c0_1] : memref<1x256x75xf32, #tpu.memory_space<vmem>>, vector<1x256x75xf32>
    %1 = vector.shape_cast %0 : vector<1x256x75xf32> to vector<256x75xf32>
    %c0_2 = arith.constant 0 : index
    %c0_3 = arith.constant 0 : index
    %2 = vector.load %arg3[%c0_2, %c0_3] : memref<75x128xf32, #tpu.memory_space<vmem>>, vector<75x128xf32>
    %cst = arith.constant dense<0.000000e+00> : vector<256x128xf32>
    %3 = tpu.matmul %1, %2, %cst {dimension_numbers = #tpu.dot_dimension_numbers<[1], [0], [0], [1], [0, 0, 1, 1], [], []>} : vector<256x75xf32>, vector<75x128xf32>, vector<256x128xf32> -> vector<256x128xf32>
    %c0_i32 = arith.constant 0 : i32
    %4 = arith.cmpi eq, %arg1, %c0_i32 : i32
    %5 = arith.extui %4 : i1 to i32
    %c0_i32_4 = arith.constant 0 : i32
    %6 = arith.cmpi ne, %5, %c0_i32_4 : i32
    scf.if %6 {
      %c0_8 = arith.constant 0 : index
      %c0_9 = arith.constant 0 : index
      %13 = vector.load %arg6[%c0_8, %c0_9] : memref<256x128xf32, #tpu.memory_space<vmem>>, vector<256x128xf32>
      tpu.vector_store %arg6[%c0_8, %c0_9], %3 {strides = array<i32>} : memref<256x128xf32, #tpu.memory_space<vmem>>, vector<256x128xf32>,
    } else {
    }
    %c0_i32_5 = arith.constant 0 : i32
    %7 = arith.cmpi sgt, %arg1, %c0_i32_5 : i32
    %8 = arith.extui %7 : i1 to i32
    %c0_i32_6 = arith.constant 0 : i32
    %9 = arith.cmpi ne, %8, %c0_i32_6 : i32
    scf.if %9 {
      %c0_8 = arith.constant 0 : index
      %c0_9 = arith.constant 0 : index
      %13 = vector.load %arg6[%c0_8, %c0_9] : memref<256x128xf32, #tpu.memory_space<vmem>>, vector<256x128xf32>
      %14 = arith.maximumf %13, %3 : vector<256x128xf32>
      %c0_10 = arith.constant 0 : index
      %c0_11 = arith.constant 0 : index
      %15 = vector.load %arg6[%c0_10, %c0_11] : memref<256x128xf32, #tpu.memory_space<vmem>>, vector<256x128xf32>
      tpu.vector_store %arg6[%c0_10, %c0_11], %14 {strides = array<i32>} : memref<256x128xf32, #tpu.memory_space<vmem>>, vector<256x128xf32>,
    } else {
    }
    %c3_i32 = arith.constant 3 : i32
    %10 = arith.cmpi eq, %arg1, %c3_i32 : i32
    %11 = arith.extui %10 : i1 to i32
    %c0_i32_7 = arith.constant 0 : i32
    %12 = arith.cmpi ne, %11, %c0_i32_7 : i32
    scf.if %12 {
      %c0_8 = arith.constant 0 : index
      %c0_9 = arith.constant 0 : index
      %13 = vector.load %arg6[%c0_8, %c0_9] : memref<256x128xf32, #tpu.memory_space<vmem>>, vector<256x128xf32>
      %c0_10 = arith.constant 0 : index
      %c0_11 = arith.constant 0 : index
      %14 = vector.load %arg4[%c0_10, %c0_11] : memref<1x128xf32, #tpu.memory_space<vmem>>, vector<1x128xf32>
      %15 = vector.broadcast %14 : vector<1x128xf32> to vector<256x128xf32>
      %16 = arith.addf %13, %15 : vector<256x128xf32>
      %cst_12 = arith.constant 0.000000e+00 : f32
      %17 = vector.broadcast %cst_12 : f32 to vector<256x128xf32>
      %18 = arith.maximumf %16, %17 : vector<256x128xf32>
      %c0_13 = arith.constant 0 : index
      %c0_14 = arith.constant 0 : index
      %19 = vector.load %arg5[%c0_13, %c0_14] : memref<256x128xf32, #tpu.memory_space<vmem>>, vector<256x128xf32>
      tpu.vector_store %arg5[%c0_13, %c0_14], %18 {strides = array<i32>} : memref<256x128xf32, #tpu.memory_space<vmem>>, vector<256x128xf32>,
    } else {
    }
    return
  }
  func.func @transform_0(%arg0: i32, %arg1: i32) -> (i32, i32, i32) {
    %c0_i32 = arith.constant 0 : i32
    %c0_i32_0 = arith.constant 0 : i32
    return %arg1, %arg0, %c0_i32 : i32, i32, i32
  }
  func.func @transform_1(%arg0: i32, %arg1: i32) -> (i32, i32) {
    %c0_i32 = arith.constant 0 : i32
    %c0_i32_0 = arith.constant 0 : i32
    %c0_i32_1 = arith.constant 0 : i32
    return %c0_i32, %c0_i32_0 : i32, i32
  }
  func.func @transform_2(%arg0: i32, %arg1: i32) -> (i32, i32) {
    %c0_i32 = arith.constant 0 : i32
    %c0_i32_0 = arith.constant 0 : i32
    %c0_i32_1 = arith.constant 0 : i32
    return %c0_i32, %c0_i32_0 : i32, i32
  }
  func.func @transform_3(%arg0: i32, %arg1: i32) -> (i32, i32) {
    %c0_i32 = arith.constant 0 : i32
    %c0_i32_0 = arith.constant 0 : i32
    return %arg0, %c0_i32 : i32, i32
  }
}

module attributes {stable_mosaic.version = 11 : i64} {
  func.func @_conv_relu_pool_kernel(%arg0: i32, %arg1: i32, %arg2: memref<1x56x150xf32, #tpu.memory_space<vmem>>, %arg3: memref<150x128xf32, #tpu.memory_space<vmem>>, %arg4: memref<1x128xf32, #tpu.memory_space<vmem>>, %arg5: memref<56x128xf32, #tpu.memory_space<vmem>>, %arg6: memref<56x128xf32, #tpu.memory_space<vmem>>) attributes {dimension_semantics = [#tpu.dimension_semantics<parallel>, #tpu.dimension_semantics<arbitrary>], iteration_bounds = array<i64: 1, 4>, scalar_prefetch = 0 : i64, scratch_operands = 1 : i64, tpu.core_type = #tpu.core_type<tc>, window_params = [{transform_indices = @transform_0, window_bounds = array<i64: 1, 56, 150>}, {pipeline_mode = #tpu.pipeline_mode<synchronous>, transform_indices = @transform_1, window_bounds = array<i64: 150, 128>}, {pipeline_mode = #tpu.pipeline_mode<synchronous>, transform_indices = @transform_2, window_bounds = array<i64: 1, 128>}, {transform_indices = @transform_3, window_bounds = array<i64: 56, 128>}]} {
    %c0 = arith.constant 0 : index
    %c0_0 = arith.constant 0 : index
    %c0_1 = arith.constant 0 : index
    %0 = vector.load %arg2[%c0, %c0_0, %c0_1] : memref<1x56x150xf32, #tpu.memory_space<vmem>>, vector<1x56x150xf32>
    %1 = vector.shape_cast %0 : vector<1x56x150xf32> to vector<56x150xf32>
    %c0_2 = arith.constant 0 : index
    %c0_3 = arith.constant 0 : index
    %2 = vector.load %arg3[%c0_2, %c0_3] : memref<150x128xf32, #tpu.memory_space<vmem>>, vector<150x128xf32>
    %cst = arith.constant dense<0.000000e+00> : vector<56x128xf32>
    %3 = tpu.matmul %1, %2, %cst {dimension_numbers = #tpu.dot_dimension_numbers<[1], [0], [0], [1], [0, 0, 1, 1], [], []>} : vector<56x150xf32>, vector<150x128xf32>, vector<56x128xf32> -> vector<56x128xf32>
    %c0_i32 = arith.constant 0 : i32
    %4 = arith.cmpi eq, %arg1, %c0_i32 : i32
    %5 = arith.extui %4 : i1 to i32
    %c0_i32_4 = arith.constant 0 : i32
    %6 = arith.cmpi ne, %5, %c0_i32_4 : i32
    scf.if %6 {
      %c0_8 = arith.constant 0 : index
      %c0_9 = arith.constant 0 : index
      %13 = vector.load %arg6[%c0_8, %c0_9] : memref<56x128xf32, #tpu.memory_space<vmem>>, vector<56x128xf32>
      tpu.vector_store %arg6[%c0_8, %c0_9], %3 {strides = array<i32>} : memref<56x128xf32, #tpu.memory_space<vmem>>, vector<56x128xf32>,
    } else {
    }
    %c0_i32_5 = arith.constant 0 : i32
    %7 = arith.cmpi sgt, %arg1, %c0_i32_5 : i32
    %8 = arith.extui %7 : i1 to i32
    %c0_i32_6 = arith.constant 0 : i32
    %9 = arith.cmpi ne, %8, %c0_i32_6 : i32
    scf.if %9 {
      %c0_8 = arith.constant 0 : index
      %c0_9 = arith.constant 0 : index
      %13 = vector.load %arg6[%c0_8, %c0_9] : memref<56x128xf32, #tpu.memory_space<vmem>>, vector<56x128xf32>
      %14 = arith.maximumf %13, %3 : vector<56x128xf32>
      %c0_10 = arith.constant 0 : index
      %c0_11 = arith.constant 0 : index
      %15 = vector.load %arg6[%c0_10, %c0_11] : memref<56x128xf32, #tpu.memory_space<vmem>>, vector<56x128xf32>
      tpu.vector_store %arg6[%c0_10, %c0_11], %14 {strides = array<i32>} : memref<56x128xf32, #tpu.memory_space<vmem>>, vector<56x128xf32>,
    } else {
    }
    %c3_i32 = arith.constant 3 : i32
    %10 = arith.cmpi eq, %arg1, %c3_i32 : i32
    %11 = arith.extui %10 : i1 to i32
    %c0_i32_7 = arith.constant 0 : i32
    %12 = arith.cmpi ne, %11, %c0_i32_7 : i32
    scf.if %12 {
      %c0_8 = arith.constant 0 : index
      %c0_9 = arith.constant 0 : index
      %13 = vector.load %arg6[%c0_8, %c0_9] : memref<56x128xf32, #tpu.memory_space<vmem>>, vector<56x128xf32>
      %c0_10 = arith.constant 0 : index
      %c0_11 = arith.constant 0 : index
      %14 = vector.load %arg4[%c0_10, %c0_11] : memref<1x128xf32, #tpu.memory_space<vmem>>, vector<1x128xf32>
      %15 = vector.broadcast %14 : vector<1x128xf32> to vector<56x128xf32>
      %16 = arith.addf %13, %15 : vector<56x128xf32>
      %cst_12 = arith.constant 0.000000e+00 : f32
      %17 = vector.broadcast %cst_12 : f32 to vector<56x128xf32>
      %18 = arith.maximumf %16, %17 : vector<56x128xf32>
      %c0_13 = arith.constant 0 : index
      %c0_14 = arith.constant 0 : index
      %19 = vector.load %arg5[%c0_13, %c0_14] : memref<56x128xf32, #tpu.memory_space<vmem>>, vector<56x128xf32>
      tpu.vector_store %arg5[%c0_13, %c0_14], %18 {strides = array<i32>} : memref<56x128xf32, #tpu.memory_space<vmem>>, vector<56x128xf32>,
    } else {
    }
    return
  }
  func.func @transform_0(%arg0: i32, %arg1: i32) -> (i32, i32, i32) {
    %c0_i32 = arith.constant 0 : i32
    %c0_i32_0 = arith.constant 0 : i32
    return %arg1, %arg0, %c0_i32 : i32, i32, i32
  }
  func.func @transform_1(%arg0: i32, %arg1: i32) -> (i32, i32) {
    %c0_i32 = arith.constant 0 : i32
    %c0_i32_0 = arith.constant 0 : i32
    %c0_i32_1 = arith.constant 0 : i32
    return %c0_i32, %c0_i32_0 : i32, i32
  }
  func.func @transform_2(%arg0: i32, %arg1: i32) -> (i32, i32) {
    %c0_i32 = arith.constant 0 : i32
    %c0_i32_0 = arith.constant 0 : i32
    %c0_i32_1 = arith.constant 0 : i32
    return %c0_i32, %c0_i32_0 : i32, i32
  }
  func.func @transform_3(%arg0: i32, %arg1: i32) -> (i32, i32) {
    %c0_i32 = arith.constant 0 : i32
    %c0_i32_0 = arith.constant 0 : i32
    return %arg0, %c0_i32 : i32, i32
  }
}

module attributes {stable_mosaic.version = 11 : i64} {
  func.func @_fc_stack_kernel(%arg0: i32, %arg1: memref<8x3200xf32, #tpu.memory_space<vmem>>, %arg2: memref<3200x128xf32, #tpu.memory_space<vmem>>, %arg3: memref<1x128xf32, #tpu.memory_space<vmem>>, %arg4: memref<128x128xf32, #tpu.memory_space<vmem>>, %arg5: memref<1x128xf32, #tpu.memory_space<vmem>>, %arg6: memref<128x128xf32, #tpu.memory_space<vmem>>, %arg7: memref<1x128xf32, #tpu.memory_space<vmem>>, %arg8: memref<8x128xf32, #tpu.memory_space<vmem>>) attributes {dimension_semantics = [#tpu.dimension_semantics<parallel>], iteration_bounds = array<i64: 1>, scalar_prefetch = 0 : i64, scratch_operands = 0 : i64, tpu.core_type = #tpu.core_type<tc>, window_params = [{transform_indices = @transform_0, window_bounds = array<i64: 8, 3200>}, {pipeline_mode = #tpu.pipeline_mode<synchronous>, transform_indices = @transform_1, window_bounds = array<i64: 3200, 128>}, {pipeline_mode = #tpu.pipeline_mode<synchronous>, transform_indices = @transform_2, window_bounds = array<i64: 1, 128>}, {pipeline_mode = #tpu.pipeline_mode<synchronous>, transform_indices = @transform_3, window_bounds = array<i64: 128, 128>}, {pipeline_mode = #tpu.pipeline_mode<synchronous>, transform_indices = @transform_4, window_bounds = array<i64: 1, 128>}, {pipeline_mode = #tpu.pipeline_mode<synchronous>, transform_indices = @transform_5, window_bounds = array<i64: 128, 128>}, {pipeline_mode = #tpu.pipeline_mode<synchronous>, transform_indices = @transform_6, window_bounds = array<i64: 1, 128>}, {transform_indices = @transform_7, window_bounds = array<i64: 8, 128>}]} {
    %c0 = arith.constant 0 : index
    %c0_0 = arith.constant 0 : index
    %0 = vector.load %arg1[%c0, %c0_0] : memref<8x3200xf32, #tpu.memory_space<vmem>>, vector<8x3200xf32>
    %c0_1 = arith.constant 0 : index
    %c0_2 = arith.constant 0 : index
    %1 = vector.load %arg2[%c0_1, %c0_2] : memref<3200x128xf32, #tpu.memory_space<vmem>>, vector<3200x128xf32>
    %cst = arith.constant dense<0.000000e+00> : vector<8x128xf32>
    %2 = tpu.matmul %0, %1, %cst {dimension_numbers = #tpu.dot_dimension_numbers<[1], [0], [0], [1], [0, 0, 1, 1], [], []>} : vector<8x3200xf32>, vector<3200x128xf32>, vector<8x128xf32> -> vector<8x128xf32>
    %c0_3 = arith.constant 0 : index
    %c0_4 = arith.constant 0 : index
    %3 = vector.load %arg3[%c0_3, %c0_4] : memref<1x128xf32, #tpu.memory_space<vmem>>, vector<1x128xf32>
    %4 = vector.broadcast %3 : vector<1x128xf32> to vector<8x128xf32>
    %5 = arith.addf %2, %4 : vector<8x128xf32>
    %cst_5 = arith.constant 0.000000e+00 : f32
    %6 = vector.broadcast %cst_5 : f32 to vector<8x128xf32>
    %7 = arith.maximumf %5, %6 : vector<8x128xf32>
    %c0_6 = arith.constant 0 : index
    %c0_7 = arith.constant 0 : index
    %8 = vector.load %arg4[%c0_6, %c0_7] : memref<128x128xf32, #tpu.memory_space<vmem>>, vector<128x128xf32>
    %cst_8 = arith.constant dense<0.000000e+00> : vector<8x128xf32>
    %9 = tpu.matmul %7, %8, %cst_8 {dimension_numbers = #tpu.dot_dimension_numbers<[1], [0], [0], [1], [0, 0, 1, 1], [], []>} : vector<8x128xf32>, vector<128x128xf32>, vector<8x128xf32> -> vector<8x128xf32>
    %c0_9 = arith.constant 0 : index
    %c0_10 = arith.constant 0 : index
    %10 = vector.load %arg5[%c0_9, %c0_10] : memref<1x128xf32, #tpu.memory_space<vmem>>, vector<1x128xf32>
    %11 = vector.broadcast %10 : vector<1x128xf32> to vector<8x128xf32>
    %12 = arith.addf %9, %11 : vector<8x128xf32>
    %cst_11 = arith.constant 0.000000e+00 : f32
    %13 = vector.broadcast %cst_11 : f32 to vector<8x128xf32>
    %14 = arith.maximumf %12, %13 : vector<8x128xf32>
    %c0_12 = arith.constant 0 : index
    %c0_13 = arith.constant 0 : index
    %15 = vector.load %arg6[%c0_12, %c0_13] : memref<128x128xf32, #tpu.memory_space<vmem>>, vector<128x128xf32>
    %cst_14 = arith.constant dense<0.000000e+00> : vector<8x128xf32>
    %16 = tpu.matmul %14, %15, %cst_14 {dimension_numbers = #tpu.dot_dimension_numbers<[1], [0], [0], [1], [0, 0, 1, 1], [], []>} : vector<8x128xf32>, vector<128x128xf32>, vector<8x128xf32> -> vector<8x128xf32>
    %c0_15 = arith.constant 0 : index
    %c0_16 = arith.constant 0 : index
    %17 = vector.load %arg7[%c0_15, %c0_16] : memref<1x128xf32, #tpu.memory_space<vmem>>, vector<1x128xf32>
    %18 = vector.broadcast %17 : vector<1x128xf32> to vector<8x128xf32>
    %19 = arith.addf %16, %18 : vector<8x128xf32>
    %c0_17 = arith.constant 0 : index
    %c0_18 = arith.constant 0 : index
    %20 = vector.load %arg8[%c0_17, %c0_18] : memref<8x128xf32, #tpu.memory_space<vmem>>, vector<8x128xf32>
    tpu.vector_store %arg8[%c0_17, %c0_18], %19 {strides = array<i32>} : memref<8x128xf32, #tpu.memory_space<vmem>>, vector<8x128xf32>,
    return
  }
  func.func @transform_0(%arg0: i32) -> (i32, i32) {
    %c0_i32 = arith.constant 0 : i32
    %c0_i32_0 = arith.constant 0 : i32
    return %arg0, %c0_i32 : i32, i32
  }
  func.func @transform_1(%arg0: i32) -> (i32, i32) {
    %c0_i32 = arith.constant 0 : i32
    %c0_i32_0 = arith.constant 0 : i32
    %c0_i32_1 = arith.constant 0 : i32
    return %c0_i32, %c0_i32_0 : i32, i32
  }
  func.func @transform_2(%arg0: i32) -> (i32, i32) {
    %c0_i32 = arith.constant 0 : i32
    %c0_i32_0 = arith.constant 0 : i32
    %c0_i32_1 = arith.constant 0 : i32
    return %c0_i32, %c0_i32_0 : i32, i32
  }
  func.func @transform_3(%arg0: i32) -> (i32, i32) {
    %c0_i32 = arith.constant 0 : i32
    %c0_i32_0 = arith.constant 0 : i32
    %c0_i32_1 = arith.constant 0 : i32
    return %c0_i32, %c0_i32_0 : i32, i32
  }
  func.func @transform_4(%arg0: i32) -> (i32, i32) {
    %c0_i32 = arith.constant 0 : i32
    %c0_i32_0 = arith.constant 0 : i32
    %c0_i32_1 = arith.constant 0 : i32
    return %c0_i32, %c0_i32_0 : i32, i32
  }
  func.func @transform_5(%arg0: i32) -> (i32, i32) {
    %c0_i32 = arith.constant 0 : i32
    %c0_i32_0 = arith.constant 0 : i32
    %c0_i32_1 = arith.constant 0 : i32
    return %c0_i32, %c0_i32_0 : i32, i32
  }
  func.func @transform_6(%arg0: i32) -> (i32, i32) {
    %c0_i32 = arith.constant 0 : i32
    %c0_i32_0 = arith.constant 0 : i32
    %c0_i32_1 = arith.constant 0 : i32
    return %c0_i32, %c0_i32_0 : i32, i32
  }
  func.func @transform_7(%arg0: i32) -> (i32, i32) {
    %c0_i32 = arith.constant 0 : i32
    %c0_i32_0 = arith.constant 0 : i32
    return %arg0, %c0_i32 : i32, i32
  }
}

</mosaic_0001>

<llo_original>
// kernel: net_forward.3
$region0: #{net_forward.3}
  #allocation0 [shape = 'u32[]', space=smem, size = 0x4, offset = 0x4, fixed_abs, tag = 'smem constant byte address 0x4 - core index']
  #allocation1 [shape = 'u32[144,128]{1,0:T(1,128)}', space=vmem, size = 0x12000, scoped, tag = 'internal scratch']
  #allocation2 [shape = 'f32[256,128]{1,0:T(8,128)}', space=vmem, size = 0x20000, scoped, tag = 'scratch operand']
  %s0 = inlined_call_operand.vmem [shape: f32[4,512,75], index: 0, kind: input, shape index: {}]
  %s1 = inlined_call_operand.vmem [shape: f32[75,128], index: 1, kind: input, shape index: {}]
  %s2 = inlined_call_operand.vmem [shape: f32[1,128], index: 2, kind: input, shape index: {}]
  %s3 = inlined_call_operand.vmem [shape: f32[512,128], index: 3, kind: output, shape index: {}]
  %s4 = sld [smem:[#allocation0]]
  $region57: #{net_forward.3} parent=0
    _
  %s6 = ssub.s32 1, %s4
  %s7 = scalar_select 0, %s6, %s4
  loop: start=0, step=1, limit=10
  $region2: #{net_forward.3} parent=0 // loop_pre_header
    _
  $region3: #{net_forward.3} parent=0 // loop_header
    %s9 = sphi 0, %s13
    %p10 = scmp.ge.s32.totalorder %s9, 10
    %s16 = sphi 0, %s28
    %s17 = sphi 0, %s24
    %s18 = sphi 0, %s16
    %s19 = sphi 0, %s17
    %s20 = sphi 0, %s18
    %s21 = sphi 0, %s19
    %s33 = sphi 0, %s35
    %s36 = sphi 0, %s33
    %s37 = sphi 0, %s36
    %s53 = sphi 0, %s37
    %s57 = sphi 0, %s57
    %s59 = sphi 0, %s57
    %s60 = sphi 0, %s59
    %s74 = sphi 0, %s60
    %s78 = sphi 0, %s78
    %s80 = sphi 0, %s78
    %s81 = sphi 0, %s80
    %s95 = sphi 0, %s81
    %s101 = sphi 0, %s103
    %s104 = sphi 0, %s101
    %s105 = sphi 0, %s104
    %s121 = sphi 0, %s105
  $region4: #{net_forward.3} parent=0 // loop_header_branch
    %12 = sbr.rel (%p10) target = $region8
  $region5: #{net_forward.3} parent=0 // loop_body
    %s14 = ssub.s32 %s9, 1
    %s15 = ssub.s32 %s9, 2
    %s22 = sadd.s32 1, %s17
    %p23 = scmp.ge.s32.totalorder %s22, 4
    %s24 = scalar_select %p23, 0, %s22
    %s25 = sadd.s32 1, %s16
    %s26 = scalar_select %p23, %s25, %s16
    %p27 = scmp.ge.s32.totalorder %s26, 2
    %s28 = scalar_select %p27, 0, %s26
    %s29 = ssub.s32 %s17, %s24
    %s30 = ssub.s32 %s16, %s28
    %s31 = sor.u32 %s29, %s30
    %p32 = scmp.eq.s32.totalorder %s31, 0
    %s34 = sadd.s32 %s33, 1
    %s35 = scalar_select %p32, %s33, %s34
    %p38 = pneg %p32
    %p39 = scmp.eq.s32.totalorder %s9, 7
    %p40 = por %p38, %p39
    %p41 = scmp.ne.s32.totalorder %s33, %s36
    %p42 = scmp.eq.s32.totalorder %s9, 0
    %p43 = por %p41, %p42
    %p44 = scmp.ne.s32.totalorder %s33, %s36
    %p45 = scmp.eq.s32.totalorder %s14, 7
    %p46 = por %p44, %p45
    %p47 = scmp.ne.s32.totalorder %s36, %s37
    %p48 = scmp.eq.s32.totalorder %s14, 0
    %p49 = por %p47, %p48
    %p50 = scmp.ne.s32.totalorder %s36, %s37
    %p51 = scmp.eq.s32.totalorder %s15, 7
    %p52 = por %p50, %p51
    %p54 = scmp.ne.s32.totalorder %s37, %s53
    %p55 = scmp.eq.s32.totalorder %s15, 0
    %p56 = por %p54, %p55
    %s58 = sadd.s32 %s57, 1
    %p61 = scmp.eq.s32.totalorder %s9, 7
    %p62 = scmp.ne.s32.totalorder %s57, %s59
    %p63 = scmp.eq.s32.totalorder %s9, 0
    %p64 = por %p62, %p63
    %p65 = scmp.ne.s32.totalorder %s57, %s59
    %p66 = scmp.eq.s32.totalorder %s14, 7
    %p67 = por %p65, %p66
    %p68 = scmp.ne.s32.totalorder %s59, %s60
    %p69 = scmp.eq.s32.totalorder %s14, 0
    %p70 = por %p68, %p69
    %p71 = scmp.ne.s32.totalorder %s59, %s60
    %p72 = scmp.eq.s32.totalorder %s15, 7
    %p73 = por %p71, %p72
    %p75 = scmp.ne.s32.totalorder %s60, %s74
    %p76 = scmp.eq.s32.totalorder %s15, 0
    %p77 = por %p75, %p76
    %s79 = sadd.s32 %s78, 1
    %p82 = scmp.eq.s32.totalorder %s9, 7
    %p83 = scmp.ne.s32.totalorder %s78, %s80
    %p84 = scmp.eq.s32.totalorder %s9, 0
    %p85 = por %p83, %p84
    %p86 = scmp.ne.s32.totalorder %s78, %s80
    %p87 = scmp.eq.s32.totalorder %s14, 7
    %p88 = por %p86, %p87
    %p89 = scmp.ne.s32.totalorder %s80, %s81
    %p90 = scmp.eq.s32.totalorder %s14, 0
    %p91 = por %p89, %p90
    %p92 = scmp.ne.s32.totalorder %s80, %s81
    %p93 = scmp.eq.s32.totalorder %s15, 7
    %p94 = por %p92, %p93
    %p96 = scmp.ne.s32.totalorder %s81, %s95
    %p97 = scmp.eq.s32.totalorder %s15, 0
    %p98 = por %p96, %p97
    %s99 = ssub.s32 %s16, %s28
    %p100 = scmp.eq.s32.totalorder %s99, 0
    %s102 = sadd.s32 %s101, 1
    %s103 = scalar_select %p100, %s101, %s102
    %p106 = pneg %p100
    %p107 = scmp.eq.s32.totalorder %s9, 7
    %p108 = por %p106, %p107
    %p109 = scmp.ne.s32.totalorder %s101, %s104
    %p110 = scmp.eq.s32.totalorder %s9, 0
    %p111 = por %p109, %p110
    %p112 = scmp.ne.s32.totalorder %s101, %s104
    %p113 = scmp.eq.s32.totalorder %s14, 7
    %p114 = por %p112, %p113
    %p115 = scmp.ne.s32.totalorder %s104, %s105
    %p116 = scmp.eq.s32.totalorder %s14, 0
    %p117 = por %p115, %p116
    %p118 = scmp.ne.s32.totalorder %s104, %s105
    %p119 = scmp.eq.s32.totalorder %s15, 7
    %p120 = por %p118, %p119
    %p122 = scmp.ne.s32.totalorder %s105, %s121
    %p123 = scmp.eq.s32.totalorder %s15, 0
    %p124 = por %p122, %p123
    %p125 = scmp.le.s32.totalorder 1, %s9
    %p126 = scmp.lt.s32.totalorder %s9, 9
    %p127 = pnand %p125, %p126
    %p128 = pneg %p127
    // Predicated region
    $region9: #{net_forward.3} parent=5 // pred_check
      _
    $region10: #{net_forward.3} parent=5 // pred_check_branch
      %130 = sbr.rel (%p127) target = $region12
    $region11: #{net_forward.3} parent=5 // pred_region
      %s131 = ssub.s32 %s9, 1
      // Predicated region
      $region13: #{net_forward.3} parent=11 // pred_check
        %p132 = pneg %p70
      $region14: #{net_forward.3} parent=11 // pred_check_branch
        %134 = sbr.rel (%p132) target = $region16
      $region15: #{net_forward.3} parent=11 // pred_region
        _
      $region16: #{net_forward.3} parent=11 // pred_fallthru
        _
      // Predicated region
      $region17: #{net_forward.3} parent=11 // pred_check
        %p135 = pneg %p91
      $region18: #{net_forward.3} parent=11 // pred_check_branch
        %137 = sbr.rel (%p135) target = $region20
      $region19: #{net_forward.3} parent=11 // pred_region
        _
      $region20: #{net_forward.3} parent=11 // pred_fallthru
        _
    $region12: #{net_forward.3} parent=5 // pred_fallthru
      _
    %p138 = scmp.lt.s32.totalorder %s9, 8
    // Predicated region
    $region21: #{net_forward.3} parent=5 // pred_check
      %p139 = pneg %p138
    $region22: #{net_forward.3} parent=5 // pred_check_branch
      %141 = sbr.rel (%p139) target = $region24
    $region23: #{net_forward.3} parent=5 // pred_region
      // Predicated region
      $region25: #{net_forward.3} parent=23 // pred_check
        %p142 = pneg %p43
      $region26: #{net_forward.3} parent=23 // pred_check_branch
        %144 = sbr.rel (%p142) target = $region28
      $region27: #{net_forward.3} parent=23 // pred_region
        %s145 = smul.u32 32, %s16
        %p146 = scmp.lt.s32.totalorder %s17, 3
        %s147 = scalar_select %p146, %s17, 3
        %p148 = scmp.lt.s32.totalorder %s145, 63
        %s149 = scalar_select %p148, %s145, 63
        %s150 = smul.addr %s147, 64
        %s151 = sadd.s32 %s149, %s150
        %s152 = smul.addr %s151, 8
        %s153 = scalar_lea.vmem %s0, %s152
        %s154 = smul.u32 32, %s16
      $region28: #{net_forward.3} parent=23 // pred_fallthru
        _
    $region24: #{net_forward.3} parent=5 // pred_fallthru
      _
    %p155 = scmp.le.s32.totalorder 1, %s9
    %p156 = scmp.lt.s32.totalorder %s9, 9
    %p157 = pnand %p155, %p156
    %p158 = pneg %p157
    // Predicated region
    $region29: #{net_forward.3} parent=5 // pred_check
      _
    $region30: #{net_forward.3} parent=5 // pred_check_branch
      %160 = sbr.rel (%p157) target = $region32
    $region31: #{net_forward.3} parent=5 // pred_region
      %s161 = ssub.s32 %s9, 1
      %s162 = smul.u32 32, %s18
      %p163 = scmp.lt.s32.totalorder %s19, 3
      %s164 = scalar_select %p163, %s19, 3
      %p165 = scmp.lt.s32.totalorder %s162, 63
      %s166 = scalar_select %p165, %s162, 63
      %s167 = smul.addr %s164, 64
      %s168 = sadd.s32 %s166, %s167
      %s169 = smul.addr %s168, 8
      %s170 = scalar_lea.vmem %s0, %s169
      %p171 = pneg %p49
      %p172 = pneg %p46
      %p173 = pneg %p70
      %p174 = pneg %p67
      %p175 = pneg %p91
      %p176 = pneg %p88
      %p177 = pneg %p117
      %p178 = pneg %p114
      %s179 = smul.u32 32, %s18
      %p180 = scmp.lt.s32.totalorder %s179, 63
      %s181 = scalar_select %p180, %s179, 63
      %s182 = smul.addr %s181, 8
      %s183 = scalar_lea.vmem %s3, %s182
      %s184 = smul.u32 32, %s18
      %p185 = scmp.lt.s32.totalorder %s19, 3
      %s186 = scalar_select %p185, %s19, 3
      %p187 = scmp.lt.s32.totalorder %s184, 63
      %s188 = scalar_select %p187, %s184, 63
      %s189 = smul.addr %s186, 64
      %s190 = sadd.s32 %s188, %s189
      %s191 = smul.addr %s190, 8
      %s192 = scalar_lea.vmem %s0, %s191
      %s193 = smul.u32 32, %s18
      %s194 = smul.u32 32, %s18
      %p195 = scmp.lt.s32.totalorder %s194, 63
      %s196 = scalar_select %p195, %s194, 63
      %s197 = smul.addr %s196, 8
      %s198 = scalar_lea.vmem %s3, %s197
      %s199 = smul.u32 32, %s18
      %v200 = vld [vmem:[%s192] sm:$0xff]
      %v201 = vld [vmem:[%s192 + $0x8] sm:$0xff]
      %v202 = vld [vmem:[%s192 + $0x10] sm:$0xff]
      %v203 = vld [vmem:[%s192 + $0x18] sm:$0xff]
      %v204 = vld [vmem:[%s192 + $0x20] sm:$0xff]
      %v205 = vld [vmem:[%s192 + $0x28] sm:$0xff]
      %v206 = vld [vmem:[%s192 + $0x30] sm:$0xff]
      %v207 = vld [vmem:[%s192 + $0x38] sm:$0xff]
      %v208 = vld [vmem:[%s192 + $0x40] sm:$0xff]
      %v209 = vld [vmem:[%s192 + $0x48] sm:$0xff]
      %v210 = vld [vmem:[%s192 + $0x50] sm:$0xff]
      %v211 = vld [vmem:[%s192 + $0x58] sm:$0xff]
      %v212 = vld [vmem:[%s192 + $0x60] sm:$0xff]
      %v213 = vld [vmem:[%s192 + $0x68] sm:$0xff]
      %v214 = vld [vmem:[%s192 + $0x70] sm:$0xff]
      %v215 = vld [vmem:[%s192 + $0x78] sm:$0xff]
      %v216 = vld [vmem:[%s192 + $0x80] sm:$0xff]
      %v217 = vld [vmem:[%s192 + $0x88] sm:$0xff]
      %v218 = vld [vmem:[%s192 + $0x90] sm:$0xff]
      %v219 = vld [vmem:[%s192 + $0x98] sm:$0xff]
      %v220 = vld [vmem:[%s192 + $0xa0] sm:$0xff]
      %v221 = vld [vmem:[%s192 + $0xa8] sm:$0xff]
      %v222 = vld [vmem:[%s192 + $0xb0] sm:$0xff]
      %v223 = vld [vmem:[%s192 + $0xb8] sm:$0xff]
      %v224 = vld [vmem:[%s192 + $0xc0] sm:$0xff]
      %v225 = vld [vmem:[%s192 + $0xc8] sm:$0xff]
      %v226 = vld [vmem:[%s192 + $0xd0] sm:$0xff]
      %v227 = vld [vmem:[%s192 + $0xd8] sm:$0xff]
      %v228 = vld [vmem:[%s192 + $0xe0] sm:$0xff]
      %v229 = vld [vmem:[%s192 + $0xe8] sm:$0xff]
      %v230 = vld [vmem:[%s192 + $0xf0] sm:$0xff]
      %v231 = vld [vmem:[%s192 + $0xf8] sm:$0xff]
      %v232 = vld [vmem:[%s1] sm:$0xff]
      %v233 = vld [vmem:[%s1 + $0x8] sm:$0xff]
      %v234 = vld [vmem:[%s1 + $0x10] sm:$0xff]
      %v235 = vld [vmem:[%s1 + $0x18] sm:$0xff]
      %v236 = vld [vmem:[%s1 + $0x20] sm:$0xff]
      %v237 = vld [vmem:[%s1 + $0x28] sm:$0xff]
      %v238 = vld [vmem:[%s1 + $0x30] sm:$0xff]
      %v239 = vld [vmem:[%s1 + $0x38] sm:$0xff]
      %v240 = vld [vmem:[%s1 + $0x40] sm:$0xff]
      %v241 = vld [vmem:[%s1 + $0x48] sm:$0x7]
      %vm242 = vcmask 613376
      %v244 = vsel %vm242, %v200, 0
      %v247 = vsel %vm242, %v201, 0
      %v250 = vsel %vm242, %v202, 0
      %v253 = vsel %vm242, %v203, 0
      %v256 = vsel %vm242, %v204, 0
      %v259 = vsel %vm242, %v205, 0
      %v262 = vsel %vm242, %v206, 0
      %v265 = vsel %vm242, %v207, 0
      %v268 = vsel %vm242, %v208, 0
      %v271 = vsel %vm242, %v209, 0
      %v274 = vsel %vm242, %v210, 0
      %v277 = vsel %vm242, %v211, 0
      %v280 = vsel %vm242, %v212, 0
      %v283 = vsel %vm242, %v213, 0
      %v286 = vsel %vm242, %v214, 0
      %v289 = vsel %vm242, %v215, 0
      %v292 = vsel %vm242, %v216, 0
      %v295 = vsel %vm242, %v217, 0
      %v298 = vsel %vm242, %v218, 0
      %v301 = vsel %vm242, %v219, 0
      %v304 = vsel %vm242, %v220, 0
      %v307 = vsel %vm242, %v221, 0
      %v310 = vsel %vm242, %v222, 0
      %v313 = vsel %vm242, %v223, 0
      %v316 = vsel %vm242, %v224, 0
      %v319 = vsel %vm242, %v225, 0
      %v322 = vsel %vm242, %v226, 0
      %v325 = vsel %vm242, %v227, 0
      %v328 = vsel %vm242, %v228, 0
      %v331 = vsel %vm242, %v229, 0
      %v334 = vsel %vm242, %v230, 0
      %v337 = vsel %vm242, %v231, 0
      %vm339 = vcmask 1042432
      %v341 = vsel %vm339, %v241, 0
      %343 = vmatprep.subr.mxu0 0.0
      %344 = vmatpush1.msra.mxu0 %v232
      %345 = vmatprep.subr.mxu0 0.0
      %346 = vmatpush1.msra.mxu0 %v233
      %347 = vmatprep.subr.mxu0 0.0
      %348 = vmatpush1.msra.mxu0 %v234
      %349 = vmatprep.subr.mxu0 0.0
      %350 = vmatpush1.msra.mxu0 %v235
      %351 = vmatprep.subr.mxu0 0.0
      %352 = vmatpush1.msra.mxu0 %v236
      %353 = vmatprep.subr.mxu0 0.0
      %354 = vmatpush1.msra.mxu0 %v237
      %355 = vmatprep.subr.mxu0 0.0
      %356 = vmatpush1.msra.mxu0 %v238
      %357 = vmatprep.subr.mxu0 0.0
      %358 = vmatpush1.msra.mxu0 %v239
      %359 = vmatprep.subr.mxu0 0.0
      %360 = vmatpush1.msra.mxu0 %v240
      %361 = vmatprep.subr.mxu0 0.0
      %362 = vmatpush1.msra.mxu0 %v341
      %363 = vmatprep.subr.mxu0 0.0
      %364 = vmatpush1.msra.mxu0 0.0
      %365 = vmatprep.subr.mxu0 0.0
      %366 = vmatpush1.msra.mxu0 0.0
      %367 = vmatprep.subr.mxu0 0.0
      %368 = vmatpush1.msra.mxu0 0.0
      %369 = vmatprep.subr.mxu0 0.0
      %370 = vmatpush1.msra.mxu0 0.0
      %371 = vmatprep.subr.mxu0 0.0
      %372 = vmatpush1.msra.mxu0 0.0
      %373 = vmatprep.subr.mxu0 0.0
      %374 = vmatpush1.msra.mxu0 0.0
      %375 = vmatprep.subr.mxu0 0.0
      %376 = vmatpush1.msra.mxu0 0.0
      %377 = vmatprep.subr.mxu0 0.0
      %378 = vmatpush1.msra.mxu0 0.0
      %379 = vmatprep.subr.mxu0 0.0
      %380 = vmatpush1.msra.mxu0 0.0
      %381 = vmatprep.subr.mxu0 0.0
      %382 = vmatpush1.msra.mxu0 0.0
      %383 = vmatprep.subr.mxu0 0.0
      %384 = vmatpush1.msra.mxu0 0.0
      %385 = vmatprep.subr.mxu0 0.0
      %386 = vmatpush1.msra.mxu0 0.0
      %387 = vmatprep.subr.mxu0 0.0
      %388 = vmatpush1.msra.mxu0 0.0
      %389 = vmatprep.subr.mxu0 0.0
      %390 = vmatpush1.msra.mxu0 0.0
      %391 = vmatprep.subr.mxu0 0.0
      %392 = vmatpush1.msra.mxu0 0.0
      %393 = vmatprep.subr.mxu0 0.0
      %394 = vmatpush1.msra.mxu0 0.0
      %395 = vmatprep.subr.mxu0 0.0
      %396 = vmatpush1.msra.mxu0 0.0
      %397 = vmatprep.subr.mxu0 0.0
      %398 = vmatpush1.msra.mxu0 0.0
      %399 = vmatprep.subr.mxu0 0.0
      %400 = vmatpush1.msra.mxu0 0.0
      %401 = vmatprep.subr.mxu0 0.0
      %402 = vmatpush1.msra.mxu0 0.0
      %403 = vmatprep.subr.mxu0 0.0
      %404 = vmatpush1.msra.mxu0 0.0
      %405 = vmatprep.subr.mxu0 0.0
      %406 = vmatpush1.msra.mxu0 0.0
      %407 = vmatprep.mubr.f32.mxu0 0.0
      %408 = vmatmul.mubr.f32.gmra.mrb[0].mxu0 %v244
      %v409 = vpop.f32.mrb[0].mxu0
      %v410 = vadd.f32 0.0, %v409
      %v411 = vpop.f32.mrb[0].mxu0
      %412 = vmatprep.mubr.f32.mxu0 0.0
      %413 = vmatmul.mubr.f32.gmra.mrb[0].mxu0 %v247
      %v414 = vpop.f32.mrb[0].mxu0
      %v415 = vadd.f32 0.0, %v414
      %v416 = vpop.f32.mrb[0].mxu0
      %417 = vmatprep.mubr.f32.mxu0 0.0
      %418 = vmatmul.mubr.f32.gmra.mrb[0].mxu0 %v250
      %v419 = vpop.f32.mrb[0].mxu0
      %v420 = vadd.f32 0.0, %v419
      %v421 = vpop.f32.mrb[0].mxu0
      %422 = vmatprep.mubr.f32.mxu0 0.0
      %423 = vmatmul.mubr.f32.gmra.mrb[0].mxu0 %v253
      %v424 = vpop.f32.mrb[0].mxu0
      %v425 = vadd.f32 0.0, %v424
      %v426 = vpop.f32.mrb[0].mxu0
      %427 = vmatprep.mubr.f32.mxu0 0.0
      %428 = vmatmul.mubr.f32.gmra.mrb[0].mxu0 %v256
      %v429 = vpop.f32.mrb[0].mxu0
      %v430 = vadd.f32 0.0, %v429
      %v431 = vpop.f32.mrb[0].mxu0
      %432 = vmatprep.mubr.f32.mxu0 0.0
      %433 = vmatmul.mubr.f32.gmra.mrb[0].mxu0 %v259
      %v434 = vpop.f32.mrb[0].mxu0
      %v435 = vadd.f32 0.0, %v434
      %v436 = vpop.f32.mrb[0].mxu0
      %437 = vmatprep.mubr.f32.mxu0 0.0
      %438 = vmatmul.mubr.f32.gmra.mrb[0].mxu0 %v262
      %v439 = vpop.f32.mrb[0].mxu0
      %v440 = vadd.f32 0.0, %v439
      %v441 = vpop.f32.mrb[0].mxu0
      %442 = vmatprep.mubr.f32.mxu0 0.0
      %443 = vmatmul.mubr.f32.gmra.mrb[0].mxu0 %v265
      %v444 = vpop.f32.mrb[0].mxu0
      %v445 = vadd.f32 0.0, %v444
      %v446 = vpop.f32.mrb[0].mxu0
      %447 = vmatprep.mubr.f32.mxu0 0.0
      %448 = vmatmul.mubr.f32.gmra.mrb[0].mxu0 %v268
      %v449 = vpop.f32.mrb[0].mxu0
      %v450 = vadd.f32 0.0, %v449
      %v451 = vpop.f32.mrb[0].mxu0
      %452 = vmatprep.mubr.f32.mxu0 0.0
      %453 = vmatmul.mubr.f32.gmra.mrb[0].mxu0 %v271
      %v454 = vpop.f32.mrb[0].mxu0
      %v455 = vadd.f32 0.0, %v454
      %v456 = vpop.f32.mrb[0].mxu0
      %457 = vmatprep.mubr.f32.mxu0 0.0
      %458 = vmatmul.mubr.f32.gmra.mrb[0].mxu0 %v274
      %v459 = vpop.f32.mrb[0].mxu0
      %v460 = vadd.f32 0.0, %v459
      %v461 = vpop.f32.mrb[0].mxu0
      %462 = vmatprep.mubr.f32.mxu0 0.0
      %463 = vmatmul.mubr.f32.gmra.mrb[0].mxu0 %v277
      %v464 = vpop.f32.mrb[0].mxu0
      %v465 = vadd.f32 0.0, %v464
      %v466 = vpop.f32.mrb[0].mxu0
      %467 = vmatprep.mubr.f32.mxu0 0.0
      %468 = vmatmul.mubr.f32.gmra.mrb[0].mxu0 %v280
      %v469 = vpop.f32.mrb[0].mxu0
      %v470 = vadd.f32 0.0, %v469
      %v471 = vpop.f32.mrb[0].mxu0
      %472 = vmatprep.mubr.f32.mxu0 0.0
      %473 = vmatmul.mubr.f32.gmra.mrb[0].mxu0 %v283
      %v474 = vpop.f32.mrb[0].mxu0
      %v475 = vadd.f32 0.0, %v474
      %v476 = vpop.f32.mrb[0].mxu0
      %477 = vmatprep.mubr.f32.mxu0 0.0
      %478 = vmatmul.mubr.f32.gmra.mrb[0].mxu0 %v286
      %v479 = vpop.f32.mrb[0].mxu0
      %v480 = vadd.f32 0.0, %v479
      %v481 = vpop.f32.mrb[0].mxu0
      %482 = vmatprep.mubr.f32.mxu0 0.0
      %483 = vmatmul.mubr.f32.gmra.mrb[0].mxu0 %v289
      %v484 = vpop.f32.mrb[0].mxu0
      %v485 = vadd.f32 0.0, %v484
      %v486 = vpop.f32.mrb[0].mxu0
      %487 = vmatprep.mubr.f32.mxu0 0.0
      %488 = vmatmul.mubr.f32.gmra.mrb[0].mxu0 %v292
      %v489 = vpop.f32.mrb[0].mxu0
      %v490 = vadd.f32 0.0, %v489
      %v491 = vpop.f32.mrb[0].mxu0
      %492 = vmatprep.mubr.f32.mxu0 0.0
      %493 = vmatmul.mubr.f32.gmra.mrb[0].mxu0 %v295
      %v494 = vpop.f32.mrb[0].mxu0
      %v495 = vadd.f32 0.0, %v494
      %v496 = vpop.f32.mrb[0].mxu0
      %497 = vmatprep.mubr.f32.mxu0 0.0
      %498 = vmatmul.mubr.f32.gmra.mrb[0].mxu0 %v298
      %v499 = vpop.f32.mrb[0].mxu0
      %v500 = vadd.f32 0.0, %v499
      %v501 = vpop.f32.mrb[0].mxu0
      %502 = vmatprep.mubr.f32.mxu0 0.0
      %503 = vmatmul.mubr.f32.gmra.mrb[0].mxu0 %v301
      %v504 = vpop.f32.mrb[0].mxu0
      %v505 = vadd.f32 0.0, %v504
      %v506 = vpop.f32.mrb[0].mxu0
      %507 = vmatprep.mubr.f32.mxu0 0.0
      %508 = vmatmul.mubr.f32.gmra.mrb[0].mxu0 %v304
      %v509 = vpop.f32.mrb[0].mxu0
      %v510 = vadd.f32 0.0, %v509
      %v511 = vpop.f32.mrb[0].mxu0
      %512 = vmatprep.mubr.f32.mxu0 0.0
      %513 = vmatmul.mubr.f32.gmra.mrb[0].mxu0 %v307
      %v514 = vpop.f32.mrb[0].mxu0
      %v515 = vadd.f32 0.0, %v514
      %v516 = vpop.f32.mrb[0].mxu0
      %517 = vmatprep.mubr.f32.mxu0 0.0
      %518 = vmatmul.mubr.f32.gmra.mrb[0].mxu0 %v310
      %v519 = vpop.f32.mrb[0].mxu0
      %v520 = vadd.f32 0.0, %v519
      %v521 = vpop.f32.mrb[0].mxu0
      %522 = vmatprep.mubr.f32.mxu0 0.0
      %523 = vmatmul.mubr.f32.gmra.mrb[0].mxu0 %v313
      %v524 = vpop.f32.mrb[0].mxu0
      %v525 = vadd.f32 0.0, %v524
      %v526 = vpop.f32.mrb[0].mxu0
      %527 = vmatprep.mubr.f32.mxu0 0.0
      %528 = vmatmul.mubr.f32.gmra.mrb[0].mxu0 %v316
      %v529 = vpop.f32.mrb[0].mxu0
      %v530 = vadd.f32 0.0, %v529
      %v531 = vpop.f32.mrb[0].mxu0
      %532 = vmatprep.mubr.f32.mxu0 0.0
      %533 = vmatmul.mubr.f32.gmra.mrb[0].mxu0 %v319
      %v534 = vpop.f32.mrb[0].mxu0
      %v535 = vadd.f32 0.0, %v534
      %v536 = vpop.f32.mrb[0].mxu0
      %537 = vmatprep.mubr.f32.mxu0 0.0
      %538 = vmatmul.mubr.f32.gmra.mrb[0].mxu0 %v322
      %v539 = vpop.f32.mrb[0].mxu0
      %v540 = vadd.f32 0.0, %v539
      %v541 = vpop.f32.mrb[0].mxu0
      %542 = vmatprep.mubr.f32.mxu0 0.0
      %543 = vmatmul.mubr.f32.gmra.mrb[0].mxu0 %v325
      %v544 = vpop.f32.mrb[0].mxu0
      %v545 = vadd.f32 0.0, %v544
      %v546 = vpop.f32.mrb[0].mxu0
      %547 = vmatprep.mubr.f32.mxu0 0.0
      %548 = vmatmul.mubr.f32.gmra.mrb[0].mxu0 %v328
      %v549 = vpop.f32.mrb[0].mxu0
      %v550 = vadd.f32 0.0, %v549
      %v551 = vpop.f32.mrb[0].mxu0
      %552 = vmatprep.mubr.f32.mxu0 0.0
      %553 = vmatmul.mubr.f32.gmra.mrb[0].mxu0 %v331
      %v554 = vpop.f32.mrb[0].mxu0
      %v555 = vadd.f32 0.0, %v554
      %v556 = vpop.f32.mrb[0].mxu0
      %557 = vmatprep.mubr.f32.mxu0 0.0
      %558 = vmatmul.mubr.f32.gmra.mrb[0].mxu0 %v334
      %v559 = vpop.f32.mrb[0].mxu0
      %v560 = vadd.f32 0.0, %v559
      %v561 = vpop.f32.mrb[0].mxu0
      %562 = vmatprep.mubr.f32.mxu0 0.0
      %563 = vmatmul.mubr.f32.gmra.mrb[0].mxu0 %v337
      %v564 = vpop.f32.mrb[0].mxu0
      %v565 = vadd.f32 0.0, %v564
      %v566 = vpop.f32.mrb[0].mxu0
      %567 = vdwg.mxu0
      %p568 = scmp.eq.s32.totalorder %s19, 0
      // Predicated region
      $region33: #{net_forward.3} parent=31 // pred_check
        %p569 = pneg %p568
      $region34: #{net_forward.3} parent=31 // pred_check_branch
        %571 = sbr.rel (%p569) target = $region36
      $region35: #{net_forward.3} parent=31 // pred_region
        %572 = vst [vmem:[#allocation2] sm:$0xff] %v410
        %573 = vst [vmem:[#allocation2 + $0x8] sm:$0xff] %v415
        %574 = vst [vmem:[#allocation2 + $0x10] sm:$0xff] %v420
        %575 = vst [vmem:[#allocation2 + $0x18] sm:$0xff] %v425
        %576 = vst [vmem:[#allocation2 + $0x20] sm:$0xff] %v430
        %577 = vst [vmem:[#allocation2 + $0x28] sm:$0xff] %v435
        %578 = vst [vmem:[#allocation2 + $0x30] sm:$0xff] %v440
        %579 = vst [vmem:[#allocation2 + $0x38] sm:$0xff] %v445
        %580 = vst [vmem:[#allocation2 + $0x40] sm:$0xff] %v450
        %581 = vst [vmem:[#allocation2 + $0x48] sm:$0xff] %v455
        %582 = vst [vmem:[#allocation2 + $0x50] sm:$0xff] %v460
        %583 = vst [vmem:[#allocation2 + $0x58] sm:$0xff] %v465
        %584 = vst [vmem:[#allocation2 + $0x60] sm:$0xff] %v470
        %585 = vst [vmem:[#allocation2 + $0x68] sm:$0xff] %v475
        %586 = vst [vmem:[#allocation2 + $0x70] sm:$0xff] %v480
        %587 = vst [vmem:[#allocation2 + $0x78] sm:$0xff] %v485
        %588 = vst [vmem:[#allocation2 + $0x80] sm:$0xff] %v490
        %589 = vst [vmem:[#allocation2 + $0x88] sm:$0xff] %v495
        %590 = vst [vmem:[#allocation2 + $0x90] sm:$0xff] %v500
        %591 = vst [vmem:[#allocation2 + $0x98] sm:$0xff] %v505
        %592 = vst [vmem:[#allocation2 + $0xa0] sm:$0xff] %v510
        %593 = vst [vmem:[#allocation2 + $0xa8] sm:$0xff] %v515
        %594 = vst [vmem:[#allocation2 + $0xb0] sm:$0xff] %v520
        %595 = vst [vmem:[#allocation2 + $0xb8] sm:$0xff] %v525
        %596 = vst [vmem:[#allocation2 + $0xc0] sm:$0xff] %v530
        %597 = vst [vmem:[#allocation2 + $0xc8] sm:$0xff] %v535
        %598 = vst [vmem:[#allocation2 + $0xd0] sm:$0xff] %v540
        %599 = vst [vmem:[#allocation2 + $0xd8] sm:$0xff] %v545
        %600 = vst [vmem:[#allocation2 + $0xe0] sm:$0xff] %v550
        %601 = vst [vmem:[#allocation2 + $0xe8] sm:$0xff] %v555
        %602 = vst [vmem:[#allocation2 + $0xf0] sm:$0xff] %v560
        %603 = vst [vmem:[#allocation2 + $0xf8] sm:$0xff] %v565
      $region36: #{net_forward.3} parent=31 // pred_fallthru
        _
      %p604 = scmp.gt.s32.totalorder %s19, 0
      // Predicated region
      $region37: #{net_forward.3} parent=31 // pred_check
        %p605 = pneg %p604
      $region38: #{net_forward.3} parent=31 // pred_check_branch
        %607 = sbr.rel (%p605) target = $region40
      $region39: #{net_forward.3} parent=31 // pred_region
        %v608 = vld [vmem:[#allocation2] sm:$0xff]
        %v609 = vld [vmem:[#allocation2 + $0x8] sm:$0xff]
        %v610 = vld [vmem:[#allocation2 + $0x10] sm:$0xff]
        %v611 = vld [vmem:[#allocation2 + $0x18] sm:$0xff]
        %v612 = vld [vmem:[#allocation2 + $0x20] sm:$0xff]
        %v613 = vld [vmem:[#allocation2 + $0x28] sm:$0xff]
        %v614 = vld [vmem:[#allocation2 + $0x30] sm:$0xff]
        %v615 = vld [vmem:[#allocation2 + $0x38] sm:$0xff]
        %v616 = vld [vmem:[#allocation2 + $0x40] sm:$0xff]
        %v617 = vld [vmem:[#allocation2 + $0x48] sm:$0xff]
        %v618 = vld [vmem:[#allocation2 + $0x50] sm:$0xff]
        %v619 = vld [vmem:[#allocation2 + $0x58] sm:$0xff]
        %v620 = vld [vmem:[#allocation2 + $0x60] sm:$0xff]
        %v621 = vld [vmem:[#allocation2 + $0x68] sm:$0xff]
        %v622 = vld [vmem:[#allocation2 + $0x70] sm:$0xff]
        %v623 = vld [vmem:[#allocation2 + $0x78] sm:$0xff]
        %v624 = vld [vmem:[#allocation2 + $0x80] sm:$0xff]
        %v625 = vld [vmem:[#allocation2 + $0x88] sm:$0xff]
        %v626 = vld [vmem:[#allocation2 + $0x90] sm:$0xff]
        %v627 = vld [vmem:[#allocation2 + $0x98] sm:$0xff]
        %v628 = vld [vmem:[#allocation2 + $0xa0] sm:$0xff]
        %v629 = vld [vmem:[#allocation2 + $0xa8] sm:$0xff]
        %v630 = vld [vmem:[#allocation2 + $0xb0] sm:$0xff]
        %v631 = vld [vmem:[#allocation2 + $0xb8] sm:$0xff]
        %v632 = vld [vmem:[#allocation2 + $0xc0] sm:$0xff]
        %v633 = vld [vmem:[#allocation2 + $0xc8] sm:$0xff]
        %v634 = vld [vmem:[#allocation2 + $0xd0] sm:$0xff]
        %v635 = vld [vmem:[#allocation2 + $0xd8] sm:$0xff]
        %v636 = vld [vmem:[#allocation2 + $0xe0] sm:$0xff]
        %v637 = vld [vmem:[#allocation2 + $0xe8] sm:$0xff]
        %v638 = vld [vmem:[#allocation2 + $0xf0] sm:$0xff]
        %v639 = vld [vmem:[#allocation2 + $0xf8] sm:$0xff]
        %v640 = vmax.f32 %v608, %v410
        %v641 = vmax.f32 %v609, %v415
        %v642 = vmax.f32 %v610, %v420
        %v643 = vmax.f32 %v611, %v425
        %v644 = vmax.f32 %v612, %v430
        %v645 = vmax.f32 %v613, %v435
        %v646 = vmax.f32 %v614, %v440
        %v647 = vmax.f32 %v615, %v445
        %v648 = vmax.f32 %v616, %v450
        %v649 = vmax.f32 %v617, %v455
        %v650 = vmax.f32 %v618, %v460
        %v651 = vmax.f32 %v619, %v465
        %v652 = vmax.f32 %v620, %v470
        %v653 = vmax.f32 %v621, %v475
        %v654 = vmax.f32 %v622, %v480
        %v655 = vmax.f32 %v623, %v485
        %v656 = vmax.f32 %v624, %v490
        %v657 = vmax.f32 %v625, %v495
        %v658 = vmax.f32 %v626, %v500
        %v659 = vmax.f32 %v627, %v505
        %v660 = vmax.f32 %v628, %v510
        %v661 = vmax.f32 %v629, %v515
        %v662 = vmax.f32 %v630, %v520
        %v663 = vmax.f32 %v631, %v525
        %v664 = vmax.f32 %v632, %v530
        %v665 = vmax.f32 %v633, %v535
        %v666 = vmax.f32 %v634, %v540
        %v667 = vmax.f32 %v635, %v545
        %v668 = vmax.f32 %v636, %v550
        %v669 = vmax.f32 %v637, %v555
        %v670 = vmax.f32 %v638, %v560
        %v671 = vmax.f32 %v639, %v565
        %672 = vst [vmem:[#allocation2] sm:$0xff] %v640
        %673 = vst [vmem:[#allocation2 + $0x8] sm:$0xff] %v641
        %674 = vst [vmem:[#allocation2 + $0x10] sm:$0xff] %v642
        %675 = vst [vmem:[#allocation2 + $0x18] sm:$0xff] %v643
        %676 = vst [vmem:[#allocation2 + $0x20] sm:$0xff] %v644
        %677 = vst [vmem:[#allocation2 + $0x28] sm:$0xff] %v645
        %678 = vst [vmem:[#allocation2 + $0x30] sm:$0xff] %v646
        %679 = vst [vmem:[#allocation2 + $0x38] sm:$0xff] %v647
        %680 = vst [vmem:[#allocation2 + $0x40] sm:$0xff] %v648
        %681 = vst [vmem:[#allocation2 + $0x48] sm:$0xff] %v649
        %682 = vst [vmem:[#allocation2 + $0x50] sm:$0xff] %v650
        %683 = vst [vmem:[#allocation2 + $0x58] sm:$0xff] %v651
        %684 = vst [vmem:[#allocation2 + $0x60] sm:$0xff] %v652
        %685 = vst [vmem:[#allocation2 + $0x68] sm:$0xff] %v653
        %686 = vst [vmem:[#allocation2 + $0x70] sm:$0xff] %v654
        %687 = vst [vmem:[#allocation2 + $0x78] sm:$0xff] %v655
        %688 = vst [vmem:[#allocation2 + $0x80] sm:$0xff] %v656
        %689 = vst [vmem:[#allocation2 + $0x88] sm:$0xff] %v657
        %690 = vst [vmem:[#allocation2 + $0x90] sm:$0xff] %v658
        %691 = vst [vmem:[#allocation2 + $0x98] sm:$0xff] %v659
        %692 = vst [vmem:[#allocation2 + $0xa0] sm:$0xff] %v660
        %693 = vst [vmem:[#allocation2 + $0xa8] sm:$0xff] %v661
        %694 = vst [vmem:[#allocation2 + $0xb0] sm:$0xff] %v662
        %695 = vst [vmem:[#allocation2 + $0xb8] sm:$0xff] %v663
        %696 = vst [vmem:[#allocation2 + $0xc0] sm:$0xff] %v664
        %697 = vst [vmem:[#allocation2 + $0xc8] sm:$0xff] %v665
        %698 = vst [vmem:[#allocation2 + $0xd0] sm:$0xff] %v666
        %699 = vst [vmem:[#allocation2 + $0xd8] sm:$0xff] %v667
        %700 = vst [vmem:[#allocation2 + $0xe0] sm:$0xff] %v668
        %701 = vst [vmem:[#allocation2 + $0xe8] sm:$0xff] %v669
        %702 = vst [vmem:[#allocation2 + $0xf0] sm:$0xff] %v670
        %703 = vst [vmem:[#allocation2 + $0xf8] sm:$0xff] %v671
      $region40: #{net_forward.3} parent=31 // pred_fallthru
        _
      %p704 = scmp.eq.s32.totalorder %s19, 3
      // Predicated region
      $region41: #{net_forward.3} parent=31 // pred_check
        %p705 = pneg %p704
      $region42: #{net_forward.3} parent=31 // pred_check_branch
        %707 = sbr.rel (%p705) target = $region44
      $region43: #{net_forward.3} parent=31 // pred_region
        %v708 = vld [vmem:[#allocation2] sm:$0xff]
        %v709 = vld [vmem:[#allocation2 + $0x8] sm:$0xff]
        %v710 = vld [vmem:[#allocation2 + $0x10] sm:$0xff]
        %v711 = vld [vmem:[#allocation2 + $0x18] sm:$0xff]
        %v712 = vld [vmem:[#allocation2 + $0x20] sm:$0xff]
        %v713 = vld [vmem:[#allocation2 + $0x28] sm:$0xff]
        %v714 = vld [vmem:[#allocation2 + $0x30] sm:$0xff]
        %v715 = vld [vmem:[#allocation2 + $0x38] sm:$0xff]
        %v716 = vld [vmem:[#allocation2 + $0x40] sm:$0xff]
        %v717 = vld [vmem:[#allocation2 + $0x48] sm:$0xff]
        %v718 = vld [vmem:[#allocation2 + $0x50] sm:$0xff]
        %v719 = vld [vmem:[#allocation2 + $0x58] sm:$0xff]
        %v720 = vld [vmem:[#allocation2 + $0x60] sm:$0xff]
        %v721 = vld [vmem:[#allocation2 + $0x68] sm:$0xff]
        %v722 = vld [vmem:[#allocation2 + $0x70] sm:$0xff]
        %v723 = vld [vmem:[#allocation2 + $0x78] sm:$0xff]
        %v724 = vld [vmem:[#allocation2 + $0x80] sm:$0xff]
        %v725 = vld [vmem:[#allocation2 + $0x88] sm:$0xff]
        %v726 = vld [vmem:[#allocation2 + $0x90] sm:$0xff]
        %v727 = vld [vmem:[#allocation2 + $0x98] sm:$0xff]
        %v728 = vld [vmem:[#allocation2 + $0xa0] sm:$0xff]
        %v729 = vld [vmem:[#allocation2 + $0xa8] sm:$0xff]
        %v730 = vld [vmem:[#allocation2 + $0xb0] sm:$0xff]
        %v731 = vld [vmem:[#allocation2 + $0xb8] sm:$0xff]
        %v732 = vld [vmem:[#allocation2 + $0xc0] sm:$0xff]
        %v733 = vld [vmem:[#allocation2 + $0xc8] sm:$0xff]
        %v734 = vld [vmem:[#allocation2 + $0xd0] sm:$0xff]
        %v735 = vld [vmem:[#allocation2 + $0xd8] sm:$0xff]
        %v736 = vld [vmem:[#allocation2 + $0xe0] sm:$0xff]
        %v737 = vld [vmem:[#allocation2 + $0xe8] sm:$0xff]
        %v738 = vld [vmem:[#allocation2 + $0xf0] sm:$0xff]
        %v739 = vld [vmem:[#allocation2 + $0xf8] sm:$0xff]
        %v740 = vld [vmem:[%s2] sm:$0x1]
        %v742 = vlaneseq
        %v743 = vshrl.u32 %v742, 7
        %v744 = vsub.s32 0, %v743
        %v745 = vrot.slane %v740, %v744
        %v747 = vadd.f32 %v708, %v745
        %v748 = vadd.f32 %v709, %v745
        %v749 = vadd.f32 %v710, %v745
        %v750 = vadd.f32 %v711, %v745
        %v751 = vadd.f32 %v712, %v745
        %v752 = vadd.f32 %v713, %v745
        %v753 = vadd.f32 %v714, %v745
        %v754 = vadd.f32 %v715, %v745
        %v755 = vadd.f32 %v716, %v745
        %v756 = vadd.f32 %v717, %v745
        %v757 = vadd.f32 %v718, %v745
        %v758 = vadd.f32 %v719, %v745
        %v759 = vadd.f32 %v720, %v745
        %v760 = vadd.f32 %v721, %v745
        %v761 = vadd.f32 %v722, %v745
        %v762 = vadd.f32 %v723, %v745
        %v763 = vadd.f32 %v724, %v745
        %v764 = vadd.f32 %v725, %v745
        %v765 = vadd.f32 %v726, %v745
        %v766 = vadd.f32 %v727, %v745
        %v767 = vadd.f32 %v728, %v745
        %v768 = vadd.f32 %v729, %v745
        %v769 = vadd.f32 %v730, %v745
        %v770 = vadd.f32 %v731, %v745
        %v771 = vadd.f32 %v732, %v745
        %v772 = vadd.f32 %v733, %v745
        %v773 = vadd.f32 %v734, %v745
        %v774 = vadd.f32 %v735, %v745
        %v775 = vadd.f32 %v736, %v745
        %v776 = vadd.f32 %v737, %v745
        %v777 = vadd.f32 %v738, %v745
        %v778 = vadd.f32 %v739, %v745
        %v779 = vmax.f32 %v747, 0.0
        %v780 = vmax.f32 %v748, 0.0
        %v781 = vmax.f32 %v749, 0.0
        %v782 = vmax.f32 %v750, 0.0
        %v783 = vmax.f32 %v751, 0.0
        %v784 = vmax.f32 %v752, 0.0
        %v785 = vmax.f32 %v753, 0.0
        %v786 = vmax.f32 %v754, 0.0
        %v787 = vmax.f32 %v755, 0.0
        %v788 = vmax.f32 %v756, 0.0
        %v789 = vmax.f32 %v757, 0.0
        %v790 = vmax.f32 %v758, 0.0
        %v791 = vmax.f32 %v759, 0.0
        %v792 = vmax.f32 %v760, 0.0
        %v793 = vmax.f32 %v761, 0.0
        %v794 = vmax.f32 %v762, 0.0
        %v795 = vmax.f32 %v763, 0.0
        %v796 = vmax.f32 %v764, 0.0
        %v797 = vmax.f32 %v765, 0.0
        %v798 = vmax.f32 %v766, 0.0
        %v799 = vmax.f32 %v767, 0.0
        %v800 = vmax.f32 %v768, 0.0
        %v801 = vmax.f32 %v769, 0.0
        %v802 = vmax.f32 %v770, 0.0
        %v803 = vmax.f32 %v771, 0.0
        %v804 = vmax.f32 %v772, 0.0
        %v805 = vmax.f32 %v773, 0.0
        %v806 = vmax.f32 %v774, 0.0
        %v807 = vmax.f32 %v775, 0.0
        %v808 = vmax.f32 %v776, 0.0
        %v809 = vmax.f32 %v777, 0.0
        %v810 = vmax.f32 %v778, 0.0
        %811 = vst [vmem:[%s198] sm:$0xff] %v779
        %812 = vst [vmem:[%s198 + $0x8] sm:$0xff] %v780
        %813 = vst [vmem:[%s198 + $0x10] sm:$0xff] %v781
        %814 = vst [vmem:[%s198 + $0x18] sm:$0xff] %v782
        %815 = vst [vmem:[%s198 + $0x20] sm:$0xff] %v783
        %816 = vst [vmem:[%s198 + $0x28] sm:$0xff] %v784
        %817 = vst [vmem:[%s198 + $0x30] sm:$0xff] %v785
        %818 = vst [vmem:[%s198 + $0x38] sm:$0xff] %v786
        %819 = vst [vmem:[%s198 + $0x40] sm:$0xff] %v787
        %820 = vst [vmem:[%s198 + $0x48] sm:$0xff] %v788
        %821 = vst [vmem:[%s198 + $0x50] sm:$0xff] %v789
        %822 = vst [vmem:[%s198 + $0x58] sm:$0xff] %v790
        %823 = vst [vmem:[%s198 + $0x60] sm:$0xff] %v791
        %824 = vst [vmem:[%s198 + $0x68] sm:$0xff] %v792
        %825 = vst [vmem:[%s198 + $0x70] sm:$0xff] %v793
        %826 = vst [vmem:[%s198 + $0x78] sm:$0xff] %v794
        %827 = vst [vmem:[%s198 + $0x80] sm:$0xff] %v795
        %828 = vst [vmem:[%s198 + $0x88] sm:$0xff] %v796
        %829 = vst [vmem:[%s198 + $0x90] sm:$0xff] %v797
        %830 = vst [vmem:[%s198 + $0x98] sm:$0xff] %v798
        %831 = vst [vmem:[%s198 + $0xa0] sm:$0xff] %v799
        %832 = vst [vmem:[%s198 + $0xa8] sm:$0xff] %v800
        %833 = vst [vmem:[%s198 + $0xb0] sm:$0xff] %v801
        %834 = vst [vmem:[%s198 + $0xb8] sm:$0xff] %v802
        %835 = vst [vmem:[%s198 + $0xc0] sm:$0xff] %v803
        %836 = vst [vmem:[%s198 + $0xc8] sm:$0xff] %v804
        %837 = vst [vmem:[%s198 + $0xd0] sm:$0xff] %v805
        %838 = vst [vmem:[%s198 + $0xd8] sm:$0xff] %v806
        %839 = vst [vmem:[%s198 + $0xe0] sm:$0xff] %v807
        %840 = vst [vmem:[%s198 + $0xe8] sm:$0xff] %v808
        %841 = vst [vmem:[%s198 + $0xf0] sm:$0xff] %v809
        %842 = vst [vmem:[%s198 + $0xf8] sm:$0xff] %v810
      $region44: #{net_forward.3} parent=31 // pred_fallthru
        _
      %s843 = smul.u32 32, %s18
      %p844 = scmp.lt.s32.totalorder %s843, 63
      %s845 = scalar_select %p844, %s843, 63
      %s846 = smul.addr %s845, 8
      %s847 = scalar_lea.vmem %s3, %s846
      // Predicated region
      $region45: #{net_forward.3} parent=31 // pred_check
        %p848 = pneg %p114
      $region46: #{net_forward.3} parent=31 // pred_check_branch
        %850 = sbr.rel (%p848) target = $region48
      $region47: #{net_forward.3} parent=31 // pred_region
        %s851 = smul.u32 32, %s18
      $region48: #{net_forward.3} parent=31 // pred_fallthru
        _
    $region32: #{net_forward.3} parent=5 // pred_fallthru
      _
    %p852 = scmp.le.s32.totalorder 2, %s9
    // Predicated region
    $region49: #{net_forward.3} parent=5 // pred_check
      %p853 = pneg %p852
    $region50: #{net_forward.3} parent=5 // pred_check_branch
      %855 = sbr.rel (%p853) target = $region52
    $region51: #{net_forward.3} parent=5 // pred_region
      %s856 = ssub.s32 %s9, 2
      // Predicated region
      $region53: #{net_forward.3} parent=51 // pred_check
        %p857 = pneg %p120
      $region54: #{net_forward.3} parent=51 // pred_check_branch
        %859 = sbr.rel (%p857) target = $region56
      $region55: #{net_forward.3} parent=51 // pred_region
        %s860 = smul.u32 32, %s20
        %p861 = scmp.lt.s32.totalorder %s860, 63
        %s862 = scalar_select %p861, %s860, 63
        %s863 = smul.addr %s862, 8
        %s864 = scalar_lea.vmem %s3, %s863
      $region56: #{net_forward.3} parent=51 // pred_fallthru
        _
    $region52: #{net_forward.3} parent=5 // pred_fallthru
      _
  $region6: #{net_forward.3} parent=0 // loop_footer
    %s13 = sadd.s32 1, %s9
  $region7: #{net_forward.3} parent=0 // loop_footer_branch
    %8 = sbr.rel target = $region3
  $region8: #{net_forward.3} parent=0 // loop_exit
    _

// kernel: net_forward.4
$region0: #{net_forward.4}
  #allocation0 [shape = 'u32[]', space=smem, size = 0x4, offset = 0x4, fixed_abs, tag = 'smem constant byte address 0x4 - core index']
  #allocation1 [shape = 'u32[144,128]{1,0:T(1,128)}', space=vmem, size = 0x12000, scoped, tag = 'internal scratch']
  #allocation2 [shape = 'f32[56,128]{1,0:T(8,128)}', space=vmem, size = 0x7000, scoped, tag = 'scratch operand']
  %s0 = inlined_call_operand.vmem [shape: f32[4,56,150], index: 0, kind: input, shape index: {}]
  %s1 = inlined_call_operand.vmem [shape: f32[150,128], index: 1, kind: input, shape index: {}]
  %s2 = inlined_call_operand.vmem [shape: f32[1,128], index: 2, kind: input, shape index: {}]
  %s3 = inlined_call_operand.vmem [shape: f32[56,128], index: 3, kind: output, shape index: {}]
  %s4 = sld [smem:[#allocation0]]
  $region57: #{net_forward.4} parent=0
    _
  %s6 = ssub.s32 1, %s4
  %s7 = scalar_select 0, %s6, %s4
  loop: start=0, step=1, limit=6
  $region2: #{net_forward.4} parent=0 // loop_pre_header
    _
  $region3: #{net_forward.4} parent=0 // loop_header
    %s9 = sphi 0, %s13
    %p10 = scmp.ge.s32.totalorder %s9, 6
    %s16 = sphi 0, %s28
    %s17 = sphi 0, %s24
    %s18 = sphi 0, %s16
    %s19 = sphi 0, %s17
    %s20 = sphi 0, %s18
    %s21 = sphi 0, %s19
    %s33 = sphi 0, %s35
    %s36 = sphi 0, %s33
    %s37 = sphi 0, %s36
    %s53 = sphi 0, %s37
    %s57 = sphi 0, %s57
    %s59 = sphi 0, %s57
    %s60 = sphi 0, %s59
    %s74 = sphi 0, %s60
    %s78 = sphi 0, %s78
    %s80 = sphi 0, %s78
    %s81 = sphi 0, %s80
    %s95 = sphi 0, %s81
    %s101 = sphi 0, %s103
    %s104 = sphi 0, %s101
    %s105 = sphi 0, %s104
    %s121 = sphi 0, %s105
  $region4: #{net_forward.4} parent=0 // loop_header_branch
    %12 = sbr.rel (%p10) target = $region8
  $region5: #{net_forward.4} parent=0 // loop_body
    %s14 = ssub.s32 %s9, 1
    %s15 = ssub.s32 %s9, 2
    %s22 = sadd.s32 1, %s17
    %p23 = scmp.ge.s32.totalorder %s22, 4
    %s24 = scalar_select %p23, 0, %s22
    %s25 = sadd.s32 1, %s16
    %s26 = scalar_select %p23, %s25, %s16
    %p27 = scmp.ge.s32.totalorder %s26, 1
    %s28 = scalar_select %p27, 0, %s26
    %s29 = ssub.s32 %s17, %s24
    %s30 = ssub.s32 %s16, %s28
    %s31 = sor.u32 %s29, %s30
    %p32 = scmp.eq.s32.totalorder %s31, 0
    %s34 = sadd.s32 %s33, 1
    %s35 = scalar_select %p32, %s33, %s34
    %p38 = pneg %p32
    %p39 = scmp.eq.s32.totalorder %s9, 3
    %p40 = por %p38, %p39
    %p41 = scmp.ne.s32.totalorder %s33, %s36
    %p42 = scmp.eq.s32.totalorder %s9, 0
    %p43 = por %p41, %p42
    %p44 = scmp.ne.s32.totalorder %s33, %s36
    %p45 = scmp.eq.s32.totalorder %s14, 3
    %p46 = por %p44, %p45
    %p47 = scmp.ne.s32.totalorder %s36, %s37
    %p48 = scmp.eq.s32.totalorder %s14, 0
    %p49 = por %p47, %p48
    %p50 = scmp.ne.s32.totalorder %s36, %s37
    %p51 = scmp.eq.s32.totalorder %s15, 3
    %p52 = por %p50, %p51
    %p54 = scmp.ne.s32.totalorder %s37, %s53
    %p55 = scmp.eq.s32.totalorder %s15, 0
    %p56 = por %p54, %p55
    %s58 = sadd.s32 %s57, 1
    %p61 = scmp.eq.s32.totalorder %s9, 3
    %p62 = scmp.ne.s32.totalorder %s57, %s59
    %p63 = scmp.eq.s32.totalorder %s9, 0
    %p64 = por %p62, %p63
    %p65 = scmp.ne.s32.totalorder %s57, %s59
    %p66 = scmp.eq.s32.totalorder %s14, 3
    %p67 = por %p65, %p66
    %p68 = scmp.ne.s32.totalorder %s59, %s60
    %p69 = scmp.eq.s32.totalorder %s14, 0
    %p70 = por %p68, %p69
    %p71 = scmp.ne.s32.totalorder %s59, %s60
    %p72 = scmp.eq.s32.totalorder %s15, 3
    %p73 = por %p71, %p72
    %p75 = scmp.ne.s32.totalorder %s60, %s74
    %p76 = scmp.eq.s32.totalorder %s15, 0
    %p77 = por %p75, %p76
    %s79 = sadd.s32 %s78, 1
    %p82 = scmp.eq.s32.totalorder %s9, 3
    %p83 = scmp.ne.s32.totalorder %s78, %s80
    %p84 = scmp.eq.s32.totalorder %s9, 0
    %p85 = por %p83, %p84
    %p86 = scmp.ne.s32.totalorder %s78, %s80
    %p87 = scmp.eq.s32.totalorder %s14, 3
    %p88 = por %p86, %p87
    %p89 = scmp.ne.s32.totalorder %s80, %s81
    %p90 = scmp.eq.s32.totalorder %s14, 0
    %p91 = por %p89, %p90
    %p92 = scmp.ne.s32.totalorder %s80, %s81
    %p93 = scmp.eq.s32.totalorder %s15, 3
    %p94 = por %p92, %p93
    %p96 = scmp.ne.s32.totalorder %s81, %s95
    %p97 = scmp.eq.s32.totalorder %s15, 0
    %p98 = por %p96, %p97
    %s99 = ssub.s32 %s16, %s28
    %p100 = scmp.eq.s32.totalorder %s99, 0
    %s102 = sadd.s32 %s101, 1
    %s103 = scalar_select %p100, %s101, %s102
    %p106 = pneg %p100
    %p107 = scmp.eq.s32.totalorder %s9, 3
    %p108 = por %p106, %p107
    %p109 = scmp.ne.s32.totalorder %s101, %s104
    %p110 = scmp.eq.s32.totalorder %s9, 0
    %p111 = por %p109, %p110
    %p112 = scmp.ne.s32.totalorder %s101, %s104
    %p113 = scmp.eq.s32.totalorder %s14, 3
    %p114 = por %p112, %p113
    %p115 = scmp.ne.s32.totalorder %s104, %s105
    %p116 = scmp.eq.s32.totalorder %s14, 0
    %p117 = por %p115, %p116
    %p118 = scmp.ne.s32.totalorder %s104, %s105
    %p119 = scmp.eq.s32.totalorder %s15, 3
    %p120 = por %p118, %p119
    %p122 = scmp.ne.s32.totalorder %s105, %s121
    %p123 = scmp.eq.s32.totalorder %s15, 0
    %p124 = por %p122, %p123
    %p125 = scmp.le.s32.totalorder 1, %s9
    %p126 = scmp.lt.s32.totalorder %s9, 5
    %p127 = pnand %p125, %p126
    %p128 = pneg %p127
    // Predicated region
    $region9: #{net_forward.4} parent=5 // pred_check
      _
    $region10: #{net_forward.4} parent=5 // pred_check_branch
      %130 = sbr.rel (%p127) target = $region12
    $region11: #{net_forward.4} parent=5 // pred_region
      %s131 = ssub.s32 %s9, 1
      // Predicated region
      $region13: #{net_forward.4} parent=11 // pred_check
        %p132 = pneg %p70
      $region14: #{net_forward.4} parent=11 // pred_check_branch
        %134 = sbr.rel (%p132) target = $region16
      $region15: #{net_forward.4} parent=11 // pred_region
        _
      $region16: #{net_forward.4} parent=11 // pred_fallthru
        _
      // Predicated region
      $region17: #{net_forward.4} parent=11 // pred_check
        %p135 = pneg %p91
      $region18: #{net_forward.4} parent=11 // pred_check_branch
        %137 = sbr.rel (%p135) target = $region20
      $region19: #{net_forward.4} parent=11 // pred_region
        _
      $region20: #{net_forward.4} parent=11 // pred_fallthru
        _
    $region12: #{net_forward.4} parent=5 // pred_fallthru
      _
    %p138 = scmp.lt.s32.totalorder %s9, 4
    // Predicated region
    $region21: #{net_forward.4} parent=5 // pred_check
      %p139 = pneg %p138
    $region22: #{net_forward.4} parent=5 // pred_check_branch
      %141 = sbr.rel (%p139) target = $region24
    $region23: #{net_forward.4} parent=5 // pred_region
      // Predicated region
      $region25: #{net_forward.4} parent=23 // pred_check
        %p142 = pneg %p43
      $region26: #{net_forward.4} parent=23 // pred_check_branch
        %144 = sbr.rel (%p142) target = $region28
      $region27: #{net_forward.4} parent=23 // pred_region
        %s145 = smul.u32 7, %s16
        %p146 = scmp.lt.s32.totalorder %s17, 3
        %s147 = scalar_select %p146, %s17, 3
        %p148 = scmp.lt.s32.totalorder %s145, 6
        %s149 = scalar_select %p148, %s145, 6
        %s150 = smul.addr %s149, 2
        %s151 = smul.addr %s147, 14
        %s152 = sadd.s32 %s150, %s151
        %s153 = smul.addr %s152, 8
        %s154 = scalar_lea.vmem %s0, %s153
        %s155 = smul.u32 7, %s16
      $region28: #{net_forward.4} parent=23 // pred_fallthru
        _
    $region24: #{net_forward.4} parent=5 // pred_fallthru
      _
    %p156 = scmp.le.s32.totalorder 1, %s9
    %p157 = scmp.lt.s32.totalorder %s9, 5
    %p158 = pnand %p156, %p157
    %p159 = pneg %p158
    // Predicated region
    $region29: #{net_forward.4} parent=5 // pred_check
      _
    $region30: #{net_forward.4} parent=5 // pred_check_branch
      %161 = sbr.rel (%p158) target = $region32
    $region31: #{net_forward.4} parent=5 // pred_region
      %s162 = ssub.s32 %s9, 1
      %s163 = smul.u32 7, %s18
      %p164 = scmp.lt.s32.totalorder %s19, 3
      %s165 = scalar_select %p164, %s19, 3
      %p166 = scmp.lt.s32.totalorder %s163, 6
      %s167 = scalar_select %p166, %s163, 6
      %s168 = smul.addr %s167, 2
      %s169 = smul.addr %s165, 14
      %s170 = sadd.s32 %s168, %s169
      %s171 = smul.addr %s170, 8
      %s172 = scalar_lea.vmem %s0, %s171
      %p173 = pneg %p49
      %p174 = pneg %p46
      %p175 = pneg %p70
      %p176 = pneg %p67
      %p177 = pneg %p91
      %p178 = pneg %p88
      %p179 = pneg %p117
      %p180 = pneg %p114
      %s181 = smul.u32 7, %s18
      %p182 = scmp.lt.s32.totalorder %s181, 6
      %s183 = scalar_select %p182, %s181, 6
      %s184 = smul.addr %s183, 8
      %s185 = scalar_lea.vmem %s3, %s184
      %s186 = smul.u32 7, %s18
      %p187 = scmp.lt.s32.totalorder %s19, 3
      %s188 = scalar_select %p187, %s19, 3
      %p189 = scmp.lt.s32.totalorder %s186, 6
      %s190 = scalar_select %p189, %s186, 6
      %s191 = smul.addr %s190, 2
      %s192 = smul.addr %s188, 14
      %s193 = sadd.s32 %s191, %s192
      %s194 = smul.addr %s193, 8
      %s195 = scalar_lea.vmem %s0, %s194
      %s196 = smul.u32 7, %s18
      %s197 = smul.u32 7, %s18
      %p198 = scmp.lt.s32.totalorder %s197, 6
      %s199 = scalar_select %p198, %s197, 6
      %s200 = smul.addr %s199, 8
      %s201 = scalar_lea.vmem %s3, %s200
      %s202 = smul.u32 7, %s18
      %v203 = vld [vmem:[%s195] sm:$0xff]
      %v204 = vld [vmem:[%s195 + $0x8] sm:$0xff]
      %v205 = vld [vmem:[%s195 + $0x10] sm:$0xff]
      %v206 = vld [vmem:[%s195 + $0x18] sm:$0xff]
      %v207 = vld [vmem:[%s195 + $0x20] sm:$0xff]
      %v208 = vld [vmem:[%s195 + $0x28] sm:$0xff]
      %v209 = vld [vmem:[%s195 + $0x30] sm:$0xff]
      %v210 = vld [vmem:[%s195 + $0x38] sm:$0xff]
      %v211 = vld [vmem:[%s195 + $0x40] sm:$0xff]
      %v212 = vld [vmem:[%s195 + $0x48] sm:$0xff]
      %v213 = vld [vmem:[%s195 + $0x50] sm:$0xff]
      %v214 = vld [vmem:[%s195 + $0x58] sm:$0xff]
      %v215 = vld [vmem:[%s195 + $0x60] sm:$0xff]
      %v216 = vld [vmem:[%s195 + $0x68] sm:$0xff]
      %v217 = vld [vmem:[%s1] sm:$0xff]
      %v218 = vld [vmem:[%s1 + $0x8] sm:$0xff]
      %v219 = vld [vmem:[%s1 + $0x10] sm:$0xff]
      %v220 = vld [vmem:[%s1 + $0x18] sm:$0xff]
      %v221 = vld [vmem:[%s1 + $0x20] sm:$0xff]
      %v222 = vld [vmem:[%s1 + $0x28] sm:$0xff]
      %v223 = vld [vmem:[%s1 + $0x30] sm:$0xff]
      %v224 = vld [vmem:[%s1 + $0x38] sm:$0xff]
      %v225 = vld [vmem:[%s1 + $0x40] sm:$0xff]
      %v226 = vld [vmem:[%s1 + $0x48] sm:$0xff]
      %v227 = vld [vmem:[%s1 + $0x50] sm:$0xff]
      %v228 = vld [vmem:[%s1 + $0x58] sm:$0xff]
      %v229 = vld [vmem:[%s1 + $0x60] sm:$0xff]
      %v230 = vld [vmem:[%s1 + $0x68] sm:$0xff]
      %v231 = vld [vmem:[%s1 + $0x70] sm:$0xff]
      %v232 = vld [vmem:[%s1 + $0x78] sm:$0xff]
      %v233 = vld [vmem:[%s1 + $0x80] sm:$0xff]
      %v234 = vld [vmem:[%s1 + $0x88] sm:$0xff]
      %v235 = vld [vmem:[%s1 + $0x90] sm:$0x3f]
      %vm236 = vcmask 179200
      %v238 = vsel %vm236, %v204, 0
      %v241 = vsel %vm236, %v206, 0
      %v244 = vsel %vm236, %v208, 0
      %v247 = vsel %vm236, %v210, 0
      %v250 = vsel %vm236, %v212, 0
      %v253 = vsel %vm236, %v214, 0
      %v256 = vsel %vm236, %v216, 0
      %vm258 = vcmask 1045504
      %v260 = vsel %vm258, %v235, 0
      %262 = vmatprep.subr.mxu0 0.0
      %263 = vmatpush1.msra.mxu0 %v217
      %264 = vmatprep.subr.mxu0 0.0
      %265 = vmatpush1.msra.mxu0 %v218
      %266 = vmatprep.subr.mxu0 0.0
      %267 = vmatpush1.msra.mxu0 %v219
      %268 = vmatprep.subr.mxu0 0.0
      %269 = vmatpush1.msra.mxu0 %v220
      %270 = vmatprep.subr.mxu0 0.0
      %271 = vmatpush1.msra.mxu0 %v221
      %272 = vmatprep.subr.mxu0 0.0
      %273 = vmatpush1.msra.mxu0 %v222
      %274 = vmatprep.subr.mxu0 0.0
      %275 = vmatpush1.msra.mxu0 %v223
      %276 = vmatprep.subr.mxu0 0.0
      %277 = vmatpush1.msra.mxu0 %v224
      %278 = vmatprep.subr.mxu0 0.0
      %279 = vmatpush1.msra.mxu0 %v225
      %280 = vmatprep.subr.mxu0 0.0
      %281 = vmatpush1.msra.mxu0 %v226
      %282 = vmatprep.subr.mxu0 0.0
      %283 = vmatpush1.msra.mxu0 %v227
      %284 = vmatprep.subr.mxu0 0.0
      %285 = vmatpush1.msra.mxu0 %v228
      %286 = vmatprep.subr.mxu0 0.0
      %287 = vmatpush1.msra.mxu0 %v229
      %288 = vmatprep.subr.mxu0 0.0
      %289 = vmatpush1.msra.mxu0 %v230
      %290 = vmatprep.subr.mxu0 0.0
      %291 = vmatpush1.msra.mxu0 %v231
      %292 = vmatprep.subr.mxu0 0.0
      %293 = vmatpush1.msra.mxu0 %v232
      %294 = vmatprep.subr.mxu0 0.0
      %295 = vmatpush1.msra.mxu0 %v233
      %296 = vmatprep.subr.mxu0 0.0
      %297 = vmatpush1.msra.mxu0 %v234
      %298 = vmatprep.subr.mxu0 0.0
      %299 = vmatpush1.msra.mxu0 %v260
      %300 = vmatprep.subr.mxu0 0.0
      %301 = vmatpush1.msra.mxu0 0.0
      %302 = vmatprep.subr.mxu0 0.0
      %303 = vmatpush1.msra.mxu0 0.0
      %304 = vmatprep.subr.mxu0 0.0
      %305 = vmatpush1.msra.mxu0 0.0
      %306 = vmatprep.subr.mxu0 0.0
      %307 = vmatpush1.msra.mxu0 0.0
      %308 = vmatprep.subr.mxu0 0.0
      %309 = vmatpush1.msra.mxu0 0.0
      %310 = vmatprep.subr.mxu0 0.0
      %311 = vmatpush1.msra.mxu0 0.0
      %312 = vmatprep.subr.mxu0 0.0
      %313 = vmatpush1.msra.mxu0 0.0
      %314 = vmatprep.subr.mxu0 0.0
      %315 = vmatpush1.msra.mxu0 0.0
      %316 = vmatprep.subr.mxu0 0.0
      %317 = vmatpush1.msra.mxu0 0.0
      %318 = vmatprep.subr.mxu0 0.0
      %319 = vmatpush1.msra.mxu0 0.0
      %320 = vmatprep.subr.mxu0 0.0
      %321 = vmatpush1.msra.mxu0 0.0
      %322 = vmatprep.subr.mxu0 0.0
      %323 = vmatpush1.msra.mxu0 0.0
      %324 = vmatprep.subr.mxu0 0.0
      %325 = vmatpush1.msra.mxu0 0.0
      %326 = vmatprep.mubr.f32.mxu0 %v238
      %327 = vmatmul.mubr.f32.gmra.mrb[0].mxu0 %v203
      %v328 = vpop.f32.mrb[0].mxu0
      %v329 = vadd.f32 0.0, %v328
      %v330 = vpop.f32.mrb[0].mxu0
      %331 = vmatprep.mubr.f32.mxu0 %v241
      %332 = vmatmul.mubr.f32.gmra.mrb[0].mxu0 %v205
      %v333 = vpop.f32.mrb[0].mxu0
      %v334 = vadd.f32 0.0, %v333
      %v335 = vpop.f32.mrb[0].mxu0
      %336 = vmatprep.mubr.f32.mxu0 %v244
      %337 = vmatmul.mubr.f32.gmra.mrb[0].mxu0 %v207
      %v338 = vpop.f32.mrb[0].mxu0
      %v339 = vadd.f32 0.0, %v338
      %v340 = vpop.f32.mrb[0].mxu0
      %341 = vmatprep.mubr.f32.mxu0 %v247
      %342 = vmatmul.mubr.f32.gmra.mrb[0].mxu0 %v209
      %v343 = vpop.f32.mrb[0].mxu0
      %v344 = vadd.f32 0.0, %v343
      %v345 = vpop.f32.mrb[0].mxu0
      %346 = vmatprep.mubr.f32.mxu0 %v250
      %347 = vmatmul.mubr.f32.gmra.mrb[0].mxu0 %v211
      %v348 = vpop.f32.mrb[0].mxu0
      %v349 = vadd.f32 0.0, %v348
      %v350 = vpop.f32.mrb[0].mxu0
      %351 = vmatprep.mubr.f32.mxu0 %v253
      %352 = vmatmul.mubr.f32.gmra.mrb[0].mxu0 %v213
      %v353 = vpop.f32.mrb[0].mxu0
      %v354 = vadd.f32 0.0, %v353
      %v355 = vpop.f32.mrb[0].mxu0
      %356 = vmatprep.mubr.f32.mxu0 %v256
      %357 = vmatmul.mubr.f32.gmra.mrb[0].mxu0 %v215
      %v358 = vpop.f32.mrb[0].mxu0
      %v359 = vadd.f32 0.0, %v358
      %v360 = vpop.f32.mrb[0].mxu0
      %361 = vdwg.mxu0
      %p362 = scmp.eq.s32.totalorder %s19, 0
      // Predicated region
      $region33: #{net_forward.4} parent=31 // pred_check
        %p363 = pneg %p362
      $region34: #{net_forward.4} parent=31 // pred_check_branch
        %365 = sbr.rel (%p363) target = $region36
      $region35: #{net_forward.4} parent=31 // pred_region
        %366 = vst [vmem:[#allocation2] sm:$0xff] %v329
        %367 = vst [vmem:[#allocation2 + $0x8] sm:$0xff] %v334
        %368 = vst [vmem:[#allocation2 + $0x10] sm:$0xff] %v339
        %369 = vst [vmem:[#allocation2 + $0x18] sm:$0xff] %v344
        %370 = vst [vmem:[#allocation2 + $0x20] sm:$0xff] %v349
        %371 = vst [vmem:[#allocation2 + $0x28] sm:$0xff] %v354
        %372 = vst [vmem:[#allocation2 + $0x30] sm:$0xff] %v359
      $region36: #{net_forward.4} parent=31 // pred_fallthru
        _
      %p373 = scmp.gt.s32.totalorder %s19, 0
      // Predicated region
      $region37: #{net_forward.4} parent=31 // pred_check
        %p374 = pneg %p373
      $region38: #{net_forward.4} parent=31 // pred_check_branch
        %376 = sbr.rel (%p374) target = $region40
      $region39: #{net_forward.4} parent=31 // pred_region
        %v377 = vld [vmem:[#allocation2] sm:$0xff]
        %v378 = vld [vmem:[#allocation2 + $0x8] sm:$0xff]
        %v379 = vld [vmem:[#allocation2 + $0x10] sm:$0xff]
        %v380 = vld [vmem:[#allocation2 + $0x18] sm:$0xff]
        %v381 = vld [vmem:[#allocation2 + $0x20] sm:$0xff]
        %v382 = vld [vmem:[#allocation2 + $0x28] sm:$0xff]
        %v383 = vld [vmem:[#allocation2 + $0x30] sm:$0xff]
        %v384 = vmax.f32 %v377, %v329
        %v385 = vmax.f32 %v378, %v334
        %v386 = vmax.f32 %v379, %v339
        %v387 = vmax.f32 %v380, %v344
        %v388 = vmax.f32 %v381, %v349
        %v389 = vmax.f32 %v382, %v354
        %v390 = vmax.f32 %v383, %v359
        %391 = vst [vmem:[#allocation2] sm:$0xff] %v384
        %392 = vst [vmem:[#allocation2 + $0x8] sm:$0xff] %v385
        %393 = vst [vmem:[#allocation2 + $0x10] sm:$0xff] %v386
        %394 = vst [vmem:[#allocation2 + $0x18] sm:$0xff] %v387
        %395 = vst [vmem:[#allocation2 + $0x20] sm:$0xff] %v388
        %396 = vst [vmem:[#allocation2 + $0x28] sm:$0xff] %v389
        %397 = vst [vmem:[#allocation2 + $0x30] sm:$0xff] %v390
      $region40: #{net_forward.4} parent=31 // pred_fallthru
        _
      %p398 = scmp.eq.s32.totalorder %s19, 3
      // Predicated region
      $region41: #{net_forward.4} parent=31 // pred_check
        %p399 = pneg %p398
      $region42: #{net_forward.4} parent=31 // pred_check_branch
        %401 = sbr.rel (%p399) target = $region44
      $region43: #{net_forward.4} parent=31 // pred_region
        %v402 = vld [vmem:[#allocation2] sm:$0xff]
        %v403 = vld [vmem:[#allocation2 + $0x8] sm:$0xff]
        %v404 = vld [vmem:[#allocation2 + $0x10] sm:$0xff]
        %v405 = vld [vmem:[#allocation2 + $0x18] sm:$0xff]
        %v406 = vld [vmem:[#allocation2 + $0x20] sm:$0xff]
        %v407 = vld [vmem:[#allocation2 + $0x28] sm:$0xff]
        %v408 = vld [vmem:[#allocation2 + $0x30] sm:$0xff]
        %v409 = vld [vmem:[%s2] sm:$0x1]
        %v411 = vlaneseq
        %v412 = vshrl.u32 %v411, 7
        %v413 = vsub.s32 0, %v412
        %v414 = vrot.slane %v409, %v413
        %v416 = vadd.f32 %v402, %v414
        %v417 = vadd.f32 %v403, %v414
        %v418 = vadd.f32 %v404, %v414
        %v419 = vadd.f32 %v405, %v414
        %v420 = vadd.f32 %v406, %v414
        %v421 = vadd.f32 %v407, %v414
        %v422 = vadd.f32 %v408, %v414
        %v423 = vmax.f32 %v416, 0.0
        %v424 = vmax.f32 %v417, 0.0
        %v425 = vmax.f32 %v418, 0.0
        %v426 = vmax.f32 %v419, 0.0
        %v427 = vmax.f32 %v420, 0.0
        %v428 = vmax.f32 %v421, 0.0
        %v429 = vmax.f32 %v422, 0.0
        %430 = vst [vmem:[%s201] sm:$0xff] %v423
        %431 = vst [vmem:[%s201 + $0x8] sm:$0xff] %v424
        %432 = vst [vmem:[%s201 + $0x10] sm:$0xff] %v425
        %433 = vst [vmem:[%s201 + $0x18] sm:$0xff] %v426
        %434 = vst [vmem:[%s201 + $0x20] sm:$0xff] %v427
        %435 = vst [vmem:[%s201 + $0x28] sm:$0xff] %v428
        %436 = vst [vmem:[%s201 + $0x30] sm:$0xff] %v429
      $region44: #{net_forward.4} parent=31 // pred_fallthru
        _
      %s437 = smul.u32 7, %s18
      %p438 = scmp.lt.s32.totalorder %s437, 6
      %s439 = scalar_select %p438, %s437, 6
      %s440 = smul.addr %s439, 8
      %s441 = scalar_lea.vmem %s3, %s440
      // Predicated region
      $region45: #{net_forward.4} parent=31 // pred_check
        %p442 = pneg %p114
      $region46: #{net_forward.4} parent=31 // pred_check_branch
        %444 = sbr.rel (%p442) target = $region48
      $region47: #{net_forward.4} parent=31 // pred_region
        %s445 = smul.u32 7, %s18
      $region48: #{net_forward.4} parent=31 // pred_fallthru
        _
      // Predicated region
      $region49: #{net_forward.4} parent=31 // pred_check
        %p446 = pneg %p114
      $region50: #{net_forward.4} parent=31 // pred_check_branch
        %448 = sbr.rel (%p446) target = $region52
      $region51: #{net_forward.4} parent=31 // pred_region
        %s449 = smul.u32 7, %s18
        %p450 = scmp.lt.s32.totalorder %s449, 6
        %s451 = scalar_select %p450, %s449, 6
        %s452 = smul.addr %s451, 8
        %s453 = scalar_lea.vmem %s3, %s452
      $region52: #{net_forward.4} parent=31 // pred_fallthru
        _
    $region32: #{net_forward.4} parent=5 // pred_fallthru
      _
    %p454 = scmp.le.s32.totalorder 2, %s9
    // Predicated region
    $region53: #{net_forward.4} parent=5 // pred_check
      %p455 = pneg %p454
    $region54: #{net_forward.4} parent=5 // pred_check_branch
      %457 = sbr.rel (%p455) target = $region56
    $region55: #{net_forward.4} parent=5 // pred_region
      %s458 = ssub.s32 %s9, 2
    $region56: #{net_forward.4} parent=5 // pred_fallthru
      _
  $region6: #{net_forward.4} parent=0 // loop_footer
    %s13 = sadd.s32 1, %s9
  $region7: #{net_forward.4} parent=0 // loop_footer_branch
    %8 = sbr.rel target = $region3
  $region8: #{net_forward.4} parent=0 // loop_exit
    _

// kernel: net_forward.5
$region0: #{net_forward.5}
  #allocation0 [shape = 'u32[]', space=smem, size = 0x4, offset = 0x4, fixed_abs, tag = 'smem constant byte address 0x4 - core index']
  #allocation1 [shape = 'u32[144,128]{1,0:T(1,128)}', space=vmem, size = 0x12000, scoped, tag = 'internal scratch']
  %s0 = inlined_call_operand.vmem [shape: f32[8,3200], index: 0, kind: input, shape index: {}]
  %s1 = inlined_call_operand.vmem [shape: f32[3200,128], index: 1, kind: input, shape index: {}]
  %s2 = inlined_call_operand.vmem [shape: f32[1,128], index: 2, kind: input, shape index: {}]
  %s3 = inlined_call_operand.vmem [shape: f32[128,128], index: 3, kind: input, shape index: {}]
  %s4 = inlined_call_operand.vmem [shape: f32[1,128], index: 4, kind: input, shape index: {}]
  %s5 = inlined_call_operand.vmem [shape: f32[128,128], index: 5, kind: input, shape index: {}]
  %s6 = inlined_call_operand.vmem [shape: f32[1,128], index: 6, kind: input, shape index: {}]
  %s7 = inlined_call_operand.vmem [shape: f32[8,128], index: 7, kind: output, shape index: {}]
  %s8 = sld [smem:[#allocation0]]
  $region38: #{net_forward.5} parent=0
    _
  %s10 = ssub.s32 1, %s8
  %s11 = scalar_select 0, %s10, %s8
  // Predicated region
  $region2: #{net_forward.5} parent=0 // pred_check
    _
  $region3: #{net_forward.5} parent=0 // pred_check_branch
    %13 = sbr.rel (0) target = $region5
  $region4: #{net_forward.5} parent=0 // pred_region
    _
  $region5: #{net_forward.5} parent=0 // pred_fallthru
    _
  // Predicated region
  $region6: #{net_forward.5} parent=0 // pred_check
    _
  $region7: #{net_forward.5} parent=0 // pred_check_branch
    %15 = sbr.rel (0) target = $region9
  $region8: #{net_forward.5} parent=0 // pred_region
    _
  $region9: #{net_forward.5} parent=0 // pred_fallthru
    _
  // Predicated region
  $region10: #{net_forward.5} parent=0 // pred_check
    _
  $region11: #{net_forward.5} parent=0 // pred_check_branch
    %17 = sbr.rel (0) target = $region13
  $region12: #{net_forward.5} parent=0 // pred_region
    _
  $region13: #{net_forward.5} parent=0 // pred_fallthru
    _
  // Predicated region
  $region14: #{net_forward.5} parent=0 // pred_check
    _
  $region15: #{net_forward.5} parent=0 // pred_check_branch
    %19 = sbr.rel (0) target = $region17
  $region16: #{net_forward.5} parent=0 // pred_region
    _
  $region17: #{net_forward.5} parent=0 // pred_fallthru
    _
  // Predicated region
  $region18: #{net_forward.5} parent=0 // pred_check
    _
  $region19: #{net_forward.5} parent=0 // pred_check_branch
    %21 = sbr.rel (0) target = $region21
  $region20: #{net_forward.5} parent=0 // pred_region
    _
  $region21: #{net_forward.5} parent=0 // pred_fallthru
    _
  // Predicated region
  $region22: #{net_forward.5} parent=0 // pred_check
    _
  $region23: #{net_forward.5} parent=0 // pred_check_branch
    %23 = sbr.rel (0) target = $region25
  $region24: #{net_forward.5} parent=0 // pred_region
    _
  $region25: #{net_forward.5} parent=0 // pred_fallthru
    _
  // Predicated region
  $region26: #{net_forward.5} parent=0 // pred_check
    _
  $region27: #{net_forward.5} parent=0 // pred_check_branch
    %25 = sbr.rel (0) target = $region29
  $region28: #{net_forward.5} parent=0 // pred_region
    _
  $region29: #{net_forward.5} parent=0 // pred_fallthru
    _
  %v26 = vld [vmem:[%s0] sm:$0xff]
  %v27 = vld [vmem:[%s0 + $0x8] sm:$0xff]
  %v28 = vld [vmem:[%s0 + $0x10] sm:$0xff]
  %v29 = vld [vmem:[%s0 + $0x18] sm:$0xff]
  %v30 = vld [vmem:[%s0 + $0x20] sm:$0xff]
  %v31 = vld [vmem:[%s0 + $0x28] sm:$0xff]
  %v32 = vld [vmem:[%s0 + $0x30] sm:$0xff]
  %v33 = vld [vmem:[%s0 + $0x38] sm:$0xff]
  %v34 = vld [vmem:[%s0 + $0x40] sm:$0xff]
  %v35 = vld [vmem:[%s0 + $0x48] sm:$0xff]
  %v36 = vld [vmem:[%s0 + $0x50] sm:$0xff]
  %v37 = vld [vmem:[%s0 + $0x58] sm:$0xff]
  %v38 = vld [vmem:[%s0 + $0x60] sm:$0xff]
  %v39 = vld [vmem:[%s0 + $0x68] sm:$0xff]
  %v40 = vld [vmem:[%s0 + $0x70] sm:$0xff]
  %v41 = vld [vmem:[%s0 + $0x78] sm:$0xff]
  %v42 = vld [vmem:[%s0 + $0x80] sm:$0xff]
  %v43 = vld [vmem:[%s0 + $0x88] sm:$0xff]
  %v44 = vld [vmem:[%s0 + $0x90] sm:$0xff]
  %v45 = vld [vmem:[%s0 + $0x98] sm:$0xff]
  %v46 = vld [vmem:[%s0 + $0xa0] sm:$0xff]
  %v47 = vld [vmem:[%s0 + $0xa8] sm:$0xff]
  %v48 = vld [vmem:[%s0 + $0xb0] sm:$0xff]
  %v49 = vld [vmem:[%s0 + $0xb8] sm:$0xff]
  %v50 = vld [vmem:[%s0 + $0xc0] sm:$0xff]
  %v51 = vld [vmem:[%s1] sm:$0xff]
  %v52 = vld [vmem:[%s1 + $0x8] sm:$0xff]
  %v53 = vld [vmem:[%s1 + $0x10] sm:$0xff]
  %v54 = vld [vmem:[%s1 + $0x18] sm:$0xff]
  %v55 = vld [vmem:[%s1 + $0x20] sm:$0xff]
  %v56 = vld [vmem:[%s1 + $0x28] sm:$0xff]
  %v57 = vld [vmem:[%s1 + $0x30] sm:$0xff]
  %v58 = vld [vmem:[%s1 + $0x38] sm:$0xff]
  %v59 = vld [vmem:[%s1 + $0x40] sm:$0xff]
  %v60 = vld [vmem:[%s1 + $0x48] sm:$0xff]
  %v61 = vld [vmem:[%s1 + $0x50] sm:$0xff]
  %v62 = vld [vmem:[%s1 + $0x58] sm:$0xff]
  %v63 = vld [vmem:[%s1 + $0x60] sm:$0xff]
  %v64 = vld [vmem:[%s1 + $0x68] sm:$0xff]
  %v65 = vld [vmem:[%s1 + $0x70] sm:$0xff]
  %v66 = vld [vmem:[%s1 + $0x78] sm:$0xff]
  %v67 = vld [vmem:[%s1 + $0x80] sm:$0xff]
  %v68 = vld [vmem:[%s1 + $0x88] sm:$0xff]
  %v69 = vld [vmem:[%s1 + $0x90] sm:$0xff]
  %v70 = vld [vmem:[%s1 + $0x98] sm:$0xff]
  %v71 = vld [vmem:[%s1 + $0xa0] sm:$0xff]
  %v72 = vld [vmem:[%s1 + $0xa8] sm:$0xff]
  %v73 = vld [vmem:[%s1 + $0xb0] sm:$0xff]
  %v74 = vld [vmem:[%s1 + $0xb8] sm:$0xff]
  %v75 = vld [vmem:[%s1 + $0xc0] sm:$0xff]
  %v76 = vld [vmem:[%s1 + $0xc8] sm:$0xff]
  %v77 = vld [vmem:[%s1 + $0xd0] sm:$0xff]
  %v78 = vld [vmem:[%s1 + $0xd8] sm:$0xff]
  %v79 = vld [vmem:[%s1 + $0xe0] sm:$0xff]
  %v80 = vld [vmem:[%s1 + $0xe8] sm:$0xff]
  %v81 = vld [vmem:[%s1 + $0xf0] sm:$0xff]
  %v82 = vld [vmem:[%s1 + $0xf8] sm:$0xff]
  %v83 = vld [vmem:[%s1 + $0x100] sm:$0xff]
  %v84 = vld [vmem:[%s1 + $0x108] sm:$0xff]
  %v85 = vld [vmem:[%s1 + $0x110] sm:$0xff]
  %v86 = vld [vmem:[%s1 + $0x118] sm:$0xff]
  %v87 = vld [vmem:[%s1 + $0x120] sm:$0xff]
  %v88 = vld [vmem:[%s1 + $0x128] sm:$0xff]
  %v89 = vld [vmem:[%s1 + $0x130] sm:$0xff]
  %v90 = vld [vmem:[%s1 + $0x138] sm:$0xff]
  %v91 = vld [vmem:[%s1 + $0x140] sm:$0xff]
  %v92 = vld [vmem:[%s1 + $0x148] sm:$0xff]
  %v93 = vld [vmem:[%s1 + $0x150] sm:$0xff]
  %v94 = vld [vmem:[%s1 + $0x158] sm:$0xff]
  %v95 = vld [vmem:[%s1 + $0x160] sm:$0xff]
  %v96 = vld [vmem:[%s1 + $0x168] sm:$0xff]
  %v97 = vld [vmem:[%s1 + $0x170] sm:$0xff]
  %v98 = vld [vmem:[%s1 + $0x178] sm:$0xff]
  %v99 = vld [vmem:[%s1 + $0x180] sm:$0xff]
  %v100 = vld [vmem:[%s1 + $0x188] sm:$0xff]
  %v101 = vld [vmem:[%s1 + $0x190] sm:$0xff]
  %v102 = vld [vmem:[%s1 + $0x198] sm:$0xff]
  %v103 = vld [vmem:[%s1 + $0x1a0] sm:$0xff]
  %v104 = vld [vmem:[%s1 + $0x1a8] sm:$0xff]
  %v105 = vld [vmem:[%s1 + $0x1b0] sm:$0xff]
  %v106 = vld [vmem:[%s1 + $0x1b8] sm:$0xff]
  %v107 = vld [vmem:[%s1 + $0x1c0] sm:$0xff]
  %v108 = vld [vmem:[%s1 + $0x1c8] sm:$0xff]
  %v109 = vld [vmem:[%s1 + $0x1d0] sm:$0xff]
  %v110 = vld [vmem:[%s1 + $0x1d8] sm:$0xff]
  %v111 = vld [vmem:[%s1 + $0x1e0] sm:$0xff]
  %v112 = vld [vmem:[%s1 + $0x1e8] sm:$0xff]
  %v113 = vld [vmem:[%s1 + $0x1f0] sm:$0xff]
  %v114 = vld [vmem:[%s1 + $0x1f8] sm:$0xff]
  %v115 = vld [vmem:[%s1 + $0x200] sm:$0xff]
  %v116 = vld [vmem:[%s1 + $0x208] sm:$0xff]
  %v117 = vld [vmem:[%s1 + $0x210] sm:$0xff]
  %v118 = vld [vmem:[%s1 + $0x218] sm:$0xff]
  %v119 = vld [vmem:[%s1 + $0x220] sm:$0xff]
  %v120 = vld [vmem:[%s1 + $0x228] sm:$0xff]
  %v121 = vld [vmem:[%s1 + $0x230] sm:$0xff]
  %v122 = vld [vmem:[%s1 + $0x238] sm:$0xff]
  %v123 = vld [vmem:[%s1 + $0x240] sm:$0xff]
  %v124 = vld [vmem:[%s1 + $0x248] sm:$0xff]
  %v125 = vld [vmem:[%s1 + $0x250] sm:$0xff]
  %v126 = vld [vmem:[%s1 + $0x258] sm:$0xff]
  %v127 = vld [vmem:[%s1 + $0x260] sm:$0xff]
  %v128 = vld [vmem:[%s1 + $0x268] sm:$0xff]
  %v129 = vld [vmem:[%s1 + $0x270] sm:$0xff]
  %v130 = vld [vmem:[%s1 + $0x278] sm:$0xff]
  %v131 = vld [vmem:[%s1 + $0x280] sm:$0xff]
  %v132 = vld [vmem:[%s1 + $0x288] sm:$0xff]
  %v133 = vld [vmem:[%s1 + $0x290] sm:$0xff]
  %v134 = vld [vmem:[%s1 + $0x298] sm:$0xff]
  %v135 = vld [vmem:[%s1 + $0x2a0] sm:$0xff]
  %v136 = vld [vmem:[%s1 + $0x2a8] sm:$0xff]
  %v137 = vld [vmem:[%s1 + $0x2b0] sm:$0xff]
  %v138 = vld [vmem:[%s1 + $0x2b8] sm:$0xff]
  %v139 = vld [vmem:[%s1 + $0x2c0] sm:$0xff]
  %v140 = vld [vmem:[%s1 + $0x2c8] sm:$0xff]
  %v141 = vld [vmem:[%s1 + $0x2d0] sm:$0xff]
  %v142 = vld [vmem:[%s1 + $0x2d8] sm:$0xff]
  %v143 = vld [vmem:[%s1 + $0x2e0] sm:$0xff]
  %v144 = vld [vmem:[%s1 + $0x2e8] sm:$0xff]
  %v145 = vld [vmem:[%s1 + $0x2f0] sm:$0xff]
  %v146 = vld [vmem:[%s1 + $0x2f8] sm:$0xff]
  %v147 = vld [vmem:[%s1 + $0x300] sm:$0xff]
  %v148 = vld [vmem:[%s1 + $0x308] sm:$0xff]
  %v149 = vld [vmem:[%s1 + $0x310] sm:$0xff]
  %v150 = vld [vmem:[%s1 + $0x318] sm:$0xff]
  %v151 = vld [vmem:[%s1 + $0x320] sm:$0xff]
  %v152 = vld [vmem:[%s1 + $0x328] sm:$0xff]
  %v153 = vld [vmem:[%s1 + $0x330] sm:$0xff]
  %v154 = vld [vmem:[%s1 + $0x338] sm:$0xff]
  %v155 = vld [vmem:[%s1 + $0x340] sm:$0xff]
  %v156 = vld [vmem:[%s1 + $0x348] sm:$0xff]
  %v157 = vld [vmem:[%s1 + $0x350] sm:$0xff]
  %v158 = vld [vmem:[%s1 + $0x358] sm:$0xff]
  %v159 = vld [vmem:[%s1 + $0x360] sm:$0xff]
  %v160 = vld [vmem:[%s1 + $0x368] sm:$0xff]
  %v161 = vld [vmem:[%s1 + $0x370] sm:$0xff]
  %v162 = vld [vmem:[%s1 + $0x378] sm:$0xff]
  %v163 = vld [vmem:[%s1 + $0x380] sm:$0xff]
  %v164 = vld [vmem:[%s1 + $0x388] sm:$0xff]
  %v165 = vld [vmem:[%s1 + $0x390] sm:$0xff]
  %v166 = vld [vmem:[%s1 + $0x398] sm:$0xff]
  %v167 = vld [vmem:[%s1 + $0x3a0] sm:$0xff]
  %v168 = vld [vmem:[%s1 + $0x3a8] sm:$0xff]
  %v169 = vld [vmem:[%s1 + $0x3b0] sm:$0xff]
  %v170 = vld [vmem:[%s1 + $0x3b8] sm:$0xff]
  %v171 = vld [vmem:[%s1 + $0x3c0] sm:$0xff]
  %v172 = vld [vmem:[%s1 + $0x3c8] sm:$0xff]
  %v173 = vld [vmem:[%s1 + $0x3d0] sm:$0xff]
  %v174 = vld [vmem:[%s1 + $0x3d8] sm:$0xff]
  %v175 = vld [vmem:[%s1 + $0x3e0] sm:$0xff]
  %v176 = vld [vmem:[%s1 + $0x3e8] sm:$0xff]
  %v177 = vld [vmem:[%s1 + $0x3f0] sm:$0xff]
  %v178 = vld [vmem:[%s1 + $0x3f8] sm:$0xff]
  %v179 = vld [vmem:[%s1 + $0x400] sm:$0xff]
  %v180 = vld [vmem:[%s1 + $0x408] sm:$0xff]
  %v181 = vld [vmem:[%s1 + $0x410] sm:$0xff]
  %v182 = vld [vmem:[%s1 + $0x418] sm:$0xff]
  %v183 = vld [vmem:[%s1 + $0x420] sm:$0xff]
  %v184 = vld [vmem:[%s1 + $0x428] sm:$0xff]
  %v185 = vld [vmem:[%s1 + $0x430] sm:$0xff]
  %v186 = vld [vmem:[%s1 + $0x438] sm:$0xff]
  %v187 = vld [vmem:[%s1 + $0x440] sm:$0xff]
  %v188 = vld [vmem:[%s1 + $0x448] sm:$0xff]
  %v189 = vld [vmem:[%s1 + $0x450] sm:$0xff]
  %v190 = vld [vmem:[%s1 + $0x458] sm:$0xff]
  %v191 = vld [vmem:[%s1 + $0x460] sm:$0xff]
  %v192 = vld [vmem:[%s1 + $0x468] sm:$0xff]
  %v193 = vld [vmem:[%s1 + $0x470] sm:$0xff]
  %v194 = vld [vmem:[%s1 + $0x478] sm:$0xff]
  %v195 = vld [vmem:[%s1 + $0x480] sm:$0xff]
  %v196 = vld [vmem:[%s1 + $0x488] sm:$0xff]
  %v197 = vld [vmem:[%s1 + $0x490] sm:$0xff]
  %v198 = vld [vmem:[%s1 + $0x498] sm:$0xff]
  %v199 = vld [vmem:[%s1 + $0x4a0] sm:$0xff]
  %v200 = vld [vmem:[%s1 + $0x4a8] sm:$0xff]
  %v201 = vld [vmem:[%s1 + $0x4b0] sm:$0xff]
  %v202 = vld [vmem:[%s1 + $0x4b8] sm:$0xff]
  %v203 = vld [vmem:[%s1 + $0x4c0] sm:$0xff]
  %v204 = vld [vmem:[%s1 + $0x4c8] sm:$0xff]
  %v205 = vld [vmem:[%s1 + $0x4d0] sm:$0xff]
  %v206 = vld [vmem:[%s1 + $0x4d8] sm:$0xff]
  %v207 = vld [vmem:[%s1 + $0x4e0] sm:$0xff]
  %v208 = vld [vmem:[%s1 + $0x4e8] sm:$0xff]
  %v209 = vld [vmem:[%s1 + $0x4f0] sm:$0xff]
  %v210 = vld [vmem:[%s1 + $0x4f8] sm:$0xff]
  %v211 = vld [vmem:[%s1 + $0x500] sm:$0xff]
  %v212 = vld [vmem:[%s1 + $0x508] sm:$0xff]
  %v213 = vld [vmem:[%s1 + $0x510] sm:$0xff]
  %v214 = vld [vmem:[%s1 + $0x518] sm:$0xff]
  %v215 = vld [vmem:[%s1 + $0x520] sm:$0xff]
  %v216 = vld [vmem:[%s1 + $0x528] sm:$0xff]
  %v217 = vld [vmem:[%s1 + $0x530] sm:$0xff]
  %v218 = vld [vmem:[%s1 + $0x538] sm:$0xff]
  %v219 = vld [vmem:[%s1 + $0x540] sm:$0xff]
  %v220 = vld [vmem:[%s1 + $0x548] sm:$0xff]
  %v221 = vld [vmem:[%s1 + $0x550] sm:$0xff]
  %v222 = vld [vmem:[%s1 + $0x558] sm:$0xff]
  %v223 = vld [vmem:[%s1 + $0x560] sm:$0xff]
  %v224 = vld [vmem:[%s1 + $0x568] sm:$0xff]
  %v225 = vld [vmem:[%s1 + $0x570] sm:$0xff]
  %v226 = vld [vmem:[%s1 + $0x578] sm:$0xff]
  %v227 = vld [vmem:[%s1 + $0x580] sm:$0xff]
  %v228 = vld [vmem:[%s1 + $0x588] sm:$0xff]
  %v229 = vld [vmem:[%s1 + $0x590] sm:$0xff]
  %v230 = vld [vmem:[%s1 + $0x598] sm:$0xff]
  %v231 = vld [vmem:[%s1 + $0x5a0] sm:$0xff]
  %v232 = vld [vmem:[%s1 + $0x5a8] sm:$0xff]
  %v233 = vld [vmem:[%s1 + $0x5b0] sm:$0xff]
  %v234 = vld [vmem:[%s1 + $0x5b8] sm:$0xff]
  %v235 = vld [vmem:[%s1 + $0x5c0] sm:$0xff]
  %v236 = vld [vmem:[%s1 + $0x5c8] sm:$0xff]
  %v237 = vld [vmem:[%s1 + $0x5d0] sm:$0xff]
  %v238 = vld [vmem:[%s1 + $0x5d8] sm:$0xff]
  %v239 = vld [vmem:[%s1 + $0x5e0] sm:$0xff]
  %v240 = vld [vmem:[%s1 + $0x5e8] sm:$0xff]
  %v241 = vld [vmem:[%s1 + $0x5f0] sm:$0xff]
  %v242 = vld [vmem:[%s1 + $0x5f8] sm:$0xff]
  %v243 = vld [vmem:[%s1 + $0x600] sm:$0xff]
  %v244 = vld [vmem:[%s1 + $0x608] sm:$0xff]
  %v245 = vld [vmem:[%s1 + $0x610] sm:$0xff]
  %v246 = vld [vmem:[%s1 + $0x618] sm:$0xff]
  %v247 = vld [vmem:[%s1 + $0x620] sm:$0xff]
  %v248 = vld [vmem:[%s1 + $0x628] sm:$0xff]
  %v249 = vld [vmem:[%s1 + $0x630] sm:$0xff]
  %v250 = vld [vmem:[%s1 + $0x638] sm:$0xff]
  %v251 = vld [vmem:[%s1 + $0x640] sm:$0xff]
  %v252 = vld [vmem:[%s1 + $0x648] sm:$0xff]
  %v253 = vld [vmem:[%s1 + $0x650] sm:$0xff]
  %v254 = vld [vmem:[%s1 + $0x658] sm:$0xff]
  %v255 = vld [vmem:[%s1 + $0x660] sm:$0xff]
  %v256 = vld [vmem:[%s1 + $0x668] sm:$0xff]
  %v257 = vld [vmem:[%s1 + $0x670] sm:$0xff]
  %v258 = vld [vmem:[%s1 + $0x678] sm:$0xff]
  %v259 = vld [vmem:[%s1 + $0x680] sm:$0xff]
  %v260 = vld [vmem:[%s1 + $0x688] sm:$0xff]
  %v261 = vld [vmem:[%s1 + $0x690] sm:$0xff]
  %v262 = vld [vmem:[%s1 + $0x698] sm:$0xff]
  %v263 = vld [vmem:[%s1 + $0x6a0] sm:$0xff]
  %v264 = vld [vmem:[%s1 + $0x6a8] sm:$0xff]
  %v265 = vld [vmem:[%s1 + $0x6b0] sm:$0xff]
  %v266 = vld [vmem:[%s1 + $0x6b8] sm:$0xff]
  %v267 = vld [vmem:[%s1 + $0x6c0] sm:$0xff]
  %v268 = vld [vmem:[%s1 + $0x6c8] sm:$0xff]
  %v269 = vld [vmem:[%s1 + $0x6d0] sm:$0xff]
  %v270 = vld [vmem:[%s1 + $0x6d8] sm:$0xff]
  %v271 = vld [vmem:[%s1 + $0x6e0] sm:$0xff]
  %v272 = vld [vmem:[%s1 + $0x6e8] sm:$0xff]
  %v273 = vld [vmem:[%s1 + $0x6f0] sm:$0xff]
  %v274 = vld [vmem:[%s1 + $0x6f8] sm:$0xff]
  %v275 = vld [vmem:[%s1 + $0x700] sm:$0xff]
  %v276 = vld [vmem:[%s1 + $0x708] sm:$0xff]
  %v277 = vld [vmem:[%s1 + $0x710] sm:$0xff]
  %v278 = vld [vmem:[%s1 + $0x718] sm:$0xff]
  %v279 = vld [vmem:[%s1 + $0x720] sm:$0xff]
  %v280 = vld [vmem:[%s1 + $0x728] sm:$0xff]
  %v281 = vld [vmem:[%s1 + $0x730] sm:$0xff]
  %v282 = vld [vmem:[%s1 + $0x738] sm:$0xff]
  %v283 = vld [vmem:[%s1 + $0x740] sm:$0xff]
  %v284 = vld [vmem:[%s1 + $0x748] sm:$0xff]
  %v285 = vld [vmem:[%s1 + $0x750] sm:$0xff]
  %v286 = vld [vmem:[%s1 + $0x758] sm:$0xff]
  %v287 = vld [vmem:[%s1 + $0x760] sm:$0xff]
  %v288 = vld [vmem:[%s1 + $0x768] sm:$0xff]
  %v289 = vld [vmem:[%s1 + $0x770] sm:$0xff]
  %v290 = vld [vmem:[%s1 + $0x778] sm:$0xff]
  %v291 = vld [vmem:[%s1 + $0x780] sm:$0xff]
  %v292 = vld [vmem:[%s1 + $0x788] sm:$0xff]
  %v293 = vld [vmem:[%s1 + $0x790] sm:$0xff]
  %v294 = vld [vmem:[%s1 + $0x798] sm:$0xff]
  %v295 = vld [vmem:[%s1 + $0x7a0] sm:$0xff]
  %v296 = vld [vmem:[%s1 + $0x7a8] sm:$0xff]
  %v297 = vld [vmem:[%s1 + $0x7b0] sm:$0xff]
  %v298 = vld [vmem:[%s1 + $0x7b8] sm:$0xff]
  %v299 = vld [vmem:[%s1 + $0x7c0] sm:$0xff]
  %v300 = vld [vmem:[%s1 + $0x7c8] sm:$0xff]
  %v301 = vld [vmem:[%s1 + $0x7d0] sm:$0xff]
  %v302 = vld [vmem:[%s1 + $0x7d8] sm:$0xff]
  %v303 = vld [vmem:[%s1 + $0x7e0] sm:$0xff]
  %v304 = vld [vmem:[%s1 + $0x7e8] sm:$0xff]
  %v305 = vld [vmem:[%s1 + $0x7f0] sm:$0xff]
  %v306 = vld [vmem:[%s1 + $0x7f8] sm:$0xff]
  %v307 = vld [vmem:[%s1 + $0x800] sm:$0xff]
  %v308 = vld [vmem:[%s1 + $0x808] sm:$0xff]
  %v309 = vld [vmem:[%s1 + $0x810] sm:$0xff]
  %v310 = vld [vmem:[%s1 + $0x818] sm:$0xff]
  %v311 = vld [vmem:[%s1 + $0x820] sm:$0xff]
  %v312 = vld [vmem:[%s1 + $0x828] sm:$0xff]
  %v313 = vld [vmem:[%s1 + $0x830] sm:$0xff]
  %v314 = vld [vmem:[%s1 + $0x838] sm:$0xff]
  %v315 = vld [vmem:[%s1 + $0x840] sm:$0xff]
  %v316 = vld [vmem:[%s1 + $0x848] sm:$0xff]
  %v317 = vld [vmem:[%s1 + $0x850] sm:$0xff]
  %v318 = vld [vmem:[%s1 + $0x858] sm:$0xff]
  %v319 = vld [vmem:[%s1 + $0x860] sm:$0xff]
  %v320 = vld [vmem:[%s1 + $0x868] sm:$0xff]
  %v321 = vld [vmem:[%s1 + $0x870] sm:$0xff]
  %v322 = vld [vmem:[%s1 + $0x878] sm:$0xff]
  %v323 = vld [vmem:[%s1 + $0x880] sm:$0xff]
  %v324 = vld [vmem:[%s1 + $0x888] sm:$0xff]
  %v325 = vld [vmem:[%s1 + $0x890] sm:$0xff]
  %v326 = vld [vmem:[%s1 + $0x898] sm:$0xff]
  %v327 = vld [vmem:[%s1 + $0x8a0] sm:$0xff]
  %v328 = vld [vmem:[%s1 + $0x8a8] sm:$0xff]
  %v329 = vld [vmem:[%s1 + $0x8b0] sm:$0xff]
  %v330 = vld [vmem:[%s1 + $0x8b8] sm:$0xff]
  %v331 = vld [vmem:[%s1 + $0x8c0] sm:$0xff]
  %v332 = vld [vmem:[%s1 + $0x8c8] sm:$0xff]
  %v333 = vld [vmem:[%s1 + $0x8d0] sm:$0xff]
  %v334 = vld [vmem:[%s1 + $0x8d8] sm:$0xff]
  %v335 = vld [vmem:[%s1 + $0x8e0] sm:$0xff]
  %v336 = vld [vmem:[%s1 + $0x8e8] sm:$0xff]
  %v337 = vld [vmem:[%s1 + $0x8f0] sm:$0xff]
  %v338 = vld [vmem:[%s1 + $0x8f8] sm:$0xff]
  %v339 = vld [vmem:[%s1 + $0x900] sm:$0xff]
  %v340 = vld [vmem:[%s1 + $0x908] sm:$0xff]
  %v341 = vld [vmem:[%s1 + $0x910] sm:$0xff]
  %v342 = vld [vmem:[%s1 + $0x918] sm:$0xff]
  %v343 = vld [vmem:[%s1 + $0x920] sm:$0xff]
  %v344 = vld [vmem:[%s1 + $0x928] sm:$0xff]
  %v345 = vld [vmem:[%s1 + $0x930] sm:$0xff]
  %v346 = vld [vmem:[%s1 + $0x938] sm:$0xff]
  %v347 = vld [vmem:[%s1 + $0x940] sm:$0xff]
  %v348 = vld [vmem:[%s1 + $0x948] sm:$0xff]
  %v349 = vld [vmem:[%s1 + $0x950] sm:$0xff]
  %v350 = vld [vmem:[%s1 + $0x958] sm:$0xff]
  %v351 = vld [vmem:[%s1 + $0x960] sm:$0xff]
  %v352 = vld [vmem:[%s1 + $0x968] sm:$0xff]
  %v353 = vld [vmem:[%s1 + $0x970] sm:$0xff]
  %v354 = vld [vmem:[%s1 + $0x978] sm:$0xff]
  %v355 = vld [vmem:[%s1 + $0x980] sm:$0xff]
  %v356 = vld [vmem:[%s1 + $0x988] sm:$0xff]
  %v357 = vld [vmem:[%s1 + $0x990] sm:$0xff]
  %v358 = vld [vmem:[%s1 + $0x998] sm:$0xff]
  %v359 = vld [vmem:[%s1 + $0x9a0] sm:$0xff]
  %v360 = vld [vmem:[%s1 + $0x9a8] sm:$0xff]
  %v361 = vld [vmem:[%s1 + $0x9b0] sm:$0xff]
  %v362 = vld [vmem:[%s1 + $0x9b8] sm:$0xff]
  %v363 = vld [vmem:[%s1 + $0x9c0] sm:$0xff]
  %v364 = vld [vmem:[%s1 + $0x9c8] sm:$0xff]
  %v365 = vld [vmem:[%s1 + $0x9d0] sm:$0xff]
  %v366 = vld [vmem:[%s1 + $0x9d8] sm:$0xff]
  %v367 = vld [vmem:[%s1 + $0x9e0] sm:$0xff]
  %v368 = vld [vmem:[%s1 + $0x9e8] sm:$0xff]
  %v369 = vld [vmem:[%s1 + $0x9f0] sm:$0xff]
  %v370 = vld [vmem:[%s1 + $0x9f8] sm:$0xff]
  %v371 = vld [vmem:[%s1 + $0xa00] sm:$0xff]
  %v372 = vld [vmem:[%s1 + $0xa08] sm:$0xff]
  %v373 = vld [vmem:[%s1 + $0xa10] sm:$0xff]
  %v374 = vld [vmem:[%s1 + $0xa18] sm:$0xff]
  %v375 = vld [vmem:[%s1 + $0xa20] sm:$0xff]
  %v376 = vld [vmem:[%s1 + $0xa28] sm:$0xff]
  %v377 = vld [vmem:[%s1 + $0xa30] sm:$0xff]
  %v378 = vld [vmem:[%s1 + $0xa38] sm:$0xff]
  %v379 = vld [vmem:[%s1 + $0xa40] sm:$0xff]
  %v380 = vld [vmem:[%s1 + $0xa48] sm:$0xff]
  %v381 = vld [vmem:[%s1 + $0xa50] sm:$0xff]
  %v382 = vld [vmem:[%s1 + $0xa58] sm:$0xff]
  %v383 = vld [vmem:[%s1 + $0xa60] sm:$0xff]
  %v384 = vld [vmem:[%s1 + $0xa68] sm:$0xff]
  %v385 = vld [vmem:[%s1 + $0xa70] sm:$0xff]
  %v386 = vld [vmem:[%s1 + $0xa78] sm:$0xff]
  %v387 = vld [vmem:[%s1 + $0xa80] sm:$0xff]
  %v388 = vld [vmem:[%s1 + $0xa88] sm:$0xff]
  %v389 = vld [vmem:[%s1 + $0xa90] sm:$0xff]
  %v390 = vld [vmem:[%s1 + $0xa98] sm:$0xff]
  %v391 = vld [vmem:[%s1 + $0xaa0] sm:$0xff]
  %v392 = vld [vmem:[%s1 + $0xaa8] sm:$0xff]
  %v393 = vld [vmem:[%s1 + $0xab0] sm:$0xff]
  %v394 = vld [vmem:[%s1 + $0xab8] sm:$0xff]
  %v395 = vld [vmem:[%s1 + $0xac0] sm:$0xff]
  %v396 = vld [vmem:[%s1 + $0xac8] sm:$0xff]
  %v397 = vld [vmem:[%s1 + $0xad0] sm:$0xff]
  %v398 = vld [vmem:[%s1 + $0xad8] sm:$0xff]
  %v399 = vld [vmem:[%s1 + $0xae0] sm:$0xff]
  %v400 = vld [vmem:[%s1 + $0xae8] sm:$0xff]
  %v401 = vld [vmem:[%s1 + $0xaf0] sm:$0xff]
  %v402 = vld [vmem:[%s1 + $0xaf8] sm:$0xff]
  %v403 = vld [vmem:[%s1 + $0xb00] sm:$0xff]
  %v404 = vld [vmem:[%s1 + $0xb08] sm:$0xff]
  %v405 = vld [vmem:[%s1 + $0xb10] sm:$0xff]
  %v406 = vld [vmem:[%s1 + $0xb18] sm:$0xff]
  %v407 = vld [vmem:[%s1 + $0xb20] sm:$0xff]
  %v408 = vld [vmem:[%s1 + $0xb28] sm:$0xff]
  %v409 = vld [vmem:[%s1 + $0xb30] sm:$0xff]
  %v410 = vld [vmem:[%s1 + $0xb38] sm:$0xff]
  %v411 = vld [vmem:[%s1 + $0xb40] sm:$0xff]
  %v412 = vld [vmem:[%s1 + $0xb48] sm:$0xff]
  %v413 = vld [vmem:[%s1 + $0xb50] sm:$0xff]
  %v414 = vld [vmem:[%s1 + $0xb58] sm:$0xff]
  %v415 = vld [vmem:[%s1 + $0xb60] sm:$0xff]
  %v416 = vld [vmem:[%s1 + $0xb68] sm:$0xff]
  %v417 = vld [vmem:[%s1 + $0xb70] sm:$0xff]
  %v418 = vld [vmem:[%s1 + $0xb78] sm:$0xff]
  %v419 = vld [vmem:[%s1 + $0xb80] sm:$0xff]
  %v420 = vld [vmem:[%s1 + $0xb88] sm:$0xff]
  %v421 = vld [vmem:[%s1 + $0xb90] sm:$0xff]
  %v422 = vld [vmem:[%s1 + $0xb98] sm:$0xff]
  %v423 = vld [vmem:[%s1 + $0xba0] sm:$0xff]
  %v424 = vld [vmem:[%s1 + $0xba8] sm:$0xff]
  %v425 = vld [vmem:[%s1 + $0xbb0] sm:$0xff]
  %v426 = vld [vmem:[%s1 + $0xbb8] sm:$0xff]
  %v427 = vld [vmem:[%s1 + $0xbc0] sm:$0xff]
  %v428 = vld [vmem:[%s1 + $0xbc8] sm:$0xff]
  %v429 = vld [vmem:[%s1 + $0xbd0] sm:$0xff]
  %v430 = vld [vmem:[%s1 + $0xbd8] sm:$0xff]
  %v431 = vld [vmem:[%s1 + $0xbe0] sm:$0xff]
  %v432 = vld [vmem:[%s1 + $0xbe8] sm:$0xff]
  %v433 = vld [vmem:[%s1 + $0xbf0] sm:$0xff]
  %v434 = vld [vmem:[%s1 + $0xbf8] sm:$0xff]
  %v435 = vld [vmem:[%s1 + $0xc00] sm:$0xff]
  %v436 = vld [vmem:[%s1 + $0xc08] sm:$0xff]
  %v437 = vld [vmem:[%s1 + $0xc10] sm:$0xff]
  %v438 = vld [vmem:[%s1 + $0xc18] sm:$0xff]
  %v439 = vld [vmem:[%s1 + $0xc20] sm:$0xff]
  %v440 = vld [vmem:[%s1 + $0xc28] sm:$0xff]
  %v441 = vld [vmem:[%s1 + $0xc30] sm:$0xff]
  %v442 = vld [vmem:[%s1 + $0xc38] sm:$0xff]
  %v443 = vld [vmem:[%s1 + $0xc40] sm:$0xff]
  %v444 = vld [vmem:[%s1 + $0xc48] sm:$0xff]
  %v445 = vld [vmem:[%s1 + $0xc50] sm:$0xff]
  %v446 = vld [vmem:[%s1 + $0xc58] sm:$0xff]
  %v447 = vld [vmem:[%s1 + $0xc60] sm:$0xff]
  %v448 = vld [vmem:[%s1 + $0xc68] sm:$0xff]
  %v449 = vld [vmem:[%s1 + $0xc70] sm:$0xff]
  %v450 = vld [vmem:[%s1 + $0xc78] sm:$0xff]
  %v451 = vld [vmem:[%s2] sm:$0x1]
  %v453 = vlaneseq
  %v454 = vshrl.u32 %v453, 7
  %v455 = vsub.s32 0, %v454
  %v456 = vrot.slane %v451, %v455
  %458 = vmatprep.subr.mxu0 0.0
  %459 = vmatpush1.msra.mxu0 %v51
  %460 = vmatprep.subr.mxu0 0.0
  %461 = vmatpush1.msra.mxu0 %v52
  %462 = vmatprep.subr.mxu0 0.0
  %463 = vmatpush1.msra.mxu0 %v53
  %464 = vmatprep.subr.mxu0 0.0
  %465 = vmatpush1.msra.mxu0 %v54
  %466 = vmatprep.subr.mxu0 0.0
  %467 = vmatpush1.msra.mxu0 %v55
  %468 = vmatprep.subr.mxu0 0.0
  %469 = vmatpush1.msra.mxu0 %v56
  %470 = vmatprep.subr.mxu0 0.0
  %471 = vmatpush1.msra.mxu0 %v57
  %472 = vmatprep.subr.mxu0 0.0
  %473 = vmatpush1.msra.mxu0 %v58
  %474 = vmatprep.subr.mxu0 0.0
  %475 = vmatpush1.msra.mxu0 %v59
  %476 = vmatprep.subr.mxu0 0.0
  %477 = vmatpush1.msra.mxu0 %v60
  %478 = vmatprep.subr.mxu0 0.0
  %479 = vmatpush1.msra.mxu0 %v61
  %480 = vmatprep.subr.mxu0 0.0
  %481 = vmatpush1.msra.mxu0 %v62
  %482 = vmatprep.subr.mxu0 0.0
  %483 = vmatpush1.msra.mxu0 %v63
  %484 = vmatprep.subr.mxu0 0.0
  %485 = vmatpush1.msra.mxu0 %v64
  %486 = vmatprep.subr.mxu0 0.0
  %487 = vmatpush1.msra.mxu0 %v65
  %488 = vmatprep.subr.mxu0 0.0
  %489 = vmatpush1.msra.mxu0 %v66
  %490 = vmatprep.subr.mxu0 0.0
  %491 = vmatpush1.msra.mxu0 %v67
  %492 = vmatprep.subr.mxu0 0.0
  %493 = vmatpush1.msra.mxu0 %v68
  %494 = vmatprep.subr.mxu0 0.0
  %495 = vmatpush1.msra.mxu0 %v69
  %496 = vmatprep.subr.mxu0 0.0
  %497 = vmatpush1.msra.mxu0 %v70
  %498 = vmatprep.subr.mxu0 0.0
  %499 = vmatpush1.msra.mxu0 %v71
  %500 = vmatprep.subr.mxu0 0.0
  %501 = vmatpush1.msra.mxu0 %v72
  %502 = vmatprep.subr.mxu0 0.0
  %503 = vmatpush1.msra.mxu0 %v73
  %504 = vmatprep.subr.mxu0 0.0
  %505 = vmatpush1.msra.mxu0 %v74
  %506 = vmatprep.subr.mxu0 0.0
  %507 = vmatpush1.msra.mxu0 %v75
  %508 = vmatprep.subr.mxu0 0.0
  %509 = vmatpush1.msra.mxu0 %v76
  %510 = vmatprep.subr.mxu0 0.0
  %511 = vmatpush1.msra.mxu0 %v77
  %512 = vmatprep.subr.mxu0 0.0
  %513 = vmatpush1.msra.mxu0 %v78
  %514 = vmatprep.subr.mxu0 0.0
  %515 = vmatpush1.msra.mxu0 %v79
  %516 = vmatprep.subr.mxu0 0.0
  %517 = vmatpush1.msra.mxu0 %v80
  %518 = vmatprep.subr.mxu0 0.0
  %519 = vmatpush1.msra.mxu0 %v81
  %520 = vmatprep.subr.mxu0 0.0
  %521 = vmatpush1.msra.mxu0 %v82
  %522 = vmatprep.mubr.f32.mxu0 %v27
  %523 = vmatmul.mubr.f32.gmra.mrb[0].mxu0 %v26
  %v524 = vpop.f32.mrb[0].mxu0
  %v525 = vadd.f32 %v456, %v524
  %v526 = vpop.f32.mrb[0].mxu0
  %527 = vdwg.mxu0
  %528 = vmatprep.subr.mxu0 0.0
  %529 = vmatpush1.msra.mxu0 %v83
  %530 = vmatprep.subr.mxu0 0.0
  %531 = vmatpush1.msra.mxu0 %v84
  %532 = vmatprep.subr.mxu0 0.0
  %533 = vmatpush1.msra.mxu0 %v85
  %534 = vmatprep.subr.mxu0 0.0
  %535 = vmatpush1.msra.mxu0 %v86
  %536 = vmatprep.subr.mxu0 0.0
  %537 = vmatpush1.msra.mxu0 %v87
  %538 = vmatprep.subr.mxu0 0.0
  %539 = vmatpush1.msra.mxu0 %v88
  %540 = vmatprep.subr.mxu0 0.0
  %541 = vmatpush1.msra.mxu0 %v89
  %542 = vmatprep.subr.mxu0 0.0
  %543 = vmatpush1.msra.mxu0 %v90
  %544 = vmatprep.subr.mxu0 0.0
  %545 = vmatpush1.msra.mxu0 %v91
  %546 = vmatprep.subr.mxu0 0.0
  %547 = vmatpush1.msra.mxu0 %v92
  %548 = vmatprep.subr.mxu0 0.0
  %549 = vmatpush1.msra.mxu0 %v93
  %550 = vmatprep.subr.mxu0 0.0
  %551 = vmatpush1.msra.mxu0 %v94
  %552 = vmatprep.subr.mxu0 0.0
  %553 = vmatpush1.msra.mxu0 %v95
  %554 = vmatprep.subr.mxu0 0.0
  %555 = vmatpush1.msra.mxu0 %v96
  %556 = vmatprep.subr.mxu0 0.0
  %557 = vmatpush1.msra.mxu0 %v97
  %558 = vmatprep.subr.mxu0 0.0
  %559 = vmatpush1.msra.mxu0 %v98
  %560 = vmatprep.subr.mxu0 0.0
  %561 = vmatpush1.msra.mxu0 %v99
  %562 = vmatprep.subr.mxu0 0.0
  %563 = vmatpush1.msra.mxu0 %v100
  %564 = vmatprep.subr.mxu0 0.0
  %565 = vmatpush1.msra.mxu0 %v101
  %566 = vmatprep.subr.mxu0 0.0
  %567 = vmatpush1.msra.mxu0 %v102
  %568 = vmatprep.subr.mxu0 0.0
  %569 = vmatpush1.msra.mxu0 %v103
  %570 = vmatprep.subr.mxu0 0.0
  %571 = vmatpush1.msra.mxu0 %v104
  %572 = vmatprep.subr.mxu0 0.0
  %573 = vmatpush1.msra.mxu0 %v105
  %574 = vmatprep.subr.mxu0 0.0
  %575 = vmatpush1.msra.mxu0 %v106
  %576 = vmatprep.subr.mxu0 0.0
  %577 = vmatpush1.msra.mxu0 %v107
  %578 = vmatprep.subr.mxu0 0.0
  %579 = vmatpush1.msra.mxu0 %v108
  %580 = vmatprep.subr.mxu0 0.0
  %581 = vmatpush1.msra.mxu0 %v109
  %582 = vmatprep.subr.mxu0 0.0
  %583 = vmatpush1.msra.mxu0 %v110
  %584 = vmatprep.subr.mxu0 0.0
  %585 = vmatpush1.msra.mxu0 %v111
  %586 = vmatprep.subr.mxu0 0.0
  %587 = vmatpush1.msra.mxu0 %v112
  %588 = vmatprep.subr.mxu0 0.0
  %589 = vmatpush1.msra.mxu0 %v113
  %590 = vmatprep.subr.mxu0 0.0
  %591 = vmatpush1.msra.mxu0 %v114
  %592 = vmatprep.mubr.f32.mxu0 %v29
  %593 = vmatmul.mubr.f32.gmra.mrb[0].mxu0 %v28
  %v594 = vpop.f32.mrb[0].mxu0
  %v595 = vadd.f32 %v525, %v594
  %v596 = vpop.f32.mrb[0].mxu0
  %597 = vdwg.mxu0
  %598 = vmatprep.subr.mxu0 0.0
  %599 = vmatpush1.msra.mxu0 %v115
  %600 = vmatprep.subr.mxu0 0.0
  %601 = vmatpush1.msra.mxu0 %v116
  %602 = vmatprep.subr.mxu0 0.0
  %603 = vmatpush1.msra.mxu0 %v117
  %604 = vmatprep.subr.mxu0 0.0
  %605 = vmatpush1.msra.mxu0 %v118
  %606 = vmatprep.subr.mxu0 0.0
  %607 = vmatpush1.msra.mxu0 %v119
  %608 = vmatprep.subr.mxu0 0.0
  %609 = vmatpush1.msra.mxu0 %v120
  %610 = vmatprep.subr.mxu0 0.0
  %611 = vmatpush1.msra.mxu0 %v121
  %612 = vmatprep.subr.mxu0 0.0
  %613 = vmatpush1.msra.mxu0 %v122
  %614 = vmatprep.subr.mxu0 0.0
  %615 = vmatpush1.msra.mxu0 %v123
  %616 = vmatprep.subr.mxu0 0.0
  %617 = vmatpush1.msra.mxu0 %v124
  %618 = vmatprep.subr.mxu0 0.0
  %619 = vmatpush1.msra.mxu0 %v125
  %620 = vmatprep.subr.mxu0 0.0
  %621 = vmatpush1.msra.mxu0 %v126
  %622 = vmatprep.subr.mxu0 0.0
  %623 = vmatpush1.msra.mxu0 %v127
  %624 = vmatprep.subr.mxu0 0.0
  %625 = vmatpush1.msra.mxu0 %v128
  %626 = vmatprep.subr.mxu0 0.0
  %627 = vmatpush1.msra.mxu0 %v129
  %628 = vmatprep.subr.mxu0 0.0
  %629 = vmatpush1.msra.mxu0 %v130
  %630 = vmatprep.subr.mxu0 0.0
  %631 = vmatpush1.msra.mxu0 %v131
  %632 = vmatprep.subr.mxu0 0.0
  %633 = vmatpush1.msra.mxu0 %v132
  %634 = vmatprep.subr.mxu0 0.0
  %635 = vmatpush1.msra.mxu0 %v133
  %636 = vmatprep.subr.mxu0 0.0
  %637 = vmatpush1.msra.mxu0 %v134
  %638 = vmatprep.subr.mxu0 0.0
  %639 = vmatpush1.msra.mxu0 %v135
  %640 = vmatprep.subr.mxu0 0.0
  %641 = vmatpush1.msra.mxu0 %v136
  %642 = vmatprep.subr.mxu0 0.0
  %643 = vmatpush1.msra.mxu0 %v137
  %644 = vmatprep.subr.mxu0 0.0
  %645 = vmatpush1.msra.mxu0 %v138
  %646 = vmatprep.subr.mxu0 0.0
  %647 = vmatpush1.msra.mxu0 %v139
  %648 = vmatprep.subr.mxu0 0.0
  %649 = vmatpush1.msra.mxu0 %v140
  %650 = vmatprep.subr.mxu0 0.0
  %651 = vmatpush1.msra.mxu0 %v141
  %652 = vmatprep.subr.mxu0 0.0
  %653 = vmatpush1.msra.mxu0 %v142
  %654 = vmatprep.subr.mxu0 0.0
  %655 = vmatpush1.msra.mxu0 %v143
  %656 = vmatprep.subr.mxu0 0.0
  %657 = vmatpush1.msra.mxu0 %v144
  %658 = vmatprep.subr.mxu0 0.0
  %659 = vmatpush1.msra.mxu0 %v145
  %660 = vmatprep.subr.mxu0 0.0
  %661 = vmatpush1.msra.mxu0 %v146
  %662 = vmatprep.mubr.f32.mxu0 %v31
  %663 = vmatmul.mubr.f32.gmra.mrb[0].mxu0 %v30
  %v664 = vpop.f32.mrb[0].mxu0
  %v665 = vadd.f32 %v595, %v664
  %v666 = vpop.f32.mrb[0].mxu0
  %667 = vdwg.mxu0
  %668 = vmatprep.subr.mxu0 0.0
  %669 = vmatpush1.msra.mxu0 %v147
  %670 = vmatprep.subr.mxu0 0.0
  %671 = vmatpush1.msra.mxu0 %v148
  %672 = vmatprep.subr.mxu0 0.0
  %673 = vmatpush1.msra.mxu0 %v149
  %674 = vmatprep.subr.mxu0 0.0
  %675 = vmatpush1.msra.mxu0 %v150
  %676 = vmatprep.subr.mxu0 0.0
  %677 = vmatpush1.msra.mxu0 %v151
  %678 = vmatprep.subr.mxu0 0.0
  %679 = vmatpush1.msra.mxu0 %v152
  %680 = vmatprep.subr.mxu0 0.0
  %681 = vmatpush1.msra.mxu0 %v153
  %682 = vmatprep.subr.mxu0 0.0
  %683 = vmatpush1.msra.mxu0 %v154
  %684 = vmatprep.subr.mxu0 0.0
  %685 = vmatpush1.msra.mxu0 %v155
  %686 = vmatprep.subr.mxu0 0.0
  %687 = vmatpush1.msra.mxu0 %v156
  %688 = vmatprep.subr.mxu0 0.0
  %689 = vmatpush1.msra.mxu0 %v157
  %690 = vmatprep.subr.mxu0 0.0
  %691 = vmatpush1.msra.mxu0 %v158
  %692 = vmatprep.subr.mxu0 0.0
  %693 = vmatpush1.msra.mxu0 %v159
  %694 = vmatprep.subr.mxu0 0.0
  %695 = vmatpush1.msra.mxu0 %v160
  %696 = vmatprep.subr.mxu0 0.0
  %697 = vmatpush1.msra.mxu0 %v161
  %698 = vmatprep.subr.mxu0 0.0
  %699 = vmatpush1.msra.mxu0 %v162
  %700 = vmatprep.subr.mxu0 0.0
  %701 = vmatpush1.msra.mxu0 %v163
  %702 = vmatprep.subr.mxu0 0.0
  %703 = vmatpush1.msra.mxu0 %v164
  %704 = vmatprep.subr.mxu0 0.0
  %705 = vmatpush1.msra.mxu0 %v165
  %706 = vmatprep.subr.mxu0 0.0
  %707 = vmatpush1.msra.mxu0 %v166
  %708 = vmatprep.subr.mxu0 0.0
  %709 = vmatpush1.msra.mxu0 %v167
  %710 = vmatprep.subr.mxu0 0.0
  %711 = vmatpush1.msra.mxu0 %v168
  %712 = vmatprep.subr.mxu0 0.0
  %713 = vmatpush1.msra.mxu0 %v169
  %714 = vmatprep.subr.mxu0 0.0
  %715 = vmatpush1.msra.mxu0 %v170
  %716 = vmatprep.subr.mxu0 0.0
  %717 = vmatpush1.msra.mxu0 %v171
  %718 = vmatprep.subr.mxu0 0.0
  %719 = vmatpush1.msra.mxu0 %v172
  %720 = vmatprep.subr.mxu0 0.0
  %721 = vmatpush1.msra.mxu0 %v173
  %722 = vmatprep.subr.mxu0 0.0
  %723 = vmatpush1.msra.mxu0 %v174
  %724 = vmatprep.subr.mxu0 0.0
  %725 = vmatpush1.msra.mxu0 %v175
  %726 = vmatprep.subr.mxu0 0.0
  %727 = vmatpush1.msra.mxu0 %v176
  %728 = vmatprep.subr.mxu0 0.0
  %729 = vmatpush1.msra.mxu0 %v177
  %730 = vmatprep.subr.mxu0 0.0
  %731 = vmatpush1.msra.mxu0 %v178
  %732 = vmatprep.mubr.f32.mxu0 %v33
  %733 = vmatmul.mubr.f32.gmra.mrb[0].mxu0 %v32
  %v734 = vpop.f32.mrb[0].mxu0
  %v735 = vadd.f32 %v665, %v734
  %v736 = vpop.f32.mrb[0].mxu0
  %737 = vdwg.mxu0
  %738 = vmatprep.subr.mxu0 0.0
  %739 = vmatpush1.msra.mxu0 %v179
  %740 = vmatprep.subr.mxu0 0.0
  %741 = vmatpush1.msra.mxu0 %v180
  %742 = vmatprep.subr.mxu0 0.0
  %743 = vmatpush1.msra.mxu0 %v181
  %744 = vmatprep.subr.mxu0 0.0
  %745 = vmatpush1.msra.mxu0 %v182
  %746 = vmatprep.subr.mxu0 0.0
  %747 = vmatpush1.msra.mxu0 %v183
  %748 = vmatprep.subr.mxu0 0.0
  %749 = vmatpush1.msra.mxu0 %v184
  %750 = vmatprep.subr.mxu0 0.0
  %751 = vmatpush1.msra.mxu0 %v185
  %752 = vmatprep.subr.mxu0 0.0
  %753 = vmatpush1.msra.mxu0 %v186
  %754 = vmatprep.subr.mxu0 0.0
  %755 = vmatpush1.msra.mxu0 %v187
  %756 = vmatprep.subr.mxu0 0.0
  %757 = vmatpush1.msra.mxu0 %v188
  %758 = vmatprep.subr.mxu0 0.0
  %759 = vmatpush1.msra.mxu0 %v189
  %760 = vmatprep.subr.mxu0 0.0
  %761 = vmatpush1.msra.mxu0 %v190
  %762 = vmatprep.subr.mxu0 0.0
  %763 = vmatpush1.msra.mxu0 %v191
  %764 = vmatprep.subr.mxu0 0.0
  %765 = vmatpush1.msra.mxu0 %v192
  %766 = vmatprep.subr.mxu0 0.0
  %767 = vmatpush1.msra.mxu0 %v193
  %768 = vmatprep.subr.mxu0 0.0
  %769 = vmatpush1.msra.mxu0 %v194
  %770 = vmatprep.subr.mxu0 0.0
  %771 = vmatpush1.msra.mxu0 %v195
  %772 = vmatprep.subr.mxu0 0.0
  %773 = vmatpush1.msra.mxu0 %v196
  %774 = vmatprep.subr.mxu0 0.0
  %775 = vmatpush1.msra.mxu0 %v197
  %776 = vmatprep.subr.mxu0 0.0
  %777 = vmatpush1.msra.mxu0 %v198
  %778 = vmatprep.subr.mxu0 0.0
  %779 = vmatpush1.msra.mxu0 %v199
  %780 = vmatprep.subr.mxu0 0.0
  %781 = vmatpush1.msra.mxu0 %v200
  %782 = vmatprep.subr.mxu0 0.0
  %783 = vmatpush1.msra.mxu0 %v201
  %784 = vmatprep.subr.mxu0 0.0
  %785 = vmatpush1.msra.mxu0 %v202
  %786 = vmatprep.subr.mxu0 0.0
  %787 = vmatpush1.msra.mxu0 %v203
  %788 = vmatprep.subr.mxu0 0.0
  %789 = vmatpush1.msra.mxu0 %v204
  %790 = vmatprep.subr.mxu0 0.0
  %791 = vmatpush1.msra.mxu0 %v205
  %792 = vmatprep.subr.mxu0 0.0
  %793 = vmatpush1.msra.mxu0 %v206
  %794 = vmatprep.subr.mxu0 0.0
  %795 = vmatpush1.msra.mxu0 %v207
  %796 = vmatprep.subr.mxu0 0.0
  %797 = vmatpush1.msra.mxu0 %v208
  %798 = vmatprep.subr.mxu0 0.0
  %799 = vmatpush1.msra.mxu0 %v209
  %800 = vmatprep.subr.mxu0 0.0
  %801 = vmatpush1.msra.mxu0 %v210
  %802 = vmatprep.mubr.f32.mxu0 %v35
  %803 = vmatmul.mubr.f32.gmra.mrb[0].mxu0 %v34
  %v804 = vpop.f32.mrb[0].mxu0
  %v805 = vadd.f32 %v735, %v804
  %v806 = vpop.f32.mrb[0].mxu0
  %807 = vdwg.mxu0
  %808 = vmatprep.subr.mxu0 0.0
  %809 = vmatpush1.msra.mxu0 %v211
  %810 = vmatprep.subr.mxu0 0.0
  %811 = vmatpush1.msra.mxu0 %v212
  %812 = vmatprep.subr.mxu0 0.0
  %813 = vmatpush1.msra.mxu0 %v213
  %814 = vmatprep.subr.mxu0 0.0
  %815 = vmatpush1.msra.mxu0 %v214
  %816 = vmatprep.subr.mxu0 0.0
  %817 = vmatpush1.msra.mxu0 %v215
  %818 = vmatprep.subr.mxu0 0.0
  %819 = vmatpush1.msra.mxu0 %v216
  %820 = vmatprep.subr.mxu0 0.0
  %821 = vmatpush1.msra.mxu0 %v217
  %822 = vmatprep.subr.mxu0 0.0
  %823 = vmatpush1.msra.mxu0 %v218
  %824 = vmatprep.subr.mxu0 0.0
  %825 = vmatpush1.msra.mxu0 %v219
  %826 = vmatprep.subr.mxu0 0.0
  %827 = vmatpush1.msra.mxu0 %v220
  %828 = vmatprep.subr.mxu0 0.0
  %829 = vmatpush1.msra.mxu0 %v221
  %830 = vmatprep.subr.mxu0 0.0
  %831 = vmatpush1.msra.mxu0 %v222
  %832 = vmatprep.subr.mxu0 0.0
  %833 = vmatpush1.msra.mxu0 %v223
  %834 = vmatprep.subr.mxu0 0.0
  %835 = vmatpush1.msra.mxu0 %v224
  %836 = vmatprep.subr.mxu0 0.0
  %837 = vmatpush1.msra.mxu0 %v225
  %838 = vmatprep.subr.mxu0 0.0
  %839 = vmatpush1.msra.mxu0 %v226
  %840 = vmatprep.subr.mxu0 0.0
  %841 = vmatpush1.msra.mxu0 %v227
  %842 = vmatprep.subr.mxu0 0.0
  %843 = vmatpush1.msra.mxu0 %v228
  %844 = vmatprep.subr.mxu0 0.0
  %845 = vmatpush1.msra.mxu0 %v229
  %846 = vmatprep.subr.mxu0 0.0
  %847 = vmatpush1.msra.mxu0 %v230
  %848 = vmatprep.subr.mxu0 0.0
  %849 = vmatpush1.msra.mxu0 %v231
  %850 = vmatprep.subr.mxu0 0.0
  %851 = vmatpush1.msra.mxu0 %v232
  %852 = vmatprep.subr.mxu0 0.0
  %853 = vmatpush1.msra.mxu0 %v233
  %854 = vmatprep.subr.mxu0 0.0
  %855 = vmatpush1.msra.mxu0 %v234
  %856 = vmatprep.subr.mxu0 0.0
  %857 = vmatpush1.msra.mxu0 %v235
  %858 = vmatprep.subr.mxu0 0.0
  %859 = vmatpush1.msra.mxu0 %v236
  %860 = vmatprep.subr.mxu0 0.0
  %861 = vmatpush1.msra.mxu0 %v237
  %862 = vmatprep.subr.mxu0 0.0
  %863 = vmatpush1.msra.mxu0 %v238
  %864 = vmatprep.subr.mxu0 0.0
  %865 = vmatpush1.msra.mxu0 %v239
  %866 = vmatprep.subr.mxu0 0.0
  %867 = vmatpush1.msra.mxu0 %v240
  %868 = vmatprep.subr.mxu0 0.0
  %869 = vmatpush1.msra.mxu0 %v241
  %870 = vmatprep.subr.mxu0 0.0
  %871 = vmatpush1.msra.mxu0 %v242
  %872 = vmatprep.mubr.f32.mxu0 %v37
  %873 = vmatmul.mubr.f32.gmra.mrb[0].mxu0 %v36
  %v874 = vpop.f32.mrb[0].mxu0
  %v875 = vadd.f32 %v805, %v874
  %v876 = vpop.f32.mrb[0].mxu0
  %877 = vdwg.mxu0
  %878 = vmatprep.subr.mxu0 0.0
  %879 = vmatpush1.msra.mxu0 %v243
  %880 = vmatprep.subr.mxu0 0.0
  %881 = vmatpush1.msra.mxu0 %v244
  %882 = vmatprep.subr.mxu0 0.0
  %883 = vmatpush1.msra.mxu0 %v245
  %884 = vmatprep.subr.mxu0 0.0
  %885 = vmatpush1.msra.mxu0 %v246
  %886 = vmatprep.subr.mxu0 0.0
  %887 = vmatpush1.msra.mxu0 %v247
  %888 = vmatprep.subr.mxu0 0.0
  %889 = vmatpush1.msra.mxu0 %v248
  %890 = vmatprep.subr.mxu0 0.0
  %891 = vmatpush1.msra.mxu0 %v249
  %892 = vmatprep.subr.mxu0 0.0
  %893 = vmatpush1.msra.mxu0 %v250
  %894 = vmatprep.subr.mxu0 0.0
  %895 = vmatpush1.msra.mxu0 %v251
  %896 = vmatprep.subr.mxu0 0.0
  %897 = vmatpush1.msra.mxu0 %v252
  %898 = vmatprep.subr.mxu0 0.0
  %899 = vmatpush1.msra.mxu0 %v253
  %900 = vmatprep.subr.mxu0 0.0
  %901 = vmatpush1.msra.mxu0 %v254
  %902 = vmatprep.subr.mxu0 0.0
  %903 = vmatpush1.msra.mxu0 %v255
  %904 = vmatprep.subr.mxu0 0.0
  %905 = vmatpush1.msra.mxu0 %v256
  %906 = vmatprep.subr.mxu0 0.0
  %907 = vmatpush1.msra.mxu0 %v257
  %908 = vmatprep.subr.mxu0 0.0
  %909 = vmatpush1.msra.mxu0 %v258
  %910 = vmatprep.subr.mxu0 0.0
  %911 = vmatpush1.msra.mxu0 %v259
  %912 = vmatprep.subr.mxu0 0.0
  %913 = vmatpush1.msra.mxu0 %v260
  %914 = vmatprep.subr.mxu0 0.0
  %915 = vmatpush1.msra.mxu0 %v261
  %916 = vmatprep.subr.mxu0 0.0
  %917 = vmatpush1.msra.mxu0 %v262
  %918 = vmatprep.subr.mxu0 0.0
  %919 = vmatpush1.msra.mxu0 %v263
  %920 = vmatprep.subr.mxu0 0.0
  %921 = vmatpush1.msra.mxu0 %v264
  %922 = vmatprep.subr.mxu0 0.0
  %923 = vmatpush1.msra.mxu0 %v265
  %924 = vmatprep.subr.mxu0 0.0
  %925 = vmatpush1.msra.mxu0 %v266
  %926 = vmatprep.subr.mxu0 0.0
  %927 = vmatpush1.msra.mxu0 %v267
  %928 = vmatprep.subr.mxu0 0.0
  %929 = vmatpush1.msra.mxu0 %v268
  %930 = vmatprep.subr.mxu0 0.0
  %931 = vmatpush1.msra.mxu0 %v269
  %932 = vmatprep.subr.mxu0 0.0
  %933 = vmatpush1.msra.mxu0 %v270
  %934 = vmatprep.subr.mxu0 0.0
  %935 = vmatpush1.msra.mxu0 %v271
  %936 = vmatprep.subr.mxu0 0.0
  %937 = vmatpush1.msra.mxu0 %v272
  %938 = vmatprep.subr.mxu0 0.0
  %939 = vmatpush1.msra.mxu0 %v273
  %940 = vmatprep.subr.mxu0 0.0
  %941 = vmatpush1.msra.mxu0 %v274
  %942 = vmatprep.mubr.f32.mxu0 %v39
  %943 = vmatmul.mubr.f32.gmra.mrb[0].mxu0 %v38
  %v944 = vpop.f32.mrb[0].mxu0
  %v945 = vadd.f32 %v875, %v944
  %v946 = vpop.f32.mrb[0].mxu0
  %947 = vdwg.mxu0
  %948 = vmatprep.subr.mxu0 0.0
  %949 = vmatpush1.msra.mxu0 %v275
  %950 = vmatprep.subr.mxu0 0.0
  %951 = vmatpush1.msra.mxu0 %v276
  %952 = vmatprep.subr.mxu0 0.0
  %953 = vmatpush1.msra.mxu0 %v277
  %954 = vmatprep.subr.mxu0 0.0
  %955 = vmatpush1.msra.mxu0 %v278
  %956 = vmatprep.subr.mxu0 0.0
  %957 = vmatpush1.msra.mxu0 %v279
  %958 = vmatprep.subr.mxu0 0.0
  %959 = vmatpush1.msra.mxu0 %v280
  %960 = vmatprep.subr.mxu0 0.0
  %961 = vmatpush1.msra.mxu0 %v281
  %962 = vmatprep.subr.mxu0 0.0
  %963 = vmatpush1.msra.mxu0 %v282
  %964 = vmatprep.subr.mxu0 0.0
  %965 = vmatpush1.msra.mxu0 %v283
  %966 = vmatprep.subr.mxu0 0.0
  %967 = vmatpush1.msra.mxu0 %v284
  %968 = vmatprep.subr.mxu0 0.0
  %969 = vmatpush1.msra.mxu0 %v285
  %970 = vmatprep.subr.mxu0 0.0
  %971 = vmatpush1.msra.mxu0 %v286
  %972 = vmatprep.subr.mxu0 0.0
  %973 = vmatpush1.msra.mxu0 %v287
  %974 = vmatprep.subr.mxu0 0.0
  %975 = vmatpush1.msra.mxu0 %v288
  %976 = vmatprep.subr.mxu0 0.0
  %977 = vmatpush1.msra.mxu0 %v289
  %978 = vmatprep.subr.mxu0 0.0
  %979 = vmatpush1.msra.mxu0 %v290
  %980 = vmatprep.subr.mxu0 0.0
  %981 = vmatpush1.msra.mxu0 %v291
  %982 = vmatprep.subr.mxu0 0.0
  %983 = vmatpush1.msra.mxu0 %v292
  %984 = vmatprep.subr.mxu0 0.0
  %985 = vmatpush1.msra.mxu0 %v293
  %986 = vmatprep.subr.mxu0 0.0
  %987 = vmatpush1.msra.mxu0 %v294
  %988 = vmatprep.subr.mxu0 0.0
  %989 = vmatpush1.msra.mxu0 %v295
  %990 = vmatprep.subr.mxu0 0.0
  %991 = vmatpush1.msra.mxu0 %v296
  %992 = vmatprep.subr.mxu0 0.0
  %993 = vmatpush1.msra.mxu0 %v297
  %994 = vmatprep.subr.mxu0 0.0
  %995 = vmatpush1.msra.mxu0 %v298
  %996 = vmatprep.subr.mxu0 0.0
  %997 = vmatpush1.msra.mxu0 %v299
  %998 = vmatprep.subr.mxu0 0.0
  %999 = vmatpush1.msra.mxu0 %v300
  %1000 = vmatprep.subr.mxu0 0.0
  %1001 = vmatpush1.msra.mxu0 %v301
  %1002 = vmatprep.subr.mxu0 0.0
  %1003 = vmatpush1.msra.mxu0 %v302
  %1004 = vmatprep.subr.mxu0 0.0
  %1005 = vmatpush1.msra.mxu0 %v303
  %1006 = vmatprep.subr.mxu0 0.0
  %1007 = vmatpush1.msra.mxu0 %v304
  %1008 = vmatprep.subr.mxu0 0.0
  %1009 = vmatpush1.msra.mxu0 %v305
  %1010 = vmatprep.subr.mxu0 0.0
  %1011 = vmatpush1.msra.mxu0 %v306
  %1012 = vmatprep.mubr.f32.mxu0 %v41
  %1013 = vmatmul.mubr.f32.gmra.mrb[0].mxu0 %v40
  %v1014 = vpop.f32.mrb[0].mxu0
  %v1015 = vadd.f32 %v945, %v1014
  %v1016 = vpop.f32.mrb[0].mxu0
  %1017 = vdwg.mxu0
  %1018 = vmatprep.subr.mxu0 0.0
  %1019 = vmatpush1.msra.mxu0 %v307
  %1020 = vmatprep.subr.mxu0 0.0
  %1021 = vmatpush1.msra.mxu0 %v308
  %1022 = vmatprep.subr.mxu0 0.0
  %1023 = vmatpush1.msra.mxu0 %v309
  %1024 = vmatprep.subr.mxu0 0.0
  %1025 = vmatpush1.msra.mxu0 %v310
  %1026 = vmatprep.subr.mxu0 0.0
  %1027 = vmatpush1.msra.mxu0 %v311
  %1028 = vmatprep.subr.mxu0 0.0
  %1029 = vmatpush1.msra.mxu0 %v312
  %1030 = vmatprep.subr.mxu0 0.0
  %1031 = vmatpush1.msra.mxu0 %v313
  %1032 = vmatprep.subr.mxu0 0.0
  %1033 = vmatpush1.msra.mxu0 %v314
  %1034 = vmatprep.subr.mxu0 0.0
  %1035 = vmatpush1.msra.mxu0 %v315
  %1036 = vmatprep.subr.mxu0 0.0
  %1037 = vmatpush1.msra.mxu0 %v316
  %1038 = vmatprep.subr.mxu0 0.0
  %1039 = vmatpush1.msra.mxu0 %v317
  %1040 = vmatprep.subr.mxu0 0.0
  %1041 = vmatpush1.msra.mxu0 %v318
  %1042 = vmatprep.subr.mxu0 0.0
  %1043 = vmatpush1.msra.mxu0 %v319
  %1044 = vmatprep.subr.mxu0 0.0
  %1045 = vmatpush1.msra.mxu0 %v320
  %1046 = vmatprep.subr.mxu0 0.0
  %1047 = vmatpush1.msra.mxu0 %v321
  %1048 = vmatprep.subr.mxu0 0.0
  %1049 = vmatpush1.msra.mxu0 %v322
  %1050 = vmatprep.subr.mxu0 0.0
  %1051 = vmatpush1.msra.mxu0 %v323
  %1052 = vmatprep.subr.mxu0 0.0
  %1053 = vmatpush1.msra.mxu0 %v324
  %1054 = vmatprep.subr.mxu0 0.0
  %1055 = vmatpush1.msra.mxu0 %v325
  %1056 = vmatprep.subr.mxu0 0.0
  %1057 = vmatpush1.msra.mxu0 %v326
  %1058 = vmatprep.subr.mxu0 0.0
  %1059 = vmatpush1.msra.mxu0 %v327
  %1060 = vmatprep.subr.mxu0 0.0
  %1061 = vmatpush1.msra.mxu0 %v328
  %1062 = vmatprep.subr.mxu0 0.0
  %1063 = vmatpush1.msra.mxu0 %v329
  %1064 = vmatprep.subr.mxu0 0.0
  %1065 = vmatpush1.msra.mxu0 %v330
  %1066 = vmatprep.subr.mxu0 0.0
  %1067 = vmatpush1.msra.mxu0 %v331
  %1068 = vmatprep.subr.mxu0 0.0
  %1069 = vmatpush1.msra.mxu0 %v332
  %1070 = vmatprep.subr.mxu0 0.0
  %1071 = vmatpush1.msra.mxu0 %v333
  %1072 = vmatprep.subr.mxu0 0.0
  %1073 = vmatpush1.msra.mxu0 %v334
  %1074 = vmatprep.subr.mxu0 0.0
  %1075 = vmatpush1.msra.mxu0 %v335
  %1076 = vmatprep.subr.mxu0 0.0
  %1077 = vmatpush1.msra.mxu0 %v336
  %1078 = vmatprep.subr.mxu0 0.0
  %1079 = vmatpush1.msra.mxu0 %v337
  %1080 = vmatprep.subr.mxu0 0.0
  %1081 = vmatpush1.msra.mxu0 %v338
  %1082 = vmatprep.mubr.f32.mxu0 %v43
  %1083 = vmatmul.mubr.f32.gmra.mrb[0].mxu0 %v42
  %v1084 = vpop.f32.mrb[0].mxu0
  %v1085 = vadd.f32 %v1015, %v1084
  %v1086 = vpop.f32.mrb[0].mxu0
  %1087 = vdwg.mxu0
  %1088 = vmatprep.subr.mxu0 0.0
  %1089 = vmatpush1.msra.mxu0 %v339
  %1090 = vmatprep.subr.mxu0 0.0
  %1091 = vmatpush1.msra.mxu0 %v340
  %1092 = vmatprep.subr.mxu0 0.0
  %1093 = vmatpush1.msra.mxu0 %v341
  %1094 = vmatprep.subr.mxu0 0.0
  %1095 = vmatpush1.msra.mxu0 %v342
  %1096 = vmatprep.subr.mxu0 0.0
  %1097 = vmatpush1.msra.mxu0 %v343
  %1098 = vmatprep.subr.mxu0 0.0
  %1099 = vmatpush1.msra.mxu0 %v344
  %1100 = vmatprep.subr.mxu0 0.0
  %1101 = vmatpush1.msra.mxu0 %v345
  %1102 = vmatprep.subr.mxu0 0.0
  %1103 = vmatpush1.msra.mxu0 %v346
  %1104 = vmatprep.subr.mxu0 0.0
  %1105 = vmatpush1.msra.mxu0 %v347
  %1106 = vmatprep.subr.mxu0 0.0
  %1107 = vmatpush1.msra.mxu0 %v348
  %1108 = vmatprep.subr.mxu0 0.0
  %1109 = vmatpush1.msra.mxu0 %v349
  %1110 = vmatprep.subr.mxu0 0.0
  %1111 = vmatpush1.msra.mxu0 %v350
  %1112 = vmatprep.subr.mxu0 0.0
  %1113 = vmatpush1.msra.mxu0 %v351
  %1114 = vmatprep.subr.mxu0 0.0
  %1115 = vmatpush1.msra.mxu0 %v352
  %1116 = vmatprep.subr.mxu0 0.0
  %1117 = vmatpush1.msra.mxu0 %v353
  %1118 = vmatprep.subr.mxu0 0.0
  %1119 = vmatpush1.msra.mxu0 %v354
  %1120 = vmatprep.subr.mxu0 0.0
  %1121 = vmatpush1.msra.mxu0 %v355
  %1122 = vmatprep.subr.mxu0 0.0
  %1123 = vmatpush1.msra.mxu0 %v356
  %1124 = vmatprep.subr.mxu0 0.0
  %1125 = vmatpush1.msra.mxu0 %v357
  %1126 = vmatprep.subr.mxu0 0.0
  %1127 = vmatpush1.msra.mxu0 %v358
  %1128 = vmatprep.subr.mxu0 0.0
  %1129 = vmatpush1.msra.mxu0 %v359
  %1130 = vmatprep.subr.mxu0 0.0
  %1131 = vmatpush1.msra.mxu0 %v360
  %1132 = vmatprep.subr.mxu0 0.0
  %1133 = vmatpush1.msra.mxu0 %v361
  %1134 = vmatprep.subr.mxu0 0.0
  %1135 = vmatpush1.msra.mxu0 %v362
  %1136 = vmatprep.subr.mxu0 0.0
  %1137 = vmatpush1.msra.mxu0 %v363
  %1138 = vmatprep.subr.mxu0 0.0
  %1139 = vmatpush1.msra.mxu0 %v364
  %1140 = vmatprep.subr.mxu0 0.0
  %1141 = vmatpush1.msra.mxu0 %v365
  %1142 = vmatprep.subr.mxu0 0.0
  %1143 = vmatpush1.msra.mxu0 %v366
  %1144 = vmatprep.subr.mxu0 0.0
  %1145 = vmatpush1.msra.mxu0 %v367
  %1146 = vmatprep.subr.mxu0 0.0
  %1147 = vmatpush1.msra.mxu0 %v368
  %1148 = vmatprep.subr.mxu0 0.0
  %1149 = vmatpush1.msra.mxu0 %v369
  %1150 = vmatprep.subr.mxu0 0.0
  %1151 = vmatpush1.msra.mxu0 %v370
  %1152 = vmatprep.mubr.f32.mxu0 %v45
  %1153 = vmatmul.mubr.f32.gmra.mrb[0].mxu0 %v44
  %v1154 = vpop.f32.mrb[0].mxu0
  %v1155 = vadd.f32 %v1085, %v1154
  %v1156 = vpop.f32.mrb[0].mxu0
  %1157 = vdwg.mxu0
  %1158 = vmatprep.subr.mxu0 0.0
  %1159 = vmatpush1.msra.mxu0 %v371
  %1160 = vmatprep.subr.mxu0 0.0
  %1161 = vmatpush1.msra.mxu0 %v372
  %1162 = vmatprep.subr.mxu0 0.0
  %1163 = vmatpush1.msra.mxu0 %v373
  %1164 = vmatprep.subr.mxu0 0.0
  %1165 = vmatpush1.msra.mxu0 %v374
  %1166 = vmatprep.subr.mxu0 0.0
  %1167 = vmatpush1.msra.mxu0 %v375
  %1168 = vmatprep.subr.mxu0 0.0
  %1169 = vmatpush1.msra.mxu0 %v376
  %1170 = vmatprep.subr.mxu0 0.0
  %1171 = vmatpush1.msra.mxu0 %v377
  %1172 = vmatprep.subr.mxu0 0.0
  %1173 = vmatpush1.msra.mxu0 %v378
  %1174 = vmatprep.subr.mxu0 0.0
  %1175 = vmatpush1.msra.mxu0 %v379
  %1176 = vmatprep.subr.mxu0 0.0
  %1177 = vmatpush1.msra.mxu0 %v380
  %1178 = vmatprep.subr.mxu0 0.0
  %1179 = vmatpush1.msra.mxu0 %v381
  %1180 = vmatprep.subr.mxu0 0.0
  %1181 = vmatpush1.msra.mxu0 %v382
  %1182 = vmatprep.subr.mxu0 0.0
  %1183 = vmatpush1.msra.mxu0 %v383
  %1184 = vmatprep.subr.mxu0 0.0
  %1185 = vmatpush1.msra.mxu0 %v384
  %1186 = vmatprep.subr.mxu0 0.0
  %1187 = vmatpush1.msra.mxu0 %v385
  %1188 = vmatprep.subr.mxu0 0.0
  %1189 = vmatpush1.msra.mxu0 %v386
  %1190 = vmatprep.subr.mxu0 0.0
  %1191 = vmatpush1.msra.mxu0 %v387
  %1192 = vmatprep.subr.mxu0 0.0
  %1193 = vmatpush1.msra.mxu0 %v388
  %1194 = vmatprep.subr.mxu0 0.0
  %1195 = vmatpush1.msra.mxu0 %v389
  %1196 = vmatprep.subr.mxu0 0.0
  %1197 = vmatpush1.msra.mxu0 %v390
  %1198 = vmatprep.subr.mxu0 0.0
  %1199 = vmatpush1.msra.mxu0 %v391
  %1200 = vmatprep.subr.mxu0 0.0
  %1201 = vmatpush1.msra.mxu0 %v392
  %1202 = vmatprep.subr.mxu0 0.0
  %1203 = vmatpush1.msra.mxu0 %v393
  %1204 = vmatprep.subr.mxu0 0.0
  %1205 = vmatpush1.msra.mxu0 %v394
  %1206 = vmatprep.subr.mxu0 0.0
  %1207 = vmatpush1.msra.mxu0 %v395
  %1208 = vmatprep.subr.mxu0 0.0
  %1209 = vmatpush1.msra.mxu0 %v396
  %1210 = vmatprep.subr.mxu0 0.0
  %1211 = vmatpush1.msra.mxu0 %v397
  %1212 = vmatprep.subr.mxu0 0.0
  %1213 = vmatpush1.msra.mxu0 %v398
  %1214 = vmatprep.subr.mxu0 0.0
  %1215 = vmatpush1.msra.mxu0 %v399
  %1216 = vmatprep.subr.mxu0 0.0
  %1217 = vmatpush1.msra.mxu0 %v400
  %1218 = vmatprep.subr.mxu0 0.0
  %1219 = vmatpush1.msra.mxu0 %v401
  %1220 = vmatprep.subr.mxu0 0.0
  %1221 = vmatpush1.msra.mxu0 %v402
  %1222 = vmatprep.mubr.f32.mxu0 %v47
  %1223 = vmatmul.mubr.f32.gmra.mrb[0].mxu0 %v46
  %v1224 = vpop.f32.mrb[0].mxu0
  %v1225 = vadd.f32 %v1155, %v1224
  %v1226 = vpop.f32.mrb[0].mxu0
  %1227 = vdwg.mxu0
  %1228 = vmatprep.subr.mxu0 0.0
  %1229 = vmatpush1.msra.mxu0 %v403
  %1230 = vmatprep.subr.mxu0 0.0
  %1231 = vmatpush1.msra.mxu0 %v404
  %1232 = vmatprep.subr.mxu0 0.0
  %1233 = vmatpush1.msra.mxu0 %v405
  %1234 = vmatprep.subr.mxu0 0.0
  %1235 = vmatpush1.msra.mxu0 %v406
  %1236 = vmatprep.subr.mxu0 0.0
  %1237 = vmatpush1.msra.mxu0 %v407
  %1238 = vmatprep.subr.mxu0 0.0
  %1239 = vmatpush1.msra.mxu0 %v408
  %1240 = vmatprep.subr.mxu0 0.0
  %1241 = vmatpush1.msra.mxu0 %v409
  %1242 = vmatprep.subr.mxu0 0.0
  %1243 = vmatpush1.msra.mxu0 %v410
  %1244 = vmatprep.subr.mxu0 0.0
  %1245 = vmatpush1.msra.mxu0 %v411
  %1246 = vmatprep.subr.mxu0 0.0
  %1247 = vmatpush1.msra.mxu0 %v412
  %1248 = vmatprep.subr.mxu0 0.0
  %1249 = vmatpush1.msra.mxu0 %v413
  %1250 = vmatprep.subr.mxu0 0.0
  %1251 = vmatpush1.msra.mxu0 %v414
  %1252 = vmatprep.subr.mxu0 0.0
  %1253 = vmatpush1.msra.mxu0 %v415
  %1254 = vmatprep.subr.mxu0 0.0
  %1255 = vmatpush1.msra.mxu0 %v416
  %1256 = vmatprep.subr.mxu0 0.0
  %1257 = vmatpush1.msra.mxu0 %v417
  %1258 = vmatprep.subr.mxu0 0.0
  %1259 = vmatpush1.msra.mxu0 %v418
  %1260 = vmatprep.subr.mxu0 0.0
  %1261 = vmatpush1.msra.mxu0 %v419
  %1262 = vmatprep.subr.mxu0 0.0
  %1263 = vmatpush1.msra.mxu0 %v420
  %1264 = vmatprep.subr.mxu0 0.0
  %1265 = vmatpush1.msra.mxu0 %v421
  %1266 = vmatprep.subr.mxu0 0.0
  %1267 = vmatpush1.msra.mxu0 %v422
  %1268 = vmatprep.subr.mxu0 0.0
  %1269 = vmatpush1.msra.mxu0 %v423
  %1270 = vmatprep.subr.mxu0 0.0
  %1271 = vmatpush1.msra.mxu0 %v424
  %1272 = vmatprep.subr.mxu0 0.0
  %1273 = vmatpush1.msra.mxu0 %v425
  %1274 = vmatprep.subr.mxu0 0.0
  %1275 = vmatpush1.msra.mxu0 %v426
  %1276 = vmatprep.subr.mxu0 0.0
  %1277 = vmatpush1.msra.mxu0 %v427
  %1278 = vmatprep.subr.mxu0 0.0
  %1279 = vmatpush1.msra.mxu0 %v428
  %1280 = vmatprep.subr.mxu0 0.0
  %1281 = vmatpush1.msra.mxu0 %v429
  %1282 = vmatprep.subr.mxu0 0.0
  %1283 = vmatpush1.msra.mxu0 %v430
  %1284 = vmatprep.subr.mxu0 0.0
  %1285 = vmatpush1.msra.mxu0 %v431
  %1286 = vmatprep.subr.mxu0 0.0
  %1287 = vmatpush1.msra.mxu0 %v432
  %1288 = vmatprep.subr.mxu0 0.0
  %1289 = vmatpush1.msra.mxu0 %v433
  %1290 = vmatprep.subr.mxu0 0.0
  %1291 = vmatpush1.msra.mxu0 %v434
  %1292 = vmatprep.mubr.f32.mxu0 %v49
  %1293 = vmatmul.mubr.f32.gmra.mrb[0].mxu0 %v48
  %v1294 = vpop.f32.mrb[0].mxu0
  %v1295 = vadd.f32 %v1225, %v1294
  %v1296 = vpop.f32.mrb[0].mxu0
  %1297 = vdwg.mxu0
  %1298 = vmatprep.subr.mxu0 0.0
  %1299 = vmatpush1.msra.mxu0 %v435
  %1300 = vmatprep.subr.mxu0 0.0
  %1301 = vmatpush1.msra.mxu0 %v436
  %1302 = vmatprep.subr.mxu0 0.0
  %1303 = vmatpush1.msra.mxu0 %v437
  %1304 = vmatprep.subr.mxu0 0.0
  %1305 = vmatpush1.msra.mxu0 %v438
  %1306 = vmatprep.subr.mxu0 0.0
  %1307 = vmatpush1.msra.mxu0 %v439
  %1308 = vmatprep.subr.mxu0 0.0
  %1309 = vmatpush1.msra.mxu0 %v440
  %1310 = vmatprep.subr.mxu0 0.0
  %1311 = vmatpush1.msra.mxu0 %v441
  %1312 = vmatprep.subr.mxu0 0.0
  %1313 = vmatpush1.msra.mxu0 %v442
  %1314 = vmatprep.subr.mxu0 0.0
  %1315 = vmatpush1.msra.mxu0 %v443
  %1316 = vmatprep.subr.mxu0 0.0
  %1317 = vmatpush1.msra.mxu0 %v444
  %1318 = vmatprep.subr.mxu0 0.0
  %1319 = vmatpush1.msra.mxu0 %v445
  %1320 = vmatprep.subr.mxu0 0.0
  %1321 = vmatpush1.msra.mxu0 %v446
  %1322 = vmatprep.subr.mxu0 0.0
  %1323 = vmatpush1.msra.mxu0 %v447
  %1324 = vmatprep.subr.mxu0 0.0
  %1325 = vmatpush1.msra.mxu0 %v448
  %1326 = vmatprep.subr.mxu0 0.0
  %1327 = vmatpush1.msra.mxu0 %v449
  %1328 = vmatprep.subr.mxu0 0.0
  %1329 = vmatpush1.msra.mxu0 %v450
  %1330 = vmatprep.subr.mxu0 0.0
  %1331 = vmatpush1.msra.mxu0 0.0
  %1332 = vmatprep.subr.mxu0 0.0
  %1333 = vmatpush1.msra.mxu0 0.0
  %1334 = vmatprep.subr.mxu0 0.0
  %1335 = vmatpush1.msra.mxu0 0.0
  %1336 = vmatprep.subr.mxu0 0.0
  %1337 = vmatpush1.msra.mxu0 0.0
  %1338 = vmatprep.subr.mxu0 0.0
  %1339 = vmatpush1.msra.mxu0 0.0
  %1340 = vmatprep.subr.mxu0 0.0
  %1341 = vmatpush1.msra.mxu0 0.0
  %1342 = vmatprep.subr.mxu0 0.0
  %1343 = vmatpush1.msra.mxu0 0.0
  %1344 = vmatprep.subr.mxu0 0.0
  %1345 = vmatpush1.msra.mxu0 0.0
  %1346 = vmatprep.subr.mxu0 0.0
  %1347 = vmatpush1.msra.mxu0 0.0
  %1348 = vmatprep.subr.mxu0 0.0
  %1349 = vmatpush1.msra.mxu0 0.0
  %1350 = vmatprep.subr.mxu0 0.0
  %1351 = vmatpush1.msra.mxu0 0.0
  %1352 = vmatprep.subr.mxu0 0.0
  %1353 = vmatpush1.msra.mxu0 0.0
  %1354 = vmatprep.subr.mxu0 0.0
  %1355 = vmatpush1.msra.mxu0 0.0
  %1356 = vmatprep.subr.mxu0 0.0
  %1357 = vmatpush1.msra.mxu0 0.0
  %1358 = vmatprep.subr.mxu0 0.0
  %1359 = vmatpush1.msra.mxu0 0.0
  %1360 = vmatprep.subr.mxu0 0.0
  %1361 = vmatpush1.msra.mxu0 0.0
  %1362 = vmatprep.mubr.f32.mxu0 0.0
  %1363 = vmatmul.mubr.f32.gmra.mrb[0].mxu0 %v50
  %v1364 = vpop.f32.mrb[0].mxu0
  %v1365 = vadd.f32 %v1295, %v1364
  %v1366 = vpop.f32.mrb[0].mxu0
  %1367 = vdwg.mxu0
  %v1368 = vmax.f32 %v1365, 0.0
  %v1369 = vld [vmem:[%s3] sm:$0xff]
  %v1370 = vld [vmem:[%s3 + $0x8] sm:$0xff]
  %v1371 = vld [vmem:[%s3 + $0x10] sm:$0xff]
  %v1372 = vld [vmem:[%s3 + $0x18] sm:$0xff]
  %v1373 = vld [vmem:[%s3 + $0x20] sm:$0xff]
  %v1374 = vld [vmem:[%s3 + $0x28] sm:$0xff]
  %v1375 = vld [vmem:[%s3 + $0x30] sm:$0xff]
  %v1376 = vld [vmem:[%s3 + $0x38] sm:$0xff]
  %v1377 = vld [vmem:[%s3 + $0x40] sm:$0xff]
  %v1378 = vld [vmem:[%s3 + $0x48] sm:$0xff]
  %v1379 = vld [vmem:[%s3 + $0x50] sm:$0xff]
  %v1380 = vld [vmem:[%s3 + $0x58] sm:$0xff]
  %v1381 = vld [vmem:[%s3 + $0x60] sm:$0xff]
  %v1382 = vld [vmem:[%s3 + $0x68] sm:$0xff]
  %v1383 = vld [vmem:[%s3 + $0x70] sm:$0xff]
  %v1384 = vld [vmem:[%s3 + $0x78] sm:$0xff]
  %v1385 = vld [vmem:[%s4] sm:$0x1]
  %v1387 = vlaneseq
  %v1388 = vshrl.u32 %v1387, 7
  %v1389 = vsub.s32 0, %v1388
  %v1390 = vrot.slane %v1385, %v1389
  %1392 = vmatprep.subr.mxu0 0.0
  %1393 = vmatpush1.msra.mxu0 %v1369
  %1394 = vmatprep.subr.mxu0 0.0
  %1395 = vmatpush1.msra.mxu0 %v1370
  %1396 = vmatprep.subr.mxu0 0.0
  %1397 = vmatpush1.msra.mxu0 %v1371
  %1398 = vmatprep.subr.mxu0 0.0
  %1399 = vmatpush1.msra.mxu0 %v1372
  %1400 = vmatprep.subr.mxu0 0.0
  %1401 = vmatpush1.msra.mxu0 %v1373
  %1402 = vmatprep.subr.mxu0 0.0
  %1403 = vmatpush1.msra.mxu0 %v1374
  %1404 = vmatprep.subr.mxu0 0.0
  %1405 = vmatpush1.msra.mxu0 %v1375
  %1406 = vmatprep.subr.mxu0 0.0
  %1407 = vmatpush1.msra.mxu0 %v1376
  %1408 = vmatprep.subr.mxu0 0.0
  %1409 = vmatpush1.msra.mxu0 %v1377
  %1410 = vmatprep.subr.mxu0 0.0
  %1411 = vmatpush1.msra.mxu0 %v1378
  %1412 = vmatprep.subr.mxu0 0.0
  %1413 = vmatpush1.msra.mxu0 %v1379
  %1414 = vmatprep.subr.mxu0 0.0
  %1415 = vmatpush1.msra.mxu0 %v1380
  %1416 = vmatprep.subr.mxu0 0.0
  %1417 = vmatpush1.msra.mxu0 %v1381
  %1418 = vmatprep.subr.mxu0 0.0
  %1419 = vmatpush1.msra.mxu0 %v1382
  %1420 = vmatprep.subr.mxu0 0.0
  %1421 = vmatpush1.msra.mxu0 %v1383
  %1422 = vmatprep.subr.mxu0 0.0
  %1423 = vmatpush1.msra.mxu0 %v1384
  %1424 = vmatprep.subr.mxu0 0.0
  %1425 = vmatpush1.msra.mxu0 0.0
  %1426 = vmatprep.subr.mxu0 0.0
  %1427 = vmatpush1.msra.mxu0 0.0
  %1428 = vmatprep.subr.mxu0 0.0
  %1429 = vmatpush1.msra.mxu0 0.0
  %1430 = vmatprep.subr.mxu0 0.0
  %1431 = vmatpush1.msra.mxu0 0.0
  %1432 = vmatprep.subr.mxu0 0.0
  %1433 = vmatpush1.msra.mxu0 0.0
  %1434 = vmatprep.subr.mxu0 0.0
  %1435 = vmatpush1.msra.mxu0 0.0
  %1436 = vmatprep.subr.mxu0 0.0
  %1437 = vmatpush1.msra.mxu0 0.0
  %1438 = vmatprep.subr.mxu0 0.0
  %1439 = vmatpush1.msra.mxu0 0.0
  %1440 = vmatprep.subr.mxu0 0.0
  %1441 = vmatpush1.msra.mxu0 0.0
  %1442 = vmatprep.subr.mxu0 0.0
  %1443 = vmatpush1.msra.mxu0 0.0
  %1444 = vmatprep.subr.mxu0 0.0
  %1445 = vmatpush1.msra.mxu0 0.0
  %1446 = vmatprep.subr.mxu0 0.0
  %1447 = vmatpush1.msra.mxu0 0.0
  %1448 = vmatprep.subr.mxu0 0.0
  %1449 = vmatpush1.msra.mxu0 0.0
  %1450 = vmatprep.subr.mxu0 0.0
  %1451 = vmatpush1.msra.mxu0 0.0
  %1452 = vmatprep.subr.mxu0 0.0
  %1453 = vmatpush1.msra.mxu0 0.0
  %1454 = vmatprep.subr.mxu0 0.0
  %1455 = vmatpush1.msra.mxu0 0.0
  %1456 = vmatprep.mubr.f32.mxu0 0.0
  %1457 = vmatmul.mubr.f32.gmra.mrb[0].mxu0 %v1368
  %v1458 = vpop.f32.mrb[0].mxu0
  %v1459 = vadd.f32 %v1390, %v1458
  %v1460 = vpop.f32.mrb[0].mxu0
  %1461 = vdwg.mxu0
  %v1462 = vmax.f32 %v1459, 0.0
  %v1463 = vld [vmem:[%s5] sm:$0xff]
  %v1464 = vld [vmem:[%s5 + $0x8] sm:$0xff]
  %v1465 = vld [vmem:[%s5 + $0x10] sm:$0xff]
  %v1466 = vld [vmem:[%s5 + $0x18] sm:$0xff]
  %v1467 = vld [vmem:[%s5 + $0x20] sm:$0xff]
  %v1468 = vld [vmem:[%s5 + $0x28] sm:$0xff]
  %v1469 = vld [vmem:[%s5 + $0x30] sm:$0xff]
  %v1470 = vld [vmem:[%s5 + $0x38] sm:$0xff]
  %v1471 = vld [vmem:[%s5 + $0x40] sm:$0xff]
  %v1472 = vld [vmem:[%s5 + $0x48] sm:$0xff]
  %v1473 = vld [vmem:[%s5 + $0x50] sm:$0xff]
  %v1474 = vld [vmem:[%s5 + $0x58] sm:$0xff]
  %v1475 = vld [vmem:[%s5 + $0x60] sm:$0xff]
  %v1476 = vld [vmem:[%s5 + $0x68] sm:$0xff]
  %v1477 = vld [vmem:[%s5 + $0x70] sm:$0xff]
  %v1478 = vld [vmem:[%s5 + $0x78] sm:$0xff]
  %v1479 = vld [vmem:[%s6] sm:$0x1]
  %v1481 = vlaneseq
  %v1482 = vshrl.u32 %v1481, 7
  %v1483 = vsub.s32 0, %v1482
  %v1484 = vrot.slane %v1479, %v1483
  %1486 = vmatprep.subr.mxu0 0.0
  %1487 = vmatpush1.msra.mxu0 %v1463
  %1488 = vmatprep.subr.mxu0 0.0
  %1489 = vmatpush1.msra.mxu0 %v1464
  %1490 = vmatprep.subr.mxu0 0.0
  %1491 = vmatpush1.msra.mxu0 %v1465
  %1492 = vmatprep.subr.mxu0 0.0
  %1493 = vmatpush1.msra.mxu0 %v1466
  %1494 = vmatprep.subr.mxu0 0.0
  %1495 = vmatpush1.msra.mxu0 %v1467
  %1496 = vmatprep.subr.mxu0 0.0
  %1497 = vmatpush1.msra.mxu0 %v1468
  %1498 = vmatprep.subr.mxu0 0.0
  %1499 = vmatpush1.msra.mxu0 %v1469
  %1500 = vmatprep.subr.mxu0 0.0
  %1501 = vmatpush1.msra.mxu0 %v1470
  %1502 = vmatprep.subr.mxu0 0.0
  %1503 = vmatpush1.msra.mxu0 %v1471
  %1504 = vmatprep.subr.mxu0 0.0
  %1505 = vmatpush1.msra.mxu0 %v1472
  %1506 = vmatprep.subr.mxu0 0.0
  %1507 = vmatpush1.msra.mxu0 %v1473
  %1508 = vmatprep.subr.mxu0 0.0
  %1509 = vmatpush1.msra.mxu0 %v1474
  %1510 = vmatprep.subr.mxu0 0.0
  %1511 = vmatpush1.msra.mxu0 %v1475
  %1512 = vmatprep.subr.mxu0 0.0
  %1513 = vmatpush1.msra.mxu0 %v1476
  %1514 = vmatprep.subr.mxu0 0.0
  %1515 = vmatpush1.msra.mxu0 %v1477
  %1516 = vmatprep.subr.mxu0 0.0
  %1517 = vmatpush1.msra.mxu0 %v1478
  %1518 = vmatprep.subr.mxu0 0.0
  %1519 = vmatpush1.msra.mxu0 0.0
  %1520 = vmatprep.subr.mxu0 0.0
  %1521 = vmatpush1.msra.mxu0 0.0
  %1522 = vmatprep.subr.mxu0 0.0
  %1523 = vmatpush1.msra.mxu0 0.0
  %1524 = vmatprep.subr.mxu0 0.0
  %1525 = vmatpush1.msra.mxu0 0.0
  %1526 = vmatprep.subr.mxu0 0.0
  %1527 = vmatpush1.msra.mxu0 0.0
  %1528 = vmatprep.subr.mxu0 0.0
  %1529 = vmatpush1.msra.mxu0 0.0
  %1530 = vmatprep.subr.mxu0 0.0
  %1531 = vmatpush1.msra.mxu0 0.0
  %1532 = vmatprep.subr.mxu0 0.0
  %1533 = vmatpush1.msra.mxu0 0.0
  %1534 = vmatprep.subr.mxu0 0.0
  %1535 = vmatpush1.msra.mxu0 0.0
  %1536 = vmatprep.subr.mxu0 0.0
  %1537 = vmatpush1.msra.mxu0 0.0
  %1538 = vmatprep.subr.mxu0 0.0
  %1539 = vmatpush1.msra.mxu0 0.0
  %1540 = vmatprep.subr.mxu0 0.0
  %1541 = vmatpush1.msra.mxu0 0.0
  %1542 = vmatprep.subr.mxu0 0.0
  %1543 = vmatpush1.msra.mxu0 0.0
  %1544 = vmatprep.subr.mxu0 0.0
  %1545 = vmatpush1.msra.mxu0 0.0
  %1546 = vmatprep.subr.mxu0 0.0
  %1547 = vmatpush1.msra.mxu0 0.0
  %1548 = vmatprep.subr.mxu0 0.0
  %1549 = vmatpush1.msra.mxu0 0.0
  %1550 = vmatprep.mubr.f32.mxu0 0.0
  %1551 = vmatmul.mubr.f32.gmra.mrb[0].mxu0 %v1462
  %v1552 = vpop.f32.mrb[0].mxu0
  %v1553 = vadd.f32 %v1484, %v1552
  %v1554 = vpop.f32.mrb[0].mxu0
  %1555 = vdwg.mxu0
  %1556 = vst [vmem:[%s7] sm:$0xff] %v1553
  // Predicated region
  $region30: #{net_forward.5} parent=0 // pred_check
    _
  $region31: #{net_forward.5} parent=0 // pred_check_branch
    %1558 = sbr.rel (0) target = $region33
  $region32: #{net_forward.5} parent=0 // pred_region
    _
  $region33: #{net_forward.5} parent=0 // pred_fallthru
    _
  // Predicated region
  $region34: #{net_forward.5} parent=0 // pred_check
    _
  $region35: #{net_forward.5} parent=0 // pred_check_branch
    %1560 = sbr.rel (0) target = $region37
  $region36: #{net_forward.5} parent=0 // pred_region
    _
  $region37: #{net_forward.5} parent=0 // pred_fallthru
    _

</llo_original>
